<compile_context>
chip_gen: v6e
topology: v6e:2x2x1
jax: 0.10.0
libtpu: 0.0.40
codegen_flags: <defaults>
</compile_context>

<pallas_src>
import jax
import jax.numpy as jnp
from jax.experimental import pallas as pl
from jax.experimental.pallas import tpu as pltpu

NUM_FTRS = 1024                 # googlenet fc.in_features
HID1, HID2, OUT = 400, 200, 2
# Lane-aligned padded head dims (zero padding => bit-identical math).
H1P, H2P, OUTP = 512, 256, 128


def siamese_fused_kernel(x_ref, wc_ref, bc_ref,
                         w1_ref, b1_ref, w2_ref, b2_ref, w3_ref, b3_ref,
                         out_ref, acc_ref):
    """Grid = (batch_tiles, hw_tiles); hw is the reduction (arbitrary) axis."""
    s = pl.program_id(1)

    @pl.when(s == 0)
    def _():
        acc_ref[...] = jnp.zeros_like(acc_ref)

    # --- backbone stand-in: 1x1 conv (C_in -> 1024) + ReLU as one 2-D MXU matmul.
    # NOTE: K = C_in is tiny, so this matmul is MXU feed-bound; at these sizes the
    # kernel is DMA/VPU bound anyway, so it stays on the MXU for simplicity.
    x = x_ref[...]                                    # (BT, HWT, C) bf16
    bt, hwt, c = x.shape
    x2 = x.reshape(bt * hwt, c)
    y = jnp.dot(x2, wc_ref[...], preferred_element_type=jnp.float32) + bc_ref[...]
    y = jnp.maximum(y, 0.0)                           # (BT*HWT, 1024) f32
    acc_ref[...] += y.reshape(bt, hwt, NUM_FTRS).sum(axis=1)

    # --- Siamese MLP head: run exactly once per batch tile (last HW step).
    @pl.when(s == pl.num_programs(1) - 1)
    def _():
        feat = acc_ref[...].astype(jnp.bfloat16)      # (BT, 1024); 1/HW folded into w1
        h1 = jnp.maximum(
            jnp.dot(feat, w1_ref[...], preferred_element_type=jnp.float32)
            + b1_ref[...], 0.0)
        h2 = jnp.maximum(
            jnp.dot(h1.astype(jnp.bfloat16), w2_ref[...],
                    preferred_element_type=jnp.float32) + b2_ref[...], 0.0)
        out_ref[...] = (
            jnp.dot(h2.astype(jnp.bfloat16), w3_ref[...],
                    preferred_element_type=jnp.float32) + b3_ref[...])


def _pick_batch_tile(n):
    if n <= 8:
        return n
    for t in (64, 32, 16, 8):
        if n % t == 0:
            return t
    return n


def _pick_hw_tile(hw):
    # Keep the per-step (BT, HWT, 1024) f32 intermediate small and give the
    # pipeline >= 2 reduction steps so x-tile DMA overlaps compute.
    for t in (256, 128):
        if hw % t == 0 and hw // t >= 2:
            return t
    if hw % 128 == 0:
        return 128
    return hw


def prepare_params(params, hw):
    """Pad head to lane-aligned sizes, fold 1/HW into w1, cast matmul weights
    to bf16 (accumulation stays f32 in-kernel).  Padding is zeros, so padded
    columns stay exactly 0 through the ReLUs."""
    def pad(a, shape):
        return jnp.zeros(shape, a.dtype).at[:a.shape[0], :a.shape[1]].set(a)

    wc = params['wc'].astype(jnp.bfloat16)
    bc = params['bc'].astype(jnp.float32)
    w1 = pad(params['w1'] / float(hw), (NUM_FTRS, H1P)).astype(jnp.bfloat16)
    b1 = pad(params['b1'], (1, H1P)).astype(jnp.float32)
    w2 = pad(params['w2'], (H1P, H2P)).astype(jnp.bfloat16)
    b2 = pad(params['b2'], (1, H2P)).astype(jnp.float32)
    w3 = pad(params['w3'], (H2P, OUTP)).astype(jnp.bfloat16)
    b3 = pad(params['b3'], (1, OUTP)).astype(jnp.float32)
    return wc, bc, w1, b1, w2, b2, w3, b3


@jax.jit
def siamese_forward(input1, input2, params):
    """Matches SiameseNet.forward: returns (emb1, emb2), each (B, 2).
    Both branches are computed by one fused pallas_call."""
    B, C, H, W = input1.shape
    hw = H * W
    n = 2 * B

    # NCHW -> (2B, HW, C) bf16 so the 1x1-conv backbone is a matmul over C.
    x = jnp.concatenate([input1, input2], axis=0)
    x = jnp.transpose(x, (0, 2, 3, 1)).reshape(n, hw, C).astype(jnp.bfloat16)

    bt = _pick_batch_tile(n)
    hwt = _pick_hw_tile(hw)
    nb, ns = n // bt, hw // hwt

    wc, bc, w1, b1, w2, b2, w3, b3 = prepare_params(params, hw)

    def const(shape):
        return pl.BlockSpec(shape, lambda b, s: (0,) * len(shape))

    flops = (2 * n * hw * C * NUM_FTRS
             + 2 * n * (NUM_FTRS * H1P + H1P * H2P + H2P * OUTP))
    bytes_accessed = (x.size * x.dtype.itemsize
                      + sum(a.size * a.dtype.itemsize
                            for a in (wc, bc, w1, b1, w2, b2, w3, b3))
                      + n * OUTP * 4)

    out = pl.pallas_call(
        siamese_fused_kernel,
        out_shape=jax.ShapeDtypeStruct((n, OUTP), jnp.float32),
        grid_spec=pltpu.PrefetchScalarGridSpec(
            num_scalar_prefetch=0,
            grid=(nb, ns),
            in_specs=[
                pl.BlockSpec((bt, hwt, C), lambda b, s: (b, s, 0)),
                const((C, NUM_FTRS)), const((1, NUM_FTRS)),        # wc, bc (VMEM-resident)
                const((NUM_FTRS, H1P)), const((1, H1P)),           # w1, b1
                const((H1P, H2P)), const((1, H2P)),                # w2, b2
                const((H2P, OUTP)), const((1, OUTP)),              # w3, b3
            ],
            out_specs=pl.BlockSpec((bt, OUTP), lambda b, s: (b, 0)),
            scratch_shapes=[pltpu.VMEM((bt, NUM_FTRS), jnp.float32)],
        ),
        compiler_params=pltpu.CompilerParams(
            dimension_semantics=("parallel", "arbitrary"),  # batch sharded across TCs on v7x
            vmem_limit_bytes=32 << 20,                      # explicit, with headroom on 64 MiB v7x
        ),
        cost_estimate=pl.CostEstimate(flops=flops, transcendentals=0,
                                      bytes_accessed=bytes_accessed),
    )(x, wc, bc, w1, b1, w2, b2, w3, b3)

    out = out[:, :OUT]              # drop lane padding
    return out[:B], out[B:]


def init_params(key, c_in):
    """Deterministic PyTorch-style uniform(-1/sqrt(fan_in), 1/sqrt(fan_in)) init."""
    def linear(k, fan_in, fan_out):
        bound = float(fan_in) ** -0.5
        kw, kb = jax.random.split(k)
        w = jax.random.uniform(kw, (fan_in, fan_out), jnp.float32, -bound, bound)
        b = jax.random.uniform(kb, (1, fan_out), jnp.float32, -bound, bound)
        return w, b

    k0, k1, k2, k3 = jax.random.split(key, 4)
    wc, bc = linear(k0, c_in, NUM_FTRS)   # stand-in backbone 1x1-conv weights
    w1, b1 = linear(k1, NUM_FTRS, HID1)   # nn.Linear(1024, 400)
    w2, b2 = linear(k2, HID1, HID2)       # nn.Linear(400, 200)
    w3, b3 = linear(k3, HID2, OUT)        # nn.Linear(200, 2)
    return dict(wc=wc, bc=bc, w1=w1, b1=b1, w2=w2, b2=b2, w3=w3, b3=b3)


def reference_forward_once(x_nchw, params):
    """Pure-JAX f32 reference of one branch (same stand-in backbone)."""
    B, C, H, W = x_nchw.shape
    x = jnp.transpose(x_nchw, (0, 2, 3, 1)).reshape(B, H * W, C).astype(jnp.float32)
    y = jnp.maximum(jnp.einsum('bsc,cf->bsf', x, params['wc']) + params['bc'], 0.0)
    feat = jnp.mean(y, axis=1)
    h1 = jnp.maximum(feat @ params['w1'] + params['b1'], 0.0)
    h2 = jnp.maximum(h1 @ params['w2'] + params['b2'], 0.0)
    return h2 @ params['w3'] + params['b3']


if __name__ == "__main__":
    key = jax.random.PRNGKey(0)
    kp, k1, k2 = jax.random.split(key, 3)

    B, C, H, W = 2, 4, 16, 16               # small synthetic NCHW inputs
    params = init_params(kp, C)
    input1 = jax.random.normal(k1, (B, C, H, W), jnp.float32)
    input2 = jax.random.normal(k2, (B, C, H, W), jnp.float32)

    emb1, emb2 = siamese_forward(input1, input2, params)
    jax.block_until_ready((emb1, emb2))

    assert emb1.shape == (B, OUT) and emb2.shape == (B, OUT)
    assert emb1.dtype == jnp.float32 and emb2.dtype == jnp.float32

    ref1 = reference_forward_once(input1, params)
    ref2 = reference_forward_once(input2, params)
    err = max(float(jnp.max(jnp.abs(emb1 - ref1))),
              float(jnp.max(jnp.abs(emb2 - ref2))))
    assert err < 5e-2, f"kernel vs reference max abs err {err}"

    print("KERNEL_OK")
</pallas_src>

<mosaic_0001>
module attributes {stable_mosaic.version = 11 : i64} {
  func.func @siamese_fused_kernel(%arg0: i32, %arg1: i32, %arg2: memref<4x128x4xbf16, #tpu.memory_space<vmem>>, %arg3: memref<4x1024xbf16, #tpu.memory_space<vmem>>, %arg4: memref<1x1024xf32, #tpu.memory_space<vmem>>, %arg5: memref<1024x512xbf16, #tpu.memory_space<vmem>>, %arg6: memref<1x512xf32, #tpu.memory_space<vmem>>, %arg7: memref<512x256xbf16, #tpu.memory_space<vmem>>, %arg8: memref<1x256xf32, #tpu.memory_space<vmem>>, %arg9: memref<256x128xbf16, #tpu.memory_space<vmem>>, %arg10: memref<1x128xf32, #tpu.memory_space<vmem>>, %arg11: memref<4x128xf32, #tpu.memory_space<vmem>>, %arg12: memref<4x1024xf32, #tpu.memory_space<vmem>>) attributes {dimension_semantics = [#tpu.dimension_semantics<parallel>, #tpu.dimension_semantics<arbitrary>], iteration_bounds = array<i64: 1, 2>, scalar_prefetch = 0 : i64, scratch_operands = 1 : i64, tpu.core_type = #tpu.core_type<tc>, window_params = [{transform_indices = @transform_0, window_bounds = array<i64: 4, 128, 4>}, {pipeline_mode = #tpu.pipeline_mode<synchronous>, transform_indices = @transform_1, window_bounds = array<i64: 4, 1024>}, {pipeline_mode = #tpu.pipeline_mode<synchronous>, transform_indices = @transform_2, window_bounds = array<i64: 1, 1024>}, {pipeline_mode = #tpu.pipeline_mode<synchronous>, transform_indices = @transform_3, window_bounds = array<i64: 1024, 512>}, {pipeline_mode = #tpu.pipeline_mode<synchronous>, transform_indices = @transform_4, window_bounds = array<i64: 1, 512>}, {pipeline_mode = #tpu.pipeline_mode<synchronous>, transform_indices = @transform_5, window_bounds = array<i64: 512, 256>}, {pipeline_mode = #tpu.pipeline_mode<synchronous>, transform_indices = @transform_6, window_bounds = array<i64: 1, 256>}, {pipeline_mode = #tpu.pipeline_mode<synchronous>, transform_indices = @transform_7, window_bounds = array<i64: 256, 128>}, {pipeline_mode = #tpu.pipeline_mode<synchronous>, transform_indices = @transform_8, window_bounds = array<i64: 1, 128>}, {transform_indices = @transform_9, window_bounds = array<i64: 4, 128>}]} {
    %c0_i32 = arith.constant 0 : i32
    %0 = arith.cmpi eq, %arg1, %c0_i32 : i32
    %1 = arith.extui %0 : i1 to i32
    %c0_i32_0 = arith.constant 0 : i32
    %2 = arith.cmpi ne, %1, %c0_i32_0 : i32
    scf.if %2 {
      %cst_14 = arith.constant 0.000000e+00 : f32
      %20 = vector.broadcast %cst_14 : f32 to vector<4x1024xf32>
      %c0_15 = arith.constant 0 : index
      %c0_16 = arith.constant 0 : index
      %21 = vector.load %arg12[%c0_15, %c0_16] : memref<4x1024xf32, #tpu.memory_space<vmem>>, vector<4x1024xf32>
      tpu.vector_store %arg12[%c0_15, %c0_16], %20 {strides = array<i32>} : memref<4x1024xf32, #tpu.memory_space<vmem>>, vector<4x1024xf32>,
    } else {
    }
    %c0 = arith.constant 0 : index
    %c0_1 = arith.constant 0 : index
    %c0_2 = arith.constant 0 : index
    %3 = vector.load %arg2[%c0, %c0_1, %c0_2] : memref<4x128x4xbf16, #tpu.memory_space<vmem>>, vector<4x128x4xbf16>
    %4 = vector.shape_cast %3 : vector<4x128x4xbf16> to vector<512x4xbf16>
    %c0_3 = arith.constant 0 : index
    %c0_4 = arith.constant 0 : index
    %5 = vector.load %arg3[%c0_3, %c0_4] : memref<4x1024xbf16, #tpu.memory_space<vmem>>, vector<4x1024xbf16>
    %cst = arith.constant dense<0.000000e+00> : vector<512x1024xf32>
    %6 = tpu.matmul %4, %5, %cst {dimension_numbers = #tpu.dot_dimension_numbers<[1], [0], [0], [1], [0, 0, 1, 1], [], []>} : vector<512x4xbf16>, vector<4x1024xbf16>, vector<512x1024xf32> -> vector<512x1024xf32>
    %c0_5 = arith.constant 0 : index
    %c0_6 = arith.constant 0 : index
    %7 = vector.load %arg4[%c0_5, %c0_6] : memref<1x1024xf32, #tpu.memory_space<vmem>>, vector<1x1024xf32>
    %8 = vector.broadcast %7 : vector<1x1024xf32> to vector<512x1024xf32>
    %9 = arith.addf %6, %8 : vector<512x1024xf32>
    %cst_7 = arith.constant 0.000000e+00 : f32
    %10 = vector.broadcast %cst_7 : f32 to vector<512x1024xf32>
    %11 = arith.maximumf %9, %10 : vector<512x1024xf32>
    %c0_8 = arith.constant 0 : index
    %c0_9 = arith.constant 0 : index
    %12 = vector.load %arg12[%c0_8, %c0_9] : memref<4x1024xf32, #tpu.memory_space<vmem>>, vector<4x1024xf32>
    %13 = vector.shape_cast %11 : vector<512x1024xf32> to vector<4x128x1024xf32>
    %cst_10 = arith.constant dense<0.000000e+00> : vector<4x1024xf32>
    %14 = vector.multi_reduction <add>, %13, %cst_10 [1] : vector<4x128x1024xf32> to vector<4x1024xf32>
    %15 = arith.addf %12, %14 : vector<4x1024xf32>
    %c0_11 = arith.constant 0 : index
    %c0_12 = arith.constant 0 : index
    %16 = vector.load %arg12[%c0_11, %c0_12] : memref<4x1024xf32, #tpu.memory_space<vmem>>, vector<4x1024xf32>
    tpu.vector_store %arg12[%c0_11, %c0_12], %15 {strides = array<i32>} : memref<4x1024xf32, #tpu.memory_space<vmem>>, vector<4x1024xf32>,
    %c1_i32 = arith.constant 1 : i32
    %17 = arith.cmpi eq, %arg1, %c1_i32 : i32
    %18 = arith.extui %17 : i1 to i32
    %c0_i32_13 = arith.constant 0 : i32
    %19 = arith.cmpi ne, %18, %c0_i32_13 : i32
    scf.if %19 {
      %c0_14 = arith.constant 0 : index
      %c0_15 = arith.constant 0 : index
      %20 = vector.load %arg12[%c0_14, %c0_15] : memref<4x1024xf32, #tpu.memory_space<vmem>>, vector<4x1024xf32>
      %21 = arith.truncf %20 : vector<4x1024xf32> to vector<4x1024xbf16>
      %c0_16 = arith.constant 0 : index
      %c0_17 = arith.constant 0 : index
      %22 = vector.load %arg5[%c0_16, %c0_17] : memref<1024x512xbf16, #tpu.memory_space<vmem>>, vector<1024x512xbf16>
      %cst_18 = arith.constant dense<0.000000e+00> : vector<4x512xf32>
      %23 = tpu.matmul %21, %22, %cst_18 {dimension_numbers = #tpu.dot_dimension_numbers<[1], [0], [0], [1], [0, 0, 1, 1], [], []>} : vector<4x1024xbf16>, vector<1024x512xbf16>, vector<4x512xf32> -> vector<4x512xf32>
      %c0_19 = arith.constant 0 : index
      %c0_20 = arith.constant 0 : index
      %24 = vector.load %arg6[%c0_19, %c0_20] : memref<1x512xf32, #tpu.memory_space<vmem>>, vector<1x512xf32>
      %25 = vector.broadcast %24 : vector<1x512xf32> to vector<4x512xf32>
      %26 = arith.addf %23, %25 : vector<4x512xf32>
      %cst_21 = arith.constant 0.000000e+00 : f32
      %27 = vector.broadcast %cst_21 : f32 to vector<4x512xf32>
      %28 = arith.maximumf %26, %27 : vector<4x512xf32>
      %29 = arith.truncf %28 : vector<4x512xf32> to vector<4x512xbf16>
      %c0_22 = arith.constant 0 : index
      %c0_23 = arith.constant 0 : index
      %30 = vector.load %arg7[%c0_22, %c0_23] : memref<512x256xbf16, #tpu.memory_space<vmem>>, vector<512x256xbf16>
      %cst_24 = arith.constant dense<0.000000e+00> : vector<4x256xf32>
      %31 = tpu.matmul %29, %30, %cst_24 {dimension_numbers = #tpu.dot_dimension_numbers<[1], [0], [0], [1], [0, 0, 1, 1], [], []>} : vector<4x512xbf16>, vector<512x256xbf16>, vector<4x256xf32> -> vector<4x256xf32>
      %c0_25 = arith.constant 0 : index
      %c0_26 = arith.constant 0 : index
      %32 = vector.load %arg8[%c0_25, %c0_26] : memref<1x256xf32, #tpu.memory_space<vmem>>, vector<1x256xf32>
      %33 = vector.broadcast %32 : vector<1x256xf32> to vector<4x256xf32>
      %34 = arith.addf %31, %33 : vector<4x256xf32>
      %cst_27 = arith.constant 0.000000e+00 : f32
      %35 = vector.broadcast %cst_27 : f32 to vector<4x256xf32>
      %36 = arith.maximumf %34, %35 : vector<4x256xf32>
      %37 = arith.truncf %36 : vector<4x256xf32> to vector<4x256xbf16>
      %c0_28 = arith.constant 0 : index
      %c0_29 = arith.constant 0 : index
      %38 = vector.load %arg9[%c0_28, %c0_29] : memref<256x128xbf16, #tpu.memory_space<vmem>>, vector<256x128xbf16>
      %cst_30 = arith.constant dense<0.000000e+00> : vector<4x128xf32>
      %39 = tpu.matmul %37, %38, %cst_30 {dimension_numbers = #tpu.dot_dimension_numbers<[1], [0], [0], [1], [0, 0, 1, 1], [], []>} : vector<4x256xbf16>, vector<256x128xbf16>, vector<4x128xf32> -> vector<4x128xf32>
      %c0_31 = arith.constant 0 : index
      %c0_32 = arith.constant 0 : index
      %40 = vector.load %arg10[%c0_31, %c0_32] : memref<1x128xf32, #tpu.memory_space<vmem>>, vector<1x128xf32>
      %41 = vector.broadcast %40 : vector<1x128xf32> to vector<4x128xf32>
      %42 = arith.addf %39, %41 : vector<4x128xf32>
      %c0_33 = arith.constant 0 : index
      %c0_34 = arith.constant 0 : index
      %43 = vector.load %arg11[%c0_33, %c0_34] : memref<4x128xf32, #tpu.memory_space<vmem>>, vector<4x128xf32>
      tpu.vector_store %arg11[%c0_33, %c0_34], %42 {strides = array<i32>} : memref<4x128xf32, #tpu.memory_space<vmem>>, vector<4x128xf32>,
    } else {
    }
    return
  }
  func.func @transform_0(%arg0: i32, %arg1: i32) -> (i32, i32, i32) {
    %c0_i32 = arith.constant 0 : i32
    %c0_i32_0 = arith.constant 0 : i32
    return %arg0, %arg1, %c0_i32 : i32, i32, i32
  }
  func.func @transform_1(%arg0: i32, %arg1: i32) -> (i32, i32) {
    %c0_i32 = arith.constant 0 : i32
    %c0_i32_0 = arith.constant 0 : i32
    %c0_i32_1 = arith.constant 0 : i32
    return %c0_i32, %c0_i32_0 : i32, i32
  }
  func.func @transform_2(%arg0: i32, %arg1: i32) -> (i32, i32) {
    %c0_i32 = arith.constant 0 : i32
    %c0_i32_0 = arith.constant 0 : i32
    %c0_i32_1 = arith.constant 0 : i32
    return %c0_i32, %c0_i32_0 : i32, i32
  }
  func.func @transform_3(%arg0: i32, %arg1: i32) -> (i32, i32) {
    %c0_i32 = arith.constant 0 : i32
    %c0_i32_0 = arith.constant 0 : i32
    %c0_i32_1 = arith.constant 0 : i32
    return %c0_i32, %c0_i32_0 : i32, i32
  }
  func.func @transform_4(%arg0: i32, %arg1: i32) -> (i32, i32) {
    %c0_i32 = arith.constant 0 : i32
    %c0_i32_0 = arith.constant 0 : i32
    %c0_i32_1 = arith.constant 0 : i32
    return %c0_i32, %c0_i32_0 : i32, i32
  }
  func.func @transform_5(%arg0: i32, %arg1: i32) -> (i32, i32) {
    %c0_i32 = arith.constant 0 : i32
    %c0_i32_0 = arith.constant 0 : i32
    %c0_i32_1 = arith.constant 0 : i32
    return %c0_i32, %c0_i32_0 : i32, i32
  }
  func.func @transform_6(%arg0: i32, %arg1: i32) -> (i32, i32) {
    %c0_i32 = arith.constant 0 : i32
    %c0_i32_0 = arith.constant 0 : i32
    %c0_i32_1 = arith.constant 0 : i32
    return %c0_i32, %c0_i32_0 : i32, i32
  }
  func.func @transform_7(%arg0: i32, %arg1: i32) -> (i32, i32) {
    %c0_i32 = arith.constant 0 : i32
    %c0_i32_0 = arith.constant 0 : i32
    %c0_i32_1 = arith.constant 0 : i32
    return %c0_i32, %c0_i32_0 : i32, i32
  }
  func.func @transform_8(%arg0: i32, %arg1: i32) -> (i32, i32) {
    %c0_i32 = arith.constant 0 : i32
    %c0_i32_0 = arith.constant 0 : i32
    %c0_i32_1 = arith.constant 0 : i32
    return %c0_i32, %c0_i32_0 : i32, i32
  }
  func.func @transform_9(%arg0: i32, %arg1: i32) -> (i32, i32) {
    %c0_i32 = arith.constant 0 : i32
    %c0_i32_0 = arith.constant 0 : i32
    return %arg0, %c0_i32 : i32, i32
  }
}

</mosaic_0001>

<llo_original>
// kernel: siamese_forward.1
$region0: #{siamese_forward.1}
  #allocation0 [shape = 'u32[]', space=smem, size = 0x4, offset = 0x4, fixed_abs, tag = 'smem constant byte address 0x4 - core index']
  #allocation1 [shape = 'u32[144,128]{1,0:T(1,128)}', space=vmem, size = 0x12000, scoped, tag = 'internal scratch']
  #allocation2 [shape = 'f32[4,1024]{1,0:T(4,128)}', space=vmem, size = 0x4000, scoped, tag = 'scratch operand']
  %s0 = inlined_call_operand.vmem [shape: bf16[4,256,4], index: 0, kind: input, shape index: {}]
  %s1 = inlined_call_operand.vmem [shape: bf16[4,1024], index: 1, kind: input, shape index: {}]
  %s2 = inlined_call_operand.vmem [shape: f32[1,1024], index: 2, kind: input, shape index: {}]
  %s3 = inlined_call_operand.vmem [shape: bf16[1024,512], index: 3, kind: input, shape index: {}]
  %s4 = inlined_call_operand.vmem [shape: f32[1,512], index: 4, kind: input, shape index: {}]
  %s5 = inlined_call_operand.vmem [shape: bf16[512,256], index: 5, kind: input, shape index: {}]
  %s6 = inlined_call_operand.vmem [shape: f32[1,256], index: 6, kind: input, shape index: {}]
  %s7 = inlined_call_operand.vmem [shape: bf16[256,128], index: 7, kind: input, shape index: {}]
  %s8 = inlined_call_operand.vmem [shape: f32[1,128], index: 8, kind: input, shape index: {}]
  %s9 = inlined_call_operand.vmem [shape: f32[4,128], index: 9, kind: output, shape index: {}]
  %s10 = sld [smem:[#allocation0]]
  $region118: #{siamese_forward.1} parent=0
    _
  %s12 = ssub.s32 1, %s10
  %s13 = scalar_select 0, %s12, %s10
  $region1: #{siamese_forward.1} parent=0
    #allocation3 [shape = 'u8[262144]{0}', space=vmem, size = 0x40000, scoped, tag = 'input window, operand 0']
    loop: start=0, step=1, limit=4
    $region2: #{siamese_forward.1} parent=1 // loop_pre_header
      _
    $region3: #{siamese_forward.1} parent=1 // loop_header
      %s15 = sphi 0, %s19
      %p16 = scmp.ge.s32.totalorder %s15, 4
      %s22 = sphi 0, %s34
      %s23 = sphi 0, %s30
      %s24 = sphi 0, %s22
      %s25 = sphi 0, %s23
      %s26 = sphi 0, %s24
      %s27 = sphi 0, %s25
      %s39 = sphi 0, %s41
      %s42 = sphi 0, %s39
      %s43 = sphi 0, %s42
      %s59 = sphi 0, %s43
      %s63 = sphi 0, %s63
      %s65 = sphi 0, %s63
      %s66 = sphi 0, %s65
      %s80 = sphi 0, %s66
      %s84 = sphi 0, %s84
      %s86 = sphi 0, %s84
      %s87 = sphi 0, %s86
      %s101 = sphi 0, %s87
      %s105 = sphi 0, %s105
      %s107 = sphi 0, %s105
      %s108 = sphi 0, %s107
      %s122 = sphi 0, %s108
      %s126 = sphi 0, %s126
      %s128 = sphi 0, %s126
      %s129 = sphi 0, %s128
      %s143 = sphi 0, %s129
      %s147 = sphi 0, %s147
      %s149 = sphi 0, %s147
      %s150 = sphi 0, %s149
      %s164 = sphi 0, %s150
      %s168 = sphi 0, %s168
      %s170 = sphi 0, %s168
      %s171 = sphi 0, %s170
      %s185 = sphi 0, %s171
      %s189 = sphi 0, %s189
      %s191 = sphi 0, %s189
      %s192 = sphi 0, %s191
      %s206 = sphi 0, %s192
      %s210 = sphi 0, %s210
      %s212 = sphi 0, %s210
      %s213 = sphi 0, %s212
      %s227 = sphi 0, %s213
      %s233 = sphi 0, %s235
      %s236 = sphi 0, %s233
      %s237 = sphi 0, %s236
      %s253 = sphi 0, %s237
    $region4: #{siamese_forward.1} parent=1 // loop_header_branch
      %18 = sbr.rel (%p16) target = $region8
    $region5: #{siamese_forward.1} parent=1 // loop_body
      %s20 = ssub.s32 %s15, 1
      %s21 = ssub.s32 %s15, 2
      %s28 = sadd.s32 1, %s23
      %p29 = scmp.ge.s32.totalorder %s28, 2
      %s30 = scalar_select %p29, 0, %s28
      %s31 = sadd.s32 1, %s22
      %s32 = scalar_select %p29, %s31, %s22
      %p33 = scmp.ge.s32.totalorder %s32, 1
      %s34 = scalar_select %p33, 0, %s32
      %s35 = ssub.s32 %s22, %s34
      %s36 = ssub.s32 %s23, %s30
      %s37 = sor.u32 %s35, %s36
      %p38 = scmp.eq.s32.totalorder %s37, 0
      %s40 = sadd.s32 %s39, 1
      %s41 = scalar_select %p38, %s39, %s40
      %p44 = pneg %p38
      %p45 = scmp.eq.s32.totalorder %s15, 1
      %p46 = por %p44, %p45
      %p47 = scmp.ne.s32.totalorder %s39, %s42
      %p48 = scmp.eq.s32.totalorder %s15, 0
      %p49 = por %p47, %p48
      %p50 = scmp.ne.s32.totalorder %s39, %s42
      %p51 = scmp.eq.s32.totalorder %s20, 1
      %p52 = por %p50, %p51
      %p53 = scmp.ne.s32.totalorder %s42, %s43
      %p54 = scmp.eq.s32.totalorder %s20, 0
      %p55 = por %p53, %p54
      %p56 = scmp.ne.s32.totalorder %s42, %s43
      %p57 = scmp.eq.s32.totalorder %s21, 1
      %p58 = por %p56, %p57
      %p60 = scmp.ne.s32.totalorder %s43, %s59
      %p61 = scmp.eq.s32.totalorder %s21, 0
      %p62 = por %p60, %p61
      %s64 = sadd.s32 %s63, 1
      %p67 = scmp.eq.s32.totalorder %s15, 1
      %p68 = scmp.ne.s32.totalorder %s63, %s65
      %p69 = scmp.eq.s32.totalorder %s15, 0
      %p70 = por %p68, %p69
      %p71 = scmp.ne.s32.totalorder %s63, %s65
      %p72 = scmp.eq.s32.totalorder %s20, 1
      %p73 = por %p71, %p72
      %p74 = scmp.ne.s32.totalorder %s65, %s66
      %p75 = scmp.eq.s32.totalorder %s20, 0
      %p76 = por %p74, %p75
      %p77 = scmp.ne.s32.totalorder %s65, %s66
      %p78 = scmp.eq.s32.totalorder %s21, 1
      %p79 = por %p77, %p78
      %p81 = scmp.ne.s32.totalorder %s66, %s80
      %p82 = scmp.eq.s32.totalorder %s21, 0
      %p83 = por %p81, %p82
      %s85 = sadd.s32 %s84, 1
      %p88 = scmp.eq.s32.totalorder %s15, 1
      %p89 = scmp.ne.s32.totalorder %s84, %s86
      %p90 = scmp.eq.s32.totalorder %s15, 0
      %p91 = por %p89, %p90
      %p92 = scmp.ne.s32.totalorder %s84, %s86
      %p93 = scmp.eq.s32.totalorder %s20, 1
      %p94 = por %p92, %p93
      %p95 = scmp.ne.s32.totalorder %s86, %s87
      %p96 = scmp.eq.s32.totalorder %s20, 0
      %p97 = por %p95, %p96
      %p98 = scmp.ne.s32.totalorder %s86, %s87
      %p99 = scmp.eq.s32.totalorder %s21, 1
      %p100 = por %p98, %p99
      %p102 = scmp.ne.s32.totalorder %s87, %s101
      %p103 = scmp.eq.s32.totalorder %s21, 0
      %p104 = por %p102, %p103
      %s106 = sadd.s32 %s105, 1
      %p109 = scmp.eq.s32.totalorder %s15, 1
      %p110 = scmp.ne.s32.totalorder %s105, %s107
      %p111 = scmp.eq.s32.totalorder %s15, 0
      %p112 = por %p110, %p111
      %p113 = scmp.ne.s32.totalorder %s105, %s107
      %p114 = scmp.eq.s32.totalorder %s20, 1
      %p115 = por %p113, %p114
      %p116 = scmp.ne.s32.totalorder %s107, %s108
      %p117 = scmp.eq.s32.totalorder %s20, 0
      %p118 = por %p116, %p117
      %p119 = scmp.ne.s32.totalorder %s107, %s108
      %p120 = scmp.eq.s32.totalorder %s21, 1
      %p121 = por %p119, %p120
      %p123 = scmp.ne.s32.totalorder %s108, %s122
      %p124 = scmp.eq.s32.totalorder %s21, 0
      %p125 = por %p123, %p124
      %s127 = sadd.s32 %s126, 1
      %p130 = scmp.eq.s32.totalorder %s15, 1
      %p131 = scmp.ne.s32.totalorder %s126, %s128
      %p132 = scmp.eq.s32.totalorder %s15, 0
      %p133 = por %p131, %p132
      %p134 = scmp.ne.s32.totalorder %s126, %s128
      %p135 = scmp.eq.s32.totalorder %s20, 1
      %p136 = por %p134, %p135
      %p137 = scmp.ne.s32.totalorder %s128, %s129
      %p138 = scmp.eq.s32.totalorder %s20, 0
      %p139 = por %p137, %p138
      %p140 = scmp.ne.s32.totalorder %s128, %s129
      %p141 = scmp.eq.s32.totalorder %s21, 1
      %p142 = por %p140, %p141
      %p144 = scmp.ne.s32.totalorder %s129, %s143
      %p145 = scmp.eq.s32.totalorder %s21, 0
      %p146 = por %p144, %p145
      %s148 = sadd.s32 %s147, 1
      %p151 = scmp.eq.s32.totalorder %s15, 1
      %p152 = scmp.ne.s32.totalorder %s147, %s149
      %p153 = scmp.eq.s32.totalorder %s15, 0
      %p154 = por %p152, %p153
      %p155 = scmp.ne.s32.totalorder %s147, %s149
      %p156 = scmp.eq.s32.totalorder %s20, 1
      %p157 = por %p155, %p156
      %p158 = scmp.ne.s32.totalorder %s149, %s150
      %p159 = scmp.eq.s32.totalorder %s20, 0
      %p160 = por %p158, %p159
      %p161 = scmp.ne.s32.totalorder %s149, %s150
      %p162 = scmp.eq.s32.totalorder %s21, 1
      %p163 = por %p161, %p162
      %p165 = scmp.ne.s32.totalorder %s150, %s164
      %p166 = scmp.eq.s32.totalorder %s21, 0
      %p167 = por %p165, %p166
      %s169 = sadd.s32 %s168, 1
      %p172 = scmp.eq.s32.totalorder %s15, 1
      %p173 = scmp.ne.s32.totalorder %s168, %s170
      %p174 = scmp.eq.s32.totalorder %s15, 0
      %p175 = por %p173, %p174
      %p176 = scmp.ne.s32.totalorder %s168, %s170
      %p177 = scmp.eq.s32.totalorder %s20, 1
      %p178 = por %p176, %p177
      %p179 = scmp.ne.s32.totalorder %s170, %s171
      %p180 = scmp.eq.s32.totalorder %s20, 0
      %p181 = por %p179, %p180
      %p182 = scmp.ne.s32.totalorder %s170, %s171
      %p183 = scmp.eq.s32.totalorder %s21, 1
      %p184 = por %p182, %p183
      %p186 = scmp.ne.s32.totalorder %s171, %s185
      %p187 = scmp.eq.s32.totalorder %s21, 0
      %p188 = por %p186, %p187
      %s190 = sadd.s32 %s189, 1
      %p193 = scmp.eq.s32.totalorder %s15, 1
      %p194 = scmp.ne.s32.totalorder %s189, %s191
      %p195 = scmp.eq.s32.totalorder %s15, 0
      %p196 = por %p194, %p195
      %p197 = scmp.ne.s32.totalorder %s189, %s191
      %p198 = scmp.eq.s32.totalorder %s20, 1
      %p199 = por %p197, %p198
      %p200 = scmp.ne.s32.totalorder %s191, %s192
      %p201 = scmp.eq.s32.totalorder %s20, 0
      %p202 = por %p200, %p201
      %p203 = scmp.ne.s32.totalorder %s191, %s192
      %p204 = scmp.eq.s32.totalorder %s21, 1
      %p205 = por %p203, %p204
      %p207 = scmp.ne.s32.totalorder %s192, %s206
      %p208 = scmp.eq.s32.totalorder %s21, 0
      %p209 = por %p207, %p208
      %s211 = sadd.s32 %s210, 1
      %p214 = scmp.eq.s32.totalorder %s15, 1
      %p215 = scmp.ne.s32.totalorder %s210, %s212
      %p216 = scmp.eq.s32.totalorder %s15, 0
      %p217 = por %p215, %p216
      %p218 = scmp.ne.s32.totalorder %s210, %s212
      %p219 = scmp.eq.s32.totalorder %s20, 1
      %p220 = por %p218, %p219
      %p221 = scmp.ne.s32.totalorder %s212, %s213
      %p222 = scmp.eq.s32.totalorder %s20, 0
      %p223 = por %p221, %p222
      %p224 = scmp.ne.s32.totalorder %s212, %s213
      %p225 = scmp.eq.s32.totalorder %s21, 1
      %p226 = por %p224, %p225
      %p228 = scmp.ne.s32.totalorder %s213, %s227
      %p229 = scmp.eq.s32.totalorder %s21, 0
      %p230 = por %p228, %p229
      %s231 = ssub.s32 %s22, %s34
      %p232 = scmp.eq.s32.totalorder %s231, 0
      %s234 = sadd.s32 %s233, 1
      %s235 = scalar_select %p232, %s233, %s234
      %p238 = pneg %p232
      %p239 = scmp.eq.s32.totalorder %s15, 1
      %p240 = por %p238, %p239
      %p241 = scmp.ne.s32.totalorder %s233, %s236
      %p242 = scmp.eq.s32.totalorder %s15, 0
      %p243 = por %p241, %p242
      %p244 = scmp.ne.s32.totalorder %s233, %s236
      %p245 = scmp.eq.s32.totalorder %s20, 1
      %p246 = por %p244, %p245
      %p247 = scmp.ne.s32.totalorder %s236, %s237
      %p248 = scmp.eq.s32.totalorder %s20, 0
      %p249 = por %p247, %p248
      %p250 = scmp.ne.s32.totalorder %s236, %s237
      %p251 = scmp.eq.s32.totalorder %s21, 1
      %p252 = por %p250, %p251
      %p254 = scmp.ne.s32.totalorder %s237, %s253
      %p255 = scmp.eq.s32.totalorder %s21, 0
      %p256 = por %p254, %p255
      %p257 = scmp.le.s32.totalorder 1, %s15
      %p258 = scmp.lt.s32.totalorder %s15, 3
      %p259 = pnand %p257, %p258
      %p260 = pneg %p259
      // Predicated region
      $region9: #{siamese_forward.1} parent=5 // pred_check
        _
      $region10: #{siamese_forward.1} parent=5 // pred_check_branch
        %262 = sbr.rel (%p259) target = $region12
      $region11: #{siamese_forward.1} parent=5 // pred_region
        %s263 = ssub.s32 %s15, 1
        // Predicated region
        $region13: #{siamese_forward.1} parent=11 // pred_check
          %p264 = pneg %p76
        $region14: #{siamese_forward.1} parent=11 // pred_check_branch
          %266 = sbr.rel (%p264) target = $region16
        $region15: #{siamese_forward.1} parent=11 // pred_region
          _
        $region16: #{siamese_forward.1} parent=11 // pred_fallthru
          _
        // Predicated region
        $region17: #{siamese_forward.1} parent=11 // pred_check
          %p267 = pneg %p97
        $region18: #{siamese_forward.1} parent=11 // pred_check_branch
          %269 = sbr.rel (%p267) target = $region20
        $region19: #{siamese_forward.1} parent=11 // pred_region
          _
        $region20: #{siamese_forward.1} parent=11 // pred_fallthru
          _
        // Predicated region
        $region21: #{siamese_forward.1} parent=11 // pred_check
          %p270 = pneg %p118
        $region22: #{siamese_forward.1} parent=11 // pred_check_branch
          %272 = sbr.rel (%p270) target = $region24
        $region23: #{siamese_forward.1} parent=11 // pred_region
          _
        $region24: #{siamese_forward.1} parent=11 // pred_fallthru
          _
        // Predicated region
        $region25: #{siamese_forward.1} parent=11 // pred_check
          %p273 = pneg %p139
        $region26: #{siamese_forward.1} parent=11 // pred_check_branch
          %275 = sbr.rel (%p273) target = $region28
        $region27: #{siamese_forward.1} parent=11 // pred_region
          _
        $region28: #{siamese_forward.1} parent=11 // pred_fallthru
          _
        // Predicated region
        $region29: #{siamese_forward.1} parent=11 // pred_check
          %p276 = pneg %p160
        $region30: #{siamese_forward.1} parent=11 // pred_check_branch
          %278 = sbr.rel (%p276) target = $region32
        $region31: #{siamese_forward.1} parent=11 // pred_region
          _
        $region32: #{siamese_forward.1} parent=11 // pred_fallthru
          _
        // Predicated region
        $region33: #{siamese_forward.1} parent=11 // pred_check
          %p279 = pneg %p181
        $region34: #{siamese_forward.1} parent=11 // pred_check_branch
          %281 = sbr.rel (%p279) target = $region36
        $region35: #{siamese_forward.1} parent=11 // pred_region
          _
        $region36: #{siamese_forward.1} parent=11 // pred_fallthru
          _
        // Predicated region
        $region37: #{siamese_forward.1} parent=11 // pred_check
          %p282 = pneg %p202
        $region38: #{siamese_forward.1} parent=11 // pred_check_branch
          %284 = sbr.rel (%p282) target = $region40
        $region39: #{siamese_forward.1} parent=11 // pred_region
          _
        $region40: #{siamese_forward.1} parent=11 // pred_fallthru
          _
        // Predicated region
        $region41: #{siamese_forward.1} parent=11 // pred_check
          %p285 = pneg %p223
        $region42: #{siamese_forward.1} parent=11 // pred_check_branch
          %287 = sbr.rel (%p285) target = $region44
        $region43: #{siamese_forward.1} parent=11 // pred_region
          _
        $region44: #{siamese_forward.1} parent=11 // pred_fallthru
          _
      $region12: #{siamese_forward.1} parent=5 // pred_fallthru
        _
      %p288 = scmp.lt.s32.totalorder %s15, 2
      // Predicated region
      $region45: #{siamese_forward.1} parent=5 // pred_check
        %p289 = pneg %p288
      $region46: #{siamese_forward.1} parent=5 // pred_check_branch
        %291 = sbr.rel (%p289) target = $region48
      $region47: #{siamese_forward.1} parent=5 // pred_region
        // Predicated region
        $region49: #{siamese_forward.1} parent=47 // pred_check
          %p292 = pneg %p49
        $region50: #{siamese_forward.1} parent=47 // pred_check_branch
          %294 = sbr.rel (%p292) target = $region52
        $region51: #{siamese_forward.1} parent=47 // pred_region
          %s295 = sand.u32 %s39, 1
          %s296 = sand.u32 %s39, 1
          %s297 = smul.addr %s296, 256
          %s298 = scalar_lea.vmem [#allocation3], %s297
          %s299 = smul.u32 4, %s22
          %s300 = smul.u32 16, %s23
          %s301 = smul.addr %s299, 32
          %s302 = sadd.s32 %s300, %s301
          %s303 = smul.addr %s302, 4
          %s304 = scalar_lea.vmem %s0, %s303
          // Predicated region
          $region53: #{siamese_forward.1} parent=51 // pred_check
            _
          $region54: #{siamese_forward.1} parent=51 // pred_check_branch
            %306 = sbr.rel (0) target = $region56
          $region55: #{siamese_forward.1} parent=51 // pred_region
            // Predicated region
            $region57: #{siamese_forward.1} parent=55 // pred_check
              _
            $region58: #{siamese_forward.1} parent=55 // pred_check_branch
              %308 = sbr.rel target = $region60
            $region59: #{siamese_forward.1} parent=55 // pred_region
              // Predicated region
              $region72: #{siamese_forward.1} parent=59 // pred_check
                _
              $region73: #{siamese_forward.1} parent=59 // pred_check_branch
                %450 = sbr.rel (0) target = $region75
              $region74: #{siamese_forward.1} parent=59 // pred_region
                loop: start=0, step=1, limit=1
                $region76: #{siamese_forward.1} parent=74 // loop_pre_header
                  _
                $region77: #{siamese_forward.1} parent=74 // loop_header
                  %s452 = sphi 0, %s456
                  %p453 = scmp.ge.s32.totalorder %s452, 1
                  %s457 = sphi %s304, %s304
                  %s458 = sphi %s298, %s298
                $region78: #{siamese_forward.1} parent=74 // loop_header_branch
                  %455 = sbr.rel (%p453) target = $region82
                $region79: #{siamese_forward.1} parent=74 // loop_body
                  _
                $region80: #{siamese_forward.1} parent=74 // loop_footer
                  %s456 = sadd.s32 1, %s452
                $region81: #{siamese_forward.1} parent=74 // loop_footer_branch
                  %451 = sbr.rel target = $region77
                $region82: #{siamese_forward.1} parent=74 // loop_exit
                  _
                %s460 = ssub.s32 16, 1
                loop: start=0, step=1, limit=1
                $region83: #{siamese_forward.1} parent=74 // loop_pre_header
                  _
                $region84: #{siamese_forward.1} parent=74 // loop_header
                  %s462 = sphi 0, %s466
                  %p463 = scmp.ge.s32.totalorder %s462, 1
                  %s467 = sphi %s304, %s304
                  %s468 = sphi %s298, %s298
                $region85: #{siamese_forward.1} parent=74 // loop_header_branch
                  %465 = sbr.rel (%p463) target = $region89
                $region86: #{siamese_forward.1} parent=74 // loop_body
                  %v469 = vld [vmem:[%s467] sm:%s460]
                  %470 = vst [vmem:[%s468] sm:%s460] %v469
                  %v471 = vld [vmem:[%s467 + $0x4] sm:%s460]
                  %472 = vst [vmem:[%s468 + $0x4] sm:%s460] %v471
                  %v473 = vld [vmem:[%s467 + $0x8] sm:%s460]
                  %474 = vst [vmem:[%s468 + $0x8] sm:%s460] %v473
                  %v475 = vld [vmem:[%s467 + $0xc] sm:%s460]
                  %476 = vst [vmem:[%s468 + $0xc] sm:%s460] %v475
                  %v477 = vld [vmem:[%s467 + $0x10] sm:%s460]
                  %478 = vst [vmem:[%s468 + $0x10] sm:%s460] %v477
                  %v479 = vld [vmem:[%s467 + $0x14] sm:%s460]
                  %480 = vst [vmem:[%s468 + $0x14] sm:%s460] %v479
                  %v481 = vld [vmem:[%s467 + $0x18] sm:%s460]
                  %482 = vst [vmem:[%s468 + $0x18] sm:%s460] %v481
                  %v483 = vld [vmem:[%s467 + $0x1c] sm:%s460]
                  %484 = vst [vmem:[%s468 + $0x1c] sm:%s460] %v483
                  %v485 = vld [vmem:[%s467 + $0x20] sm:%s460]
                  %486 = vst [vmem:[%s468 + $0x20] sm:%s460] %v485
                  %v487 = vld [vmem:[%s467 + $0x24] sm:%s460]
                  %488 = vst [vmem:[%s468 + $0x24] sm:%s460] %v487
                  %v489 = vld [vmem:[%s467 + $0x28] sm:%s460]
                  %490 = vst [vmem:[%s468 + $0x28] sm:%s460] %v489
                  %v491 = vld [vmem:[%s467 + $0x2c] sm:%s460]
                  %492 = vst [vmem:[%s468 + $0x2c] sm:%s460] %v491
                  %v493 = vld [vmem:[%s467 + $0x30] sm:%s460]
                  %494 = vst [vmem:[%s468 + $0x30] sm:%s460] %v493
                  %v495 = vld [vmem:[%s467 + $0x34] sm:%s460]
                  %496 = vst [vmem:[%s468 + $0x34] sm:%s460] %v495
                  %v497 = vld [vmem:[%s467 + $0x38] sm:%s460]
                  %498 = vst [vmem:[%s468 + $0x38] sm:%s460] %v497
                  %v499 = vld [vmem:[%s467 + $0x3c] sm:%s460]
                  %500 = vst [vmem:[%s468 + $0x3c] sm:%s460] %v499
                  %v501 = vld [vmem:[%s467 + $0x80] sm:%s460]
                  %502 = vst [vmem:[%s468 + $0x40] sm:%s460] %v501
                  %v503 = vld [vmem:[%s467 + $0x84] sm:%s460]
                  %504 = vst [vmem:[%s468 + $0x44] sm:%s460] %v503
                  %v505 = vld [vmem:[%s467 + $0x88] sm:%s460]
                  %506 = vst [vmem:[%s468 + $0x48] sm:%s460] %v505
                  %v507 = vld [vmem:[%s467 + $0x8c] sm:%s460]
                  %508 = vst [vmem:[%s468 + $0x4c] sm:%s460] %v507
                  %v509 = vld [vmem:[%s467 + $0x90] sm:%s460]
                  %510 = vst [vmem:[%s468 + $0x50] sm:%s460] %v509
                  %v511 = vld [vmem:[%s467 + $0x94] sm:%s460]
                  %512 = vst [vmem:[%s468 + $0x54] sm:%s460] %v511
                  %v513 = vld [vmem:[%s467 + $0x98] sm:%s460]
                  %514 = vst [vmem:[%s468 + $0x58] sm:%s460] %v513
                  %v515 = vld [vmem:[%s467 + $0x9c] sm:%s460]
                  %516 = vst [vmem:[%s468 + $0x5c] sm:%s460] %v515
                  %v517 = vld [vmem:[%s467 + $0xa0] sm:%s460]
                  %518 = vst [vmem:[%s468 + $0x60] sm:%s460] %v517
                  %v519 = vld [vmem:[%s467 + $0xa4] sm:%s460]
                  %520 = vst [vmem:[%s468 + $0x64] sm:%s460] %v519
                  %v521 = vld [vmem:[%s467 + $0xa8] sm:%s460]
                  %522 = vst [vmem:[%s468 + $0x68] sm:%s460] %v521
                  %v523 = vld [vmem:[%s467 + $0xac] sm:%s460]
                  %524 = vst [vmem:[%s468 + $0x6c] sm:%s460] %v523
                  %v525 = vld [vmem:[%s467 + $0xb0] sm:%s460]
                  %526 = vst [vmem:[%s468 + $0x70] sm:%s460] %v525
                  %v527 = vld [vmem:[%s467 + $0xb4] sm:%s460]
                  %528 = vst [vmem:[%s468 + $0x74] sm:%s460] %v527
                  %v529 = vld [vmem:[%s467 + $0xb8] sm:%s460]
                  %530 = vst [vmem:[%s468 + $0x78] sm:%s460] %v529
                  %v531 = vld [vmem:[%s467 + $0xbc] sm:%s460]
                  %532 = vst [vmem:[%s468 + $0x7c] sm:%s460] %v531
                  %v533 = vld [vmem:[%s467 + $0x100] sm:%s460]
                  %534 = vst [vmem:[%s468 + $0x80] sm:%s460] %v533
                  %v535 = vld [vmem:[%s467 + $0x104] sm:%s460]
                  %536 = vst [vmem:[%s468 + $0x84] sm:%s460] %v535
                  %v537 = vld [vmem:[%s467 + $0x108] sm:%s460]
                  %538 = vst [vmem:[%s468 + $0x88] sm:%s460] %v537
                  %v539 = vld [vmem:[%s467 + $0x10c] sm:%s460]
                  %540 = vst [vmem:[%s468 + $0x8c] sm:%s460] %v539
                  %v541 = vld [vmem:[%s467 + $0x110] sm:%s460]
                  %542 = vst [vmem:[%s468 + $0x90] sm:%s460] %v541
                  %v543 = vld [vmem:[%s467 + $0x114] sm:%s460]
                  %544 = vst [vmem:[%s468 + $0x94] sm:%s460] %v543
                  %v545 = vld [vmem:[%s467 + $0x118] sm:%s460]
                  %546 = vst [vmem:[%s468 + $0x98] sm:%s460] %v545
                  %v547 = vld [vmem:[%s467 + $0x11c] sm:%s460]
                  %548 = vst [vmem:[%s468 + $0x9c] sm:%s460] %v547
                  %v549 = vld [vmem:[%s467 + $0x120] sm:%s460]
                  %550 = vst [vmem:[%s468 + $0xa0] sm:%s460] %v549
                  %v551 = vld [vmem:[%s467 + $0x124] sm:%s460]
                  %552 = vst [vmem:[%s468 + $0xa4] sm:%s460] %v551
                  %v553 = vld [vmem:[%s467 + $0x128] sm:%s460]
                  %554 = vst [vmem:[%s468 + $0xa8] sm:%s460] %v553
                  %v555 = vld [vmem:[%s467 + $0x12c] sm:%s460]
                  %556 = vst [vmem:[%s468 + $0xac] sm:%s460] %v555
                  %v557 = vld [vmem:[%s467 + $0x130] sm:%s460]
                  %558 = vst [vmem:[%s468 + $0xb0] sm:%s460] %v557
                  %v559 = vld [vmem:[%s467 + $0x134] sm:%s460]
                  %560 = vst [vmem:[%s468 + $0xb4] sm:%s460] %v559
                  %v561 = vld [vmem:[%s467 + $0x138] sm:%s460]
                  %562 = vst [vmem:[%s468 + $0xb8] sm:%s460] %v561
                  %v563 = vld [vmem:[%s467 + $0x13c] sm:%s460]
                  %564 = vst [vmem:[%s468 + $0xbc] sm:%s460] %v563
                  %v565 = vld [vmem:[%s467 + $0x180] sm:%s460]
                  %566 = vst [vmem:[%s468 + $0xc0] sm:%s460] %v565
                  %v567 = vld [vmem:[%s467 + $0x184] sm:%s460]
                  %568 = vst [vmem:[%s468 + $0xc4] sm:%s460] %v567
                  %v569 = vld [vmem:[%s467 + $0x188] sm:%s460]
                  %570 = vst [vmem:[%s468 + $0xc8] sm:%s460] %v569
                  %v571 = vld [vmem:[%s467 + $0x18c] sm:%s460]
                  %572 = vst [vmem:[%s468 + $0xcc] sm:%s460] %v571
                  %v573 = vld [vmem:[%s467 + $0x190] sm:%s460]
                  %574 = vst [vmem:[%s468 + $0xd0] sm:%s460] %v573
                  %v575 = vld [vmem:[%s467 + $0x194] sm:%s460]
                  %576 = vst [vmem:[%s468 + $0xd4] sm:%s460] %v575
                  %v577 = vld [vmem:[%s467 + $0x198] sm:%s460]
                  %578 = vst [vmem:[%s468 + $0xd8] sm:%s460] %v577
                  %v579 = vld [vmem:[%s467 + $0x19c] sm:%s460]
                  %580 = vst [vmem:[%s468 + $0xdc] sm:%s460] %v579
                  %v581 = vld [vmem:[%s467 + $0x1a0] sm:%s460]
                  %582 = vst [vmem:[%s468 + $0xe0] sm:%s460] %v581
                  %v583 = vld [vmem:[%s467 + $0x1a4] sm:%s460]
                  %584 = vst [vmem:[%s468 + $0xe4] sm:%s460] %v583
                  %v585 = vld [vmem:[%s467 + $0x1a8] sm:%s460]
                  %586 = vst [vmem:[%s468 + $0xe8] sm:%s460] %v585
                  %v587 = vld [vmem:[%s467 + $0x1ac] sm:%s460]
                  %588 = vst [vmem:[%s468 + $0xec] sm:%s460] %v587
                  %v589 = vld [vmem:[%s467 + $0x1b0] sm:%s460]
                  %590 = vst [vmem:[%s468 + $0xf0] sm:%s460] %v589
                  %v591 = vld [vmem:[%s467 + $0x1b4] sm:%s460]
                  %592 = vst [vmem:[%s468 + $0xf4] sm:%s460] %v591
                  %v593 = vld [vmem:[%s467 + $0x1b8] sm:%s460]
                  %594 = vst [vmem:[%s468 + $0xf8] sm:%s460] %v593
                  %v595 = vld [vmem:[%s467 + $0x1bc] sm:%s460]
                  %596 = vst [vmem:[%s468 + $0xfc] sm:%s460] %v595
                $region87: #{siamese_forward.1} parent=74 // loop_footer
                  %s466 = sadd.s32 1, %s462
                $region88: #{siamese_forward.1} parent=74 // loop_footer_branch
                  %461 = sbr.rel target = $region84
                $region89: #{siamese_forward.1} parent=74 // loop_exit
                  _
              $region75: #{siamese_forward.1} parent=59 // pred_fallthru
                _
            $region60: #{siamese_forward.1} parent=55 // pred_fallthru
              _
            // Predicated region
            $region61: #{siamese_forward.1} parent=55 // pred_check
              _
            $region62: #{siamese_forward.1} parent=55 // pred_check_branch
              %310 = sbr.rel (0) target = $region64
            $region63: #{siamese_forward.1} parent=55 // pred_region
              %s312 = ssub.s32 16, 1
              loop: start=0, step=1, limit=1
              $region65: #{siamese_forward.1} parent=63 // loop_pre_header
                _
              $region66: #{siamese_forward.1} parent=63 // loop_header
                %s314 = sphi 0, %s318
                %p315 = scmp.ge.s32.totalorder %s314, 1
                %s319 = sphi %s304, %s304
                %s320 = sphi %s298, %s298
              $region67: #{siamese_forward.1} parent=63 // loop_header_branch
                %317 = sbr.rel (%p315) target = $region71
              $region68: #{siamese_forward.1} parent=63 // loop_body
                %v321 = vld [vmem:[%s319] sm:%s312]
                %322 = vst [vmem:[%s320] sm:%s312] %v321
                %v323 = vld [vmem:[%s319 + $0x4] sm:%s312]
                %324 = vst [vmem:[%s320 + $0x4] sm:%s312] %v323
                %v325 = vld [vmem:[%s319 + $0x8] sm:%s312]
                %326 = vst [vmem:[%s320 + $0x8] sm:%s312] %v325
                %v327 = vld [vmem:[%s319 + $0xc] sm:%s312]
                %328 = vst [vmem:[%s320 + $0xc] sm:%s312] %v327
                %v329 = vld [vmem:[%s319 + $0x10] sm:%s312]
                %330 = vst [vmem:[%s320 + $0x10] sm:%s312] %v329
                %v331 = vld [vmem:[%s319 + $0x14] sm:%s312]
                %332 = vst [vmem:[%s320 + $0x14] sm:%s312] %v331
                %v333 = vld [vmem:[%s319 + $0x18] sm:%s312]
                %334 = vst [vmem:[%s320 + $0x18] sm:%s312] %v333
                %v335 = vld [vmem:[%s319 + $0x1c] sm:%s312]
                %336 = vst [vmem:[%s320 + $0x1c] sm:%s312] %v335
                %v337 = vld [vmem:[%s319 + $0x20] sm:%s312]
                %338 = vst [vmem:[%s320 + $0x20] sm:%s312] %v337
                %v339 = vld [vmem:[%s319 + $0x24] sm:%s312]
                %340 = vst [vmem:[%s320 + $0x24] sm:%s312] %v339
                %v341 = vld [vmem:[%s319 + $0x28] sm:%s312]
                %342 = vst [vmem:[%s320 + $0x28] sm:%s312] %v341
                %v343 = vld [vmem:[%s319 + $0x2c] sm:%s312]
                %344 = vst [vmem:[%s320 + $0x2c] sm:%s312] %v343
                %v345 = vld [vmem:[%s319 + $0x30] sm:%s312]
                %346 = vst [vmem:[%s320 + $0x30] sm:%s312] %v345
                %v347 = vld [vmem:[%s319 + $0x34] sm:%s312]
                %348 = vst [vmem:[%s320 + $0x34] sm:%s312] %v347
                %v349 = vld [vmem:[%s319 + $0x38] sm:%s312]
                %350 = vst [vmem:[%s320 + $0x38] sm:%s312] %v349
                %v351 = vld [vmem:[%s319 + $0x3c] sm:%s312]
                %352 = vst [vmem:[%s320 + $0x3c] sm:%s312] %v351
                %v353 = vld [vmem:[%s319 + $0x80] sm:%s312]
                %354 = vst [vmem:[%s320 + $0x40] sm:%s312] %v353
                %v355 = vld [vmem:[%s319 + $0x84] sm:%s312]
                %356 = vst [vmem:[%s320 + $0x44] sm:%s312] %v355
                %v357 = vld [vmem:[%s319 + $0x88] sm:%s312]
                %358 = vst [vmem:[%s320 + $0x48] sm:%s312] %v357
                %v359 = vld [vmem:[%s319 + $0x8c] sm:%s312]
                %360 = vst [vmem:[%s320 + $0x4c] sm:%s312] %v359
                %v361 = vld [vmem:[%s319 + $0x90] sm:%s312]
                %362 = vst [vmem:[%s320 + $0x50] sm:%s312] %v361
                %v363 = vld [vmem:[%s319 + $0x94] sm:%s312]
                %364 = vst [vmem:[%s320 + $0x54] sm:%s312] %v363
                %v365 = vld [vmem:[%s319 + $0x98] sm:%s312]
                %366 = vst [vmem:[%s320 + $0x58] sm:%s312] %v365
                %v367 = vld [vmem:[%s319 + $0x9c] sm:%s312]
                %368 = vst [vmem:[%s320 + $0x5c] sm:%s312] %v367
                %v369 = vld [vmem:[%s319 + $0xa0] sm:%s312]
                %370 = vst [vmem:[%s320 + $0x60] sm:%s312] %v369
                %v371 = vld [vmem:[%s319 + $0xa4] sm:%s312]
                %372 = vst [vmem:[%s320 + $0x64] sm:%s312] %v371
                %v373 = vld [vmem:[%s319 + $0xa8] sm:%s312]
                %374 = vst [vmem:[%s320 + $0x68] sm:%s312] %v373
                %v375 = vld [vmem:[%s319 + $0xac] sm:%s312]
                %376 = vst [vmem:[%s320 + $0x6c] sm:%s312] %v375
                %v377 = vld [vmem:[%s319 + $0xb0] sm:%s312]
                %378 = vst [vmem:[%s320 + $0x70] sm:%s312] %v377
                %v379 = vld [vmem:[%s319 + $0xb4] sm:%s312]
                %380 = vst [vmem:[%s320 + $0x74] sm:%s312] %v379
                %v381 = vld [vmem:[%s319 + $0xb8] sm:%s312]
                %382 = vst [vmem:[%s320 + $0x78] sm:%s312] %v381
                %v383 = vld [vmem:[%s319 + $0xbc] sm:%s312]
                %384 = vst [vmem:[%s320 + $0x7c] sm:%s312] %v383
                %v385 = vld [vmem:[%s319 + $0x100] sm:%s312]
                %386 = vst [vmem:[%s320 + $0x80] sm:%s312] %v385
                %v387 = vld [vmem:[%s319 + $0x104] sm:%s312]
                %388 = vst [vmem:[%s320 + $0x84] sm:%s312] %v387
                %v389 = vld [vmem:[%s319 + $0x108] sm:%s312]
                %390 = vst [vmem:[%s320 + $0x88] sm:%s312] %v389
                %v391 = vld [vmem:[%s319 + $0x10c] sm:%s312]
                %392 = vst [vmem:[%s320 + $0x8c] sm:%s312] %v391
                %v393 = vld [vmem:[%s319 + $0x110] sm:%s312]
                %394 = vst [vmem:[%s320 + $0x90] sm:%s312] %v393
                %v395 = vld [vmem:[%s319 + $0x114] sm:%s312]
                %396 = vst [vmem:[%s320 + $0x94] sm:%s312] %v395
                %v397 = vld [vmem:[%s319 + $0x118] sm:%s312]
                %398 = vst [vmem:[%s320 + $0x98] sm:%s312] %v397
                %v399 = vld [vmem:[%s319 + $0x11c] sm:%s312]
                %400 = vst [vmem:[%s320 + $0x9c] sm:%s312] %v399
                %v401 = vld [vmem:[%s319 + $0x120] sm:%s312]
                %402 = vst [vmem:[%s320 + $0xa0] sm:%s312] %v401
                %v403 = vld [vmem:[%s319 + $0x124] sm:%s312]
                %404 = vst [vmem:[%s320 + $0xa4] sm:%s312] %v403
                %v405 = vld [vmem:[%s319 + $0x128] sm:%s312]
                %406 = vst [vmem:[%s320 + $0xa8] sm:%s312] %v405
                %v407 = vld [vmem:[%s319 + $0x12c] sm:%s312]
                %408 = vst [vmem:[%s320 + $0xac] sm:%s312] %v407
                %v409 = vld [vmem:[%s319 + $0x130] sm:%s312]
                %410 = vst [vmem:[%s320 + $0xb0] sm:%s312] %v409
                %v411 = vld [vmem:[%s319 + $0x134] sm:%s312]
                %412 = vst [vmem:[%s320 + $0xb4] sm:%s312] %v411
                %v413 = vld [vmem:[%s319 + $0x138] sm:%s312]
                %414 = vst [vmem:[%s320 + $0xb8] sm:%s312] %v413
                %v415 = vld [vmem:[%s319 + $0x13c] sm:%s312]
                %416 = vst [vmem:[%s320 + $0xbc] sm:%s312] %v415
                %v417 = vld [vmem:[%s319 + $0x180] sm:%s312]
                %418 = vst [vmem:[%s320 + $0xc0] sm:%s312] %v417
                %v419 = vld [vmem:[%s319 + $0x184] sm:%s312]
                %420 = vst [vmem:[%s320 + $0xc4] sm:%s312] %v419
                %v421 = vld [vmem:[%s319 + $0x188] sm:%s312]
                %422 = vst [vmem:[%s320 + $0xc8] sm:%s312] %v421
                %v423 = vld [vmem:[%s319 + $0x18c] sm:%s312]
                %424 = vst [vmem:[%s320 + $0xcc] sm:%s312] %v423
                %v425 = vld [vmem:[%s319 + $0x190] sm:%s312]
                %426 = vst [vmem:[%s320 + $0xd0] sm:%s312] %v425
                %v427 = vld [vmem:[%s319 + $0x194] sm:%s312]
                %428 = vst [vmem:[%s320 + $0xd4] sm:%s312] %v427
                %v429 = vld [vmem:[%s319 + $0x198] sm:%s312]
                %430 = vst [vmem:[%s320 + $0xd8] sm:%s312] %v429
                %v431 = vld [vmem:[%s319 + $0x19c] sm:%s312]
                %432 = vst [vmem:[%s320 + $0xdc] sm:%s312] %v431
                %v433 = vld [vmem:[%s319 + $0x1a0] sm:%s312]
                %434 = vst [vmem:[%s320 + $0xe0] sm:%s312] %v433
                %v435 = vld [vmem:[%s319 + $0x1a4] sm:%s312]
                %436 = vst [vmem:[%s320 + $0xe4] sm:%s312] %v435
                %v437 = vld [vmem:[%s319 + $0x1a8] sm:%s312]
                %438 = vst [vmem:[%s320 + $0xe8] sm:%s312] %v437
                %v439 = vld [vmem:[%s319 + $0x1ac] sm:%s312]
                %440 = vst [vmem:[%s320 + $0xec] sm:%s312] %v439
                %v441 = vld [vmem:[%s319 + $0x1b0] sm:%s312]
                %442 = vst [vmem:[%s320 + $0xf0] sm:%s312] %v441
                %v443 = vld [vmem:[%s319 + $0x1b4] sm:%s312]
                %444 = vst [vmem:[%s320 + $0xf4] sm:%s312] %v443
                %v445 = vld [vmem:[%s319 + $0x1b8] sm:%s312]
                %446 = vst [vmem:[%s320 + $0xf8] sm:%s312] %v445
                %v447 = vld [vmem:[%s319 + $0x1bc] sm:%s312]
                %448 = vst [vmem:[%s320 + $0xfc] sm:%s312] %v447
              $region69: #{siamese_forward.1} parent=63 // loop_footer
                %s318 = sadd.s32 1, %s314
              $region70: #{siamese_forward.1} parent=63 // loop_footer_branch
                %313 = sbr.rel target = $region66
              $region71: #{siamese_forward.1} parent=63 // loop_exit
                _
            $region64: #{siamese_forward.1} parent=55 // pred_fallthru
              _
          $region56: #{siamese_forward.1} parent=51 // pred_fallthru
            _
          %597 = vnop
        $region52: #{siamese_forward.1} parent=47 // pred_fallthru
          _
      $region48: #{siamese_forward.1} parent=5 // pred_fallthru
        _
      %p598 = scmp.le.s32.totalorder 1, %s15
      %p599 = scmp.lt.s32.totalorder %s15, 3
      %p600 = pnand %p598, %p599
      %p601 = pneg %p600
      // Predicated region
      $region90: #{siamese_forward.1} parent=5 // pred_check
        _
      $region91: #{siamese_forward.1} parent=5 // pred_check_branch
        %603 = sbr.rel (%p600) target = $region93
      $region92: #{siamese_forward.1} parent=5 // pred_region
        %s604 = ssub.s32 %s15, 1
        %s605 = sand.u32 %s42, 1
        %s606 = sand.u32 %s42, 1
        %s607 = smul.addr %s606, 256
        %s608 = scalar_lea.vmem [#allocation3], %s607
        // Predicated region
        $region94: #{siamese_forward.1} parent=92 // pred_check
          %p609 = pneg %p55
        $region95: #{siamese_forward.1} parent=92 // pred_check_branch
          %611 = sbr.rel (%p609) target = $region97
        $region96: #{siamese_forward.1} parent=92 // pred_region
          _
        $region97: #{siamese_forward.1} parent=92 // pred_fallthru
          _
        %s612 = sand.u32 %s42, 1
        %s613 = sand.u32 %s42, 1
        %s614 = smul.addr %s613, 256
        %s615 = scalar_lea.vmem [#allocation3], %s614
        %p616 = pneg %p55
        %p617 = pneg %p52
        %p618 = pneg %p76
        %p619 = pneg %p73
        %p620 = pneg %p97
        %p621 = pneg %p94
        %p622 = pneg %p118
        %p623 = pneg %p115
        %p624 = pneg %p139
        %p625 = pneg %p136
        %p626 = pneg %p160
        %p627 = pneg %p157
        %p628 = pneg %p181
        %p629 = pneg %p178
        %p630 = pneg %p202
        %p631 = pneg %p199
        %p632 = pneg %p223
        %p633 = pneg %p220
        %p634 = pneg %p249
        %p635 = pneg %p246
        %p636 = scmp.lt.s32.totalorder %s24, 0
        %s637 = scalar_select %p636, %s24, 0
        %s638 = smul.addr %s637, 4
        %s639 = scalar_lea.vmem %s9, %s638
        %s640 = smul.u32 4, %s24
        %s641 = smul.u32 16, %s25
        %p642 = scmp.lt.s32.totalorder %s24, 0
        %s643 = scalar_select %p642, %s24, 0
        %s644 = smul.addr %s643, 4
        %s645 = scalar_lea.vmem %s9, %s644
        %p647 = scmp.eq.s32.totalorder %s25, 0
        // Predicated region
        $region98: #{siamese_forward.1} parent=92 // pred_check
          %p648 = pneg %p647
        $region99: #{siamese_forward.1} parent=92 // pred_check_branch
          %650 = sbr.rel (%p648) target = $region101
        $region100: #{siamese_forward.1} parent=92 // pred_region
          %651 = vst [vmem:[#allocation2] sm:$0xff] 0.0
          %652 = vst [vmem:[#allocation2 + $0x8] sm:$0xff] 0.0
          %653 = vst [vmem:[#allocation2 + $0x10] sm:$0xff] 0.0
          %654 = vst [vmem:[#allocation2 + $0x18] sm:$0xff] 0.0
        $region101: #{siamese_forward.1} parent=92 // pred_fallthru
          _
        %v655 = vld [vmem:[%s608] sm:$0xf]
        %v656 = vld [vmem:[%s608 + $0x4] sm:$0xf]
        %v657 = vld [vmem:[%s608 + $0x8] sm:$0xf]
        %v658 = vld [vmem:[%s608 + $0xc] sm:$0xf]
        %v659 = vld [vmem:[%s608 + $0x10] sm:$0xf]
        %v660 = vld [vmem:[%s608 + $0x14] sm:$0xf]
        %v661 = vld [vmem:[%s608 + $0x18] sm:$0xf]
        %v662 = vld [vmem:[%s608 + $0x1c] sm:$0xf]
        %v663 = vld [vmem:[%s608 + $0x20] sm:$0xf]
        %v664 = vld [vmem:[%s608 + $0x24] sm:$0xf]
        %v665 = vld [vmem:[%s608 + $0x28] sm:$0xf]
        %v666 = vld [vmem:[%s608 + $0x2c] sm:$0xf]
        %v667 = vld [vmem:[%s608 + $0x30] sm:$0xf]
        %v668 = vld [vmem:[%s608 + $0x34] sm:$0xf]
        %v669 = vld [vmem:[%s608 + $0x38] sm:$0xf]
        %v670 = vld [vmem:[%s608 + $0x3c] sm:$0xf]
        %v671 = vld [vmem:[%s608 + $0x40] sm:$0xf]
        %v672 = vld [vmem:[%s608 + $0x44] sm:$0xf]
        %v673 = vld [vmem:[%s608 + $0x48] sm:$0xf]
        %v674 = vld [vmem:[%s608 + $0x4c] sm:$0xf]
        %v675 = vld [vmem:[%s608 + $0x50] sm:$0xf]
        %v676 = vld [vmem:[%s608 + $0x54] sm:$0xf]
        %v677 = vld [vmem:[%s608 + $0x58] sm:$0xf]
        %v678 = vld [vmem:[%s608 + $0x5c] sm:$0xf]
        %v679 = vld [vmem:[%s608 + $0x60] sm:$0xf]
        %v680 = vld [vmem:[%s608 + $0x64] sm:$0xf]
        %v681 = vld [vmem:[%s608 + $0x68] sm:$0xf]
        %v682 = vld [vmem:[%s608 + $0x6c] sm:$0xf]
        %v683 = vld [vmem:[%s608 + $0x70] sm:$0xf]
        %v684 = vld [vmem:[%s608 + $0x74] sm:$0xf]
        %v685 = vld [vmem:[%s608 + $0x78] sm:$0xf]
        %v686 = vld [vmem:[%s608 + $0x7c] sm:$0xf]
        %v687 = vld [vmem:[%s608 + $0x80] sm:$0xf]
        %v688 = vld [vmem:[%s608 + $0x84] sm:$0xf]
        %v689 = vld [vmem:[%s608 + $0x88] sm:$0xf]
        %v690 = vld [vmem:[%s608 + $0x8c] sm:$0xf]
        %v691 = vld [vmem:[%s608 + $0x90] sm:$0xf]
        %v692 = vld [vmem:[%s608 + $0x94] sm:$0xf]
        %v693 = vld [vmem:[%s608 + $0x98] sm:$0xf]
        %v694 = vld [vmem:[%s608 + $0x9c] sm:$0xf]
        %v695 = vld [vmem:[%s608 + $0xa0] sm:$0xf]
        %v696 = vld [vmem:[%s608 + $0xa4] sm:$0xf]
        %v697 = vld [vmem:[%s608 + $0xa8] sm:$0xf]
        %v698 = vld [vmem:[%s608 + $0xac] sm:$0xf]
        %v699 = vld [vmem:[%s608 + $0xb0] sm:$0xf]
        %v700 = vld [vmem:[%s608 + $0xb4] sm:$0xf]
        %v701 = vld [vmem:[%s608 + $0xb8] sm:$0xf]
        %v702 = vld [vmem:[%s608 + $0xbc] sm:$0xf]
        %v703 = vld [vmem:[%s608 + $0xc0] sm:$0xf]
        %v704 = vld [vmem:[%s608 + $0xc4] sm:$0xf]
        %v705 = vld [vmem:[%s608 + $0xc8] sm:$0xf]
        %v706 = vld [vmem:[%s608 + $0xcc] sm:$0xf]
        %v707 = vld [vmem:[%s608 + $0xd0] sm:$0xf]
        %v708 = vld [vmem:[%s608 + $0xd4] sm:$0xf]
        %v709 = vld [vmem:[%s608 + $0xd8] sm:$0xf]
        %v710 = vld [vmem:[%s608 + $0xdc] sm:$0xf]
        %v711 = vld [vmem:[%s608 + $0xe0] sm:$0xf]
        %v712 = vld [vmem:[%s608 + $0xe4] sm:$0xf]
        %v713 = vld [vmem:[%s608 + $0xe8] sm:$0xf]
        %v714 = vld [vmem:[%s608 + $0xec] sm:$0xf]
        %v715 = vld [vmem:[%s608 + $0xf0] sm:$0xf]
        %v716 = vld [vmem:[%s608 + $0xf4] sm:$0xf]
        %v717 = vld [vmem:[%s608 + $0xf8] sm:$0xf]
        %v718 = vld [vmem:[%s608 + $0xfc] sm:$0xf]
        %v719 = vld [vmem:[%s1] sm:$0xff]
        %v720 = vld [vmem:[%s1 + $0x8] sm:$0xff]
        %v721 = vld [vmem:[%s2] sm:$0xff]
        %v723 = vlaneseq
        %v724 = vshrl.u32 %v723, 7
        %v725 = vsub.s32 0, %v724
        %v726 = vrot.slane %v721, %v725
        %v727 = vlaneseq
        %v728 = vshrl.u32 %v727, 7
        %v729 = vsub.s32 1, %v728
        %v730 = vrot.slane %v721, %v729
        %v731 = vlaneseq
        %v732 = vshrl.u32 %v731, 7
        %v733 = vsub.s32 2, %v732
        %v734 = vrot.slane %v721, %v733
        %v735 = vlaneseq
        %v736 = vshrl.u32 %v735, 7
        %v737 = vsub.s32 3, %v736
        %v738 = vrot.slane %v721, %v737
        %v739 = vlaneseq
        %v740 = vshrl.u32 %v739, 7
        %v741 = vsub.s32 4, %v740
        %v742 = vrot.slane %v721, %v741
        %v743 = vlaneseq
        %v744 = vshrl.u32 %v743, 7
        %v745 = vsub.s32 5, %v744
        %v746 = vrot.slane %v721, %v745
        %v747 = vlaneseq
        %v748 = vshrl.u32 %v747, 7
        %v749 = vsub.s32 6, %v748
        %v750 = vrot.slane %v721, %v749
        %v751 = vlaneseq
        %v752 = vshrl.u32 %v751, 7
        %v753 = vsub.s32 7, %v752
        %v754 = vrot.slane %v721, %v753
        %v827 = vunpack.c.l.b16 %v655
        %v828 = vunpack.c.l.b16 %v656
        %v829 = vunpack.c.l.b16 %v657
        %v830 = vunpack.c.l.b16 %v658
        %v831 = vunpack.c.l.b16 %v659
        %v832 = vunpack.c.l.b16 %v660
        %v833 = vunpack.c.l.b16 %v661
        %v834 = vunpack.c.l.b16 %v662
        %v835 = vunpack.c.l.b16 %v663
        %v836 = vunpack.c.l.b16 %v664
        %v837 = vunpack.c.l.b16 %v665
        %v838 = vunpack.c.l.b16 %v666
        %v839 = vunpack.c.l.b16 %v667
        %v840 = vunpack.c.l.b16 %v668
        %v841 = vunpack.c.l.b16 %v669
        %v842 = vunpack.c.l.b16 %v670
        %v843 = vunpack.c.l.b16 %v671
        %v844 = vunpack.c.l.b16 %v672
        %v845 = vunpack.c.l.b16 %v673
        %v846 = vunpack.c.l.b16 %v674
        %v847 = vunpack.c.l.b16 %v675
        %v848 = vunpack.c.l.b16 %v676
        %v849 = vunpack.c.l.b16 %v677
        %v850 = vunpack.c.l.b16 %v678
        %v851 = vunpack.c.l.b16 %v679
        %v852 = vunpack.c.l.b16 %v680
        %v853 = vunpack.c.l.b16 %v681
        %v854 = vunpack.c.l.b16 %v682
        %v855 = vunpack.c.l.b16 %v683
        %v856 = vunpack.c.l.b16 %v684
        %v857 = vunpack.c.l.b16 %v685
        %v858 = vunpack.c.l.b16 %v686
        %v859 = vunpack.c.l.b16 %v687
        %v860 = vunpack.c.l.b16 %v688
        %v861 = vunpack.c.l.b16 %v689
        %v862 = vunpack.c.l.b16 %v690
        %v863 = vunpack.c.l.b16 %v691
        %v864 = vunpack.c.l.b16 %v692
        %v865 = vunpack.c.l.b16 %v693
        %v866 = vunpack.c.l.b16 %v694
        %v867 = vunpack.c.l.b16 %v695
        %v868 = vunpack.c.l.b16 %v696
        %v869 = vunpack.c.l.b16 %v697
        %v870 = vunpack.c.l.b16 %v698
        %v871 = vunpack.c.l.b16 %v699
        %v872 = vunpack.c.l.b16 %v700
        %v873 = vunpack.c.l.b16 %v701
        %v874 = vunpack.c.l.b16 %v702
        %v875 = vunpack.c.l.b16 %v703
        %v876 = vunpack.c.l.b16 %v704
        %v877 = vunpack.c.l.b16 %v705
        %v878 = vunpack.c.l.b16 %v706
        %v879 = vunpack.c.l.b16 %v707
        %v880 = vunpack.c.l.b16 %v708
        %v881 = vunpack.c.l.b16 %v709
        %v882 = vunpack.c.l.b16 %v710
        %v883 = vunpack.c.l.b16 %v711
        %v884 = vunpack.c.l.b16 %v712
        %v885 = vunpack.c.l.b16 %v713
        %v886 = vunpack.c.l.b16 %v714
        %v887 = vunpack.c.l.b16 %v715
        %v888 = vunpack.c.l.b16 %v716
        %v889 = vunpack.c.l.b16 %v717
        %v890 = vunpack.c.l.b16 %v718
        %v891 = vpack.c.b16 %v828, %v827
        %v892 = vpack.c.b16 %v830, %v829
        %v893 = vpack.c.b16 %v832, %v831
        %v894 = vpack.c.b16 %v834, %v833
        %v895 = vpack.c.b16 %v836, %v835
        %v896 = vpack.c.b16 %v838, %v837
        %v897 = vpack.c.b16 %v840, %v839
        %v898 = vpack.c.b16 %v842, %v841
        %v899 = vpack.c.b16 %v844, %v843
        %v900 = vpack.c.b16 %v846, %v845
        %v901 = vpack.c.b16 %v848, %v847
        %v902 = vpack.c.b16 %v850, %v849
        %v903 = vpack.c.b16 %v852, %v851
        %v904 = vpack.c.b16 %v854, %v853
        %v905 = vpack.c.b16 %v856, %v855
        %v906 = vpack.c.b16 %v858, %v857
        %v907 = vpack.c.b16 %v860, %v859
        %v908 = vpack.c.b16 %v862, %v861
        %v909 = vpack.c.b16 %v864, %v863
        %v910 = vpack.c.b16 %v866, %v865
        %v911 = vpack.c.b16 %v868, %v867
        %v912 = vpack.c.b16 %v870, %v869
        %v913 = vpack.c.b16 %v872, %v871
        %v914 = vpack.c.b16 %v874, %v873
        %v915 = vpack.c.b16 %v876, %v875
        %v916 = vpack.c.b16 %v878, %v877
        %v917 = vpack.c.b16 %v880, %v879
        %v918 = vpack.c.b16 %v882, %v881
        %v919 = vpack.c.b16 %v884, %v883
        %v920 = vpack.c.b16 %v886, %v885
        %v921 = vpack.c.b16 %v888, %v887
        %v922 = vpack.c.b16 %v890, %v889
        %v925 = vcombine.high %v719, %v719
        %v927 = vunpack.c.l.s4 1983009808
        %v928 = vunpack.c.0.s8 %v927
        %v929 = vlaneseq
        %v930 = vshrl.u32 %v929, 7
        %v931 = vsub.s32 %v928, %v930
        %v932 = vrot.slane %v719, %v931
        %v934 = vunpack.c.l.s4 1983009808
        %v935 = vunpack.c.0.s8 %v934
        %v936 = vlaneseq
        %v937 = vshrl.u32 %v936, 7
        %v938 = vsub.s32 %v935, %v937
        %v939 = vrot.slane %v925, %v938
        %v940 = vcombine.high %v932, %v932
        %v941 = vcombine.high %v939, %v939
        %v942 = vcombine.high %v720, %v720
        %v944 = vunpack.c.l.s4 1983009808
        %v945 = vunpack.c.0.s8 %v944
        %v946 = vlaneseq
        %v947 = vshrl.u32 %v946, 7
        %v948 = vsub.s32 %v945, %v947
        %v949 = vrot.slane %v720, %v948
        %v951 = vunpack.c.l.s4 1983009808
        %v952 = vunpack.c.0.s8 %v951
        %v953 = vlaneseq
        %v954 = vshrl.u32 %v953, 7
        %v955 = vsub.s32 %v952, %v954
        %v956 = vrot.slane %v942, %v955
        %v957 = vcombine.high %v949, %v949
        %v958 = vcombine.high %v956, %v956
        %vm959 = vcmask 31744
        %v961 = vsel %vm959, %v891, 0
        %v964 = vsel %vm959, %v892, 0
        %v967 = vsel %vm959, %v893, 0
        %v970 = vsel %vm959, %v894, 0
        %v973 = vsel %vm959, %v895, 0
        %v976 = vsel %vm959, %v896, 0
        %v979 = vsel %vm959, %v897, 0
        %v982 = vsel %vm959, %v898, 0
        %v985 = vsel %vm959, %v899, 0
        %v988 = vsel %vm959, %v900, 0
        %v991 = vsel %vm959, %v901, 0
        %v994 = vsel %vm959, %v902, 0
        %v997 = vsel %vm959, %v903, 0
        %v1000 = vsel %vm959, %v904, 0
        %v1003 = vsel %vm959, %v905, 0
        %v1006 = vsel %vm959, %v906, 0
        %v1009 = vsel %vm959, %v907, 0
        %v1012 = vsel %vm959, %v908, 0
        %v1015 = vsel %vm959, %v909, 0
        %v1018 = vsel %vm959, %v910, 0
        %v1021 = vsel %vm959, %v911, 0
        %v1024 = vsel %vm959, %v912, 0
        %v1027 = vsel %vm959, %v913, 0
        %v1030 = vsel %vm959, %v914, 0
        %v1033 = vsel %vm959, %v915, 0
        %v1036 = vsel %vm959, %v916, 0
        %v1039 = vsel %vm959, %v917, 0
        %v1042 = vsel %vm959, %v918, 0
        %v1045 = vsel %vm959, %v919, 0
        %v1048 = vsel %vm959, %v920, 0
        %v1051 = vsel %vm959, %v921, 0
        %v1054 = vsel %vm959, %v922, 0
        %vm1056 = vcmask 1041408
        %v1058 = vsel %vm1056, %v932, 0
        %v1061 = vsel %vm1056, %v940, 0
        %v1064 = vsel %vm1056, %v939, 0
        %v1067 = vsel %vm1056, %v941, 0
        %v1070 = vsel %vm1056, %v949, 0
        %v1073 = vsel %vm1056, %v957, 0
        %v1076 = vsel %vm1056, %v956, 0
        %v1079 = vsel %vm1056, %v958, 0
        %1081 = vmatprep.subr.bf16.mxu0 0
        %1082 = vmatpush1.bf16.msra.mxu0 0
        %1083 = vmatprep.subr.bf16.mxu0 0
        %1084 = vmatpush1.bf16.msra.mxu0 0
        %1085 = vmatprep.subr.bf16.mxu0 0
        %1086 = vmatpush1.bf16.msra.mxu0 0
        %1087 = vmatprep.subr.bf16.mxu0 0
        %1088 = vmatpush1.bf16.msra.mxu0 0
        %1089 = vmatprep.subr.bf16.mxu0 0
        %1090 = vmatpush1.bf16.msra.mxu0 0
        %1091 = vmatprep.subr.bf16.mxu0 0
        %1092 = vmatpush1.bf16.msra.mxu0 0
        %1093 = vmatprep.subr.bf16.mxu0 0
        %1094 = vmatpush1.bf16.msra.mxu0 0
        %1095 = vmatprep.subr.bf16.mxu0 %v1061
        %1096 = vmatpush1.bf16.msra.mxu0 %v1058
        %1097 = vmatprep.subr.bf16.mxu0 0
        %1098 = vmatpush2.bf16.msra.mxu0 0
        %1099 = vmatprep.subr.bf16.mxu0 0
        %1100 = vmatpush2.bf16.msra.mxu0 0
        %1101 = vmatprep.subr.bf16.mxu0 0
        %1102 = vmatpush2.bf16.msra.mxu0 0
        %1103 = vmatprep.subr.bf16.mxu0 0
        %1104 = vmatpush2.bf16.msra.mxu0 0
        %1105 = vmatprep.subr.bf16.mxu0 0
        %1106 = vmatpush2.bf16.msra.mxu0 0
        %1107 = vmatprep.subr.bf16.mxu0 0
        %1108 = vmatpush2.bf16.msra.mxu0 0
        %1109 = vmatprep.subr.bf16.mxu0 0
        %1110 = vmatpush2.bf16.msra.mxu0 0
        %1111 = vmatprep.subr.bf16.mxu0 0
        %1112 = vmatpush2.bf16.msra.mxu0 0
        %1113 = vmatprep.mubr.bf16.mxu0 0
        %1114 = vmatmul.mubr.bf16.gmra.mxu0 %v961
        %v1115 = vpop.f32.mrf.mxu0
        %v1116 = vadd.f32 %v726, %v1115
        %v1117 = vpop.f32.mrf.mxu0
        %v1118 = vadd.f32 %v730, %v1117
        %v1119 = vpop.f32.mrf.mxu0
        %v1120 = vadd.f32 %v726, %v1119
        %v1121 = vpop.f32.mrf.mxu0
        %v1122 = vadd.f32 %v730, %v1121
        %1123 = vmatprep.mubr.bf16.mxu0 0
        %1124 = vmatmul.mubr.bf16.gmra.mxu0 %v964
        %v1125 = vpop.f32.mrf.mxu0
        %v1126 = vadd.f32 %v726, %v1125
        %v1127 = vpop.f32.mrf.mxu0
        %v1128 = vadd.f32 %v730, %v1127
        %v1129 = vpop.f32.mrf.mxu0
        %v1130 = vadd.f32 %v726, %v1129
        %v1131 = vpop.f32.mrf.mxu0
        %v1132 = vadd.f32 %v730, %v1131
        %1133 = vmatprep.mubr.bf16.mxu0 0
        %1134 = vmatmul.mubr.bf16.gmra.mxu0 %v967
        %v1135 = vpop.f32.mrf.mxu0
        %v1136 = vadd.f32 %v726, %v1135
        %v1137 = vpop.f32.mrf.mxu0
        %v1138 = vadd.f32 %v730, %v1137
        %v1139 = vpop.f32.mrf.mxu0
        %v1140 = vadd.f32 %v726, %v1139
        %v1141 = vpop.f32.mrf.mxu0
        %v1142 = vadd.f32 %v730, %v1141
        %1143 = vmatprep.mubr.bf16.mxu0 0
        %1144 = vmatmul.mubr.bf16.gmra.mxu0 %v970
        %v1145 = vpop.f32.mrf.mxu0
        %v1146 = vadd.f32 %v726, %v1145
        %v1147 = vpop.f32.mrf.mxu0
        %v1148 = vadd.f32 %v730, %v1147
        %v1149 = vpop.f32.mrf.mxu0
        %v1150 = vadd.f32 %v726, %v1149
        %v1151 = vpop.f32.mrf.mxu0
        %v1152 = vadd.f32 %v730, %v1151
        %1153 = vmatprep.mubr.bf16.mxu0 0
        %1154 = vmatmul.mubr.bf16.gmra.mxu0 %v973
        %v1155 = vpop.f32.mrf.mxu0
        %v1156 = vadd.f32 %v726, %v1155
        %v1157 = vpop.f32.mrf.mxu0
        %v1158 = vadd.f32 %v730, %v1157
        %v1159 = vpop.f32.mrf.mxu0
        %v1160 = vadd.f32 %v726, %v1159
        %v1161 = vpop.f32.mrf.mxu0
        %v1162 = vadd.f32 %v730, %v1161
        %1163 = vmatprep.mubr.bf16.mxu0 0
        %1164 = vmatmul.mubr.bf16.gmra.mxu0 %v976
        %v1165 = vpop.f32.mrf.mxu0
        %v1166 = vadd.f32 %v726, %v1165
        %v1167 = vpop.f32.mrf.mxu0
        %v1168 = vadd.f32 %v730, %v1167
        %v1169 = vpop.f32.mrf.mxu0
        %v1170 = vadd.f32 %v726, %v1169
        %v1171 = vpop.f32.mrf.mxu0
        %v1172 = vadd.f32 %v730, %v1171
        %1173 = vmatprep.mubr.bf16.mxu0 0
        %1174 = vmatmul.mubr.bf16.gmra.mxu0 %v979
        %v1175 = vpop.f32.mrf.mxu0
        %v1176 = vadd.f32 %v726, %v1175
        %v1177 = vpop.f32.mrf.mxu0
        %v1178 = vadd.f32 %v730, %v1177
        %v1179 = vpop.f32.mrf.mxu0
        %v1180 = vadd.f32 %v726, %v1179
        %v1181 = vpop.f32.mrf.mxu0
        %v1182 = vadd.f32 %v730, %v1181
        %1183 = vmatprep.mubr.bf16.mxu0 0
        %1184 = vmatmul.mubr.bf16.gmra.mxu0 %v982
        %v1185 = vpop.f32.mrf.mxu0
        %v1186 = vadd.f32 %v726, %v1185
        %v1187 = vpop.f32.mrf.mxu0
        %v1188 = vadd.f32 %v730, %v1187
        %v1189 = vpop.f32.mrf.mxu0
        %v1190 = vadd.f32 %v726, %v1189
        %v1191 = vpop.f32.mrf.mxu0
        %v1192 = vadd.f32 %v730, %v1191
        %1193 = vmatprep.mubr.bf16.mxu0 0
        %1194 = vmatmul.mubr.bf16.gmra.mxu0 %v985
        %v1195 = vpop.f32.mrf.mxu0
        %v1196 = vadd.f32 %v726, %v1195
        %v1197 = vpop.f32.mrf.mxu0
        %v1198 = vadd.f32 %v730, %v1197
        %v1199 = vpop.f32.mrf.mxu0
        %v1200 = vadd.f32 %v726, %v1199
        %v1201 = vpop.f32.mrf.mxu0
        %v1202 = vadd.f32 %v730, %v1201
        %1203 = vmatprep.mubr.bf16.mxu0 0
        %1204 = vmatmul.mubr.bf16.gmra.mxu0 %v988
        %v1205 = vpop.f32.mrf.mxu0
        %v1206 = vadd.f32 %v726, %v1205
        %v1207 = vpop.f32.mrf.mxu0
        %v1208 = vadd.f32 %v730, %v1207
        %v1209 = vpop.f32.mrf.mxu0
        %v1210 = vadd.f32 %v726, %v1209
        %v1211 = vpop.f32.mrf.mxu0
        %v1212 = vadd.f32 %v730, %v1211
        %1213 = vmatprep.mubr.bf16.mxu0 0
        %1214 = vmatmul.mubr.bf16.gmra.mxu0 %v991
        %v1215 = vpop.f32.mrf.mxu0
        %v1216 = vadd.f32 %v726, %v1215
        %v1217 = vpop.f32.mrf.mxu0
        %v1218 = vadd.f32 %v730, %v1217
        %v1219 = vpop.f32.mrf.mxu0
        %v1220 = vadd.f32 %v726, %v1219
        %v1221 = vpop.f32.mrf.mxu0
        %v1222 = vadd.f32 %v730, %v1221
        %1223 = vmatprep.mubr.bf16.mxu0 0
        %1224 = vmatmul.mubr.bf16.gmra.mxu0 %v994
        %v1225 = vpop.f32.mrf.mxu0
        %v1226 = vadd.f32 %v726, %v1225
        %v1227 = vpop.f32.mrf.mxu0
        %v1228 = vadd.f32 %v730, %v1227
        %v1229 = vpop.f32.mrf.mxu0
        %v1230 = vadd.f32 %v726, %v1229
        %v1231 = vpop.f32.mrf.mxu0
        %v1232 = vadd.f32 %v730, %v1231
        %1233 = vmatprep.mubr.bf16.mxu0 0
        %1234 = vmatmul.mubr.bf16.gmra.mxu0 %v997
        %v1235 = vpop.f32.mrf.mxu0
        %v1236 = vadd.f32 %v726, %v1235
        %v1237 = vpop.f32.mrf.mxu0
        %v1238 = vadd.f32 %v730, %v1237
        %v1239 = vpop.f32.mrf.mxu0
        %v1240 = vadd.f32 %v726, %v1239
        %v1241 = vpop.f32.mrf.mxu0
        %v1242 = vadd.f32 %v730, %v1241
        %1243 = vmatprep.mubr.bf16.mxu0 0
        %1244 = vmatmul.mubr.bf16.gmra.mxu0 %v1000
        %v1245 = vpop.f32.mrf.mxu0
        %v1246 = vadd.f32 %v726, %v1245
        %v1247 = vpop.f32.mrf.mxu0
        %v1248 = vadd.f32 %v730, %v1247
        %v1249 = vpop.f32.mrf.mxu0
        %v1250 = vadd.f32 %v726, %v1249
        %v1251 = vpop.f32.mrf.mxu0
        %v1252 = vadd.f32 %v730, %v1251
        %1253 = vmatprep.mubr.bf16.mxu0 0
        %1254 = vmatmul.mubr.bf16.gmra.mxu0 %v1003
        %v1255 = vpop.f32.mrf.mxu0
        %v1256 = vadd.f32 %v726, %v1255
        %v1257 = vpop.f32.mrf.mxu0
        %v1258 = vadd.f32 %v730, %v1257
        %v1259 = vpop.f32.mrf.mxu0
        %v1260 = vadd.f32 %v726, %v1259
        %v1261 = vpop.f32.mrf.mxu0
        %v1262 = vadd.f32 %v730, %v1261
        %1263 = vmatprep.mubr.bf16.mxu0 0
        %1264 = vmatmul.mubr.bf16.gmra.mxu0 %v1006
        %v1265 = vpop.f32.mrf.mxu0
        %v1266 = vadd.f32 %v726, %v1265
        %v1267 = vpop.f32.mrf.mxu0
        %v1268 = vadd.f32 %v730, %v1267
        %v1269 = vpop.f32.mrf.mxu0
        %v1270 = vadd.f32 %v726, %v1269
        %v1271 = vpop.f32.mrf.mxu0
        %v1272 = vadd.f32 %v730, %v1271
        %1273 = vmatprep.mubr.bf16.mxu0 0
        %1274 = vmatmul.mubr.bf16.gmra.mxu0 %v1009
        %v1275 = vpop.f32.mrf.mxu0
        %v1276 = vadd.f32 %v726, %v1275
        %v1277 = vpop.f32.mrf.mxu0
        %v1278 = vadd.f32 %v730, %v1277
        %v1279 = vpop.f32.mrf.mxu0
        %v1280 = vadd.f32 %v726, %v1279
        %v1281 = vpop.f32.mrf.mxu0
        %v1282 = vadd.f32 %v730, %v1281
        %1283 = vmatprep.mubr.bf16.mxu0 0
        %1284 = vmatmul.mubr.bf16.gmra.mxu0 %v1012
        %v1285 = vpop.f32.mrf.mxu0
        %v1286 = vadd.f32 %v726, %v1285
        %v1287 = vpop.f32.mrf.mxu0
        %v1288 = vadd.f32 %v730, %v1287
        %v1289 = vpop.f32.mrf.mxu0
        %v1290 = vadd.f32 %v726, %v1289
        %v1291 = vpop.f32.mrf.mxu0
        %v1292 = vadd.f32 %v730, %v1291
        %1293 = vmatprep.mubr.bf16.mxu0 0
        %1294 = vmatmul.mubr.bf16.gmra.mxu0 %v1015
        %v1295 = vpop.f32.mrf.mxu0
        %v1296 = vadd.f32 %v726, %v1295
        %v1297 = vpop.f32.mrf.mxu0
        %v1298 = vadd.f32 %v730, %v1297
        %v1299 = vpop.f32.mrf.mxu0
        %v1300 = vadd.f32 %v726, %v1299
        %v1301 = vpop.f32.mrf.mxu0
        %v1302 = vadd.f32 %v730, %v1301
        %1303 = vmatprep.mubr.bf16.mxu0 0
        %1304 = vmatmul.mubr.bf16.gmra.mxu0 %v1018
        %v1305 = vpop.f32.mrf.mxu0
        %v1306 = vadd.f32 %v726, %v1305
        %v1307 = vpop.f32.mrf.mxu0
        %v1308 = vadd.f32 %v730, %v1307
        %v1309 = vpop.f32.mrf.mxu0
        %v1310 = vadd.f32 %v726, %v1309
        %v1311 = vpop.f32.mrf.mxu0
        %v1312 = vadd.f32 %v730, %v1311
        %1313 = vmatprep.mubr.bf16.mxu0 0
        %1314 = vmatmul.mubr.bf16.gmra.mxu0 %v1021
        %v1315 = vpop.f32.mrf.mxu0
        %v1316 = vadd.f32 %v726, %v1315
        %v1317 = vpop.f32.mrf.mxu0
        %v1318 = vadd.f32 %v730, %v1317
        %v1319 = vpop.f32.mrf.mxu0
        %v1320 = vadd.f32 %v726, %v1319
        %v1321 = vpop.f32.mrf.mxu0
        %v1322 = vadd.f32 %v730, %v1321
        %1323 = vmatprep.mubr.bf16.mxu0 0
        %1324 = vmatmul.mubr.bf16.gmra.mxu0 %v1024
        %v1325 = vpop.f32.mrf.mxu0
        %v1326 = vadd.f32 %v726, %v1325
        %v1327 = vpop.f32.mrf.mxu0
        %v1328 = vadd.f32 %v730, %v1327
        %v1329 = vpop.f32.mrf.mxu0
        %v1330 = vadd.f32 %v726, %v1329
        %v1331 = vpop.f32.mrf.mxu0
        %v1332 = vadd.f32 %v730, %v1331
        %1333 = vmatprep.mubr.bf16.mxu0 0
        %1334 = vmatmul.mubr.bf16.gmra.mxu0 %v1027
        %v1335 = vpop.f32.mrf.mxu0
        %v1336 = vadd.f32 %v726, %v1335
        %v1337 = vpop.f32.mrf.mxu0
        %v1338 = vadd.f32 %v730, %v1337
        %v1339 = vpop.f32.mrf.mxu0
        %v1340 = vadd.f32 %v726, %v1339
        %v1341 = vpop.f32.mrf.mxu0
        %v1342 = vadd.f32 %v730, %v1341
        %1343 = vmatprep.mubr.bf16.mxu0 0
        %1344 = vmatmul.mubr.bf16.gmra.mxu0 %v1030
        %v1345 = vpop.f32.mrf.mxu0
        %v1346 = vadd.f32 %v726, %v1345
        %v1347 = vpop.f32.mrf.mxu0
        %v1348 = vadd.f32 %v730, %v1347
        %v1349 = vpop.f32.mrf.mxu0
        %v1350 = vadd.f32 %v726, %v1349
        %v1351 = vpop.f32.mrf.mxu0
        %v1352 = vadd.f32 %v730, %v1351
        %1353 = vmatprep.mubr.bf16.mxu0 0
        %1354 = vmatmul.mubr.bf16.gmra.mxu0 %v1033
        %v1355 = vpop.f32.mrf.mxu0
        %v1356 = vadd.f32 %v726, %v1355
        %v1357 = vpop.f32.mrf.mxu0
        %v1358 = vadd.f32 %v730, %v1357
        %v1359 = vpop.f32.mrf.mxu0
        %v1360 = vadd.f32 %v726, %v1359
        %v1361 = vpop.f32.mrf.mxu0
        %v1362 = vadd.f32 %v730, %v1361
        %1363 = vmatprep.mubr.bf16.mxu0 0
        %1364 = vmatmul.mubr.bf16.gmra.mxu0 %v1036
        %v1365 = vpop.f32.mrf.mxu0
        %v1366 = vadd.f32 %v726, %v1365
        %v1367 = vpop.f32.mrf.mxu0
        %v1368 = vadd.f32 %v730, %v1367
        %v1369 = vpop.f32.mrf.mxu0
        %v1370 = vadd.f32 %v726, %v1369
        %v1371 = vpop.f32.mrf.mxu0
        %v1372 = vadd.f32 %v730, %v1371
        %1373 = vmatprep.mubr.bf16.mxu0 0
        %1374 = vmatmul.mubr.bf16.gmra.mxu0 %v1039
        %v1375 = vpop.f32.mrf.mxu0
        %v1376 = vadd.f32 %v726, %v1375
        %v1377 = vpop.f32.mrf.mxu0
        %v1378 = vadd.f32 %v730, %v1377
        %v1379 = vpop.f32.mrf.mxu0
        %v1380 = vadd.f32 %v726, %v1379
        %v1381 = vpop.f32.mrf.mxu0
        %v1382 = vadd.f32 %v730, %v1381
        %1383 = vmatprep.mubr.bf16.mxu0 0
        %1384 = vmatmul.mubr.bf16.gmra.mxu0 %v1042
        %v1385 = vpop.f32.mrf.mxu0
        %v1386 = vadd.f32 %v726, %v1385
        %v1387 = vpop.f32.mrf.mxu0
        %v1388 = vadd.f32 %v730, %v1387
        %v1389 = vpop.f32.mrf.mxu0
        %v1390 = vadd.f32 %v726, %v1389
        %v1391 = vpop.f32.mrf.mxu0
        %v1392 = vadd.f32 %v730, %v1391
        %1393 = vmatprep.mubr.bf16.mxu0 0
        %1394 = vmatmul.mubr.bf16.gmra.mxu0 %v1045
        %v1395 = vpop.f32.mrf.mxu0
        %v1396 = vadd.f32 %v726, %v1395
        %v1397 = vpop.f32.mrf.mxu0
        %v1398 = vadd.f32 %v730, %v1397
        %v1399 = vpop.f32.mrf.mxu0
        %v1400 = vadd.f32 %v726, %v1399
        %v1401 = vpop.f32.mrf.mxu0
        %v1402 = vadd.f32 %v730, %v1401
        %1403 = vmatprep.mubr.bf16.mxu0 0
        %1404 = vmatmul.mubr.bf16.gmra.mxu0 %v1048
        %v1405 = vpop.f32.mrf.mxu0
        %v1406 = vadd.f32 %v726, %v1405
        %v1407 = vpop.f32.mrf.mxu0
        %v1408 = vadd.f32 %v730, %v1407
        %v1409 = vpop.f32.mrf.mxu0
        %v1410 = vadd.f32 %v726, %v1409
        %v1411 = vpop.f32.mrf.mxu0
        %v1412 = vadd.f32 %v730, %v1411
        %1413 = vmatprep.mubr.bf16.mxu0 0
        %1414 = vmatmul.mubr.bf16.gmra.mxu0 %v1051
        %v1415 = vpop.f32.mrf.mxu0
        %v1416 = vadd.f32 %v726, %v1415
        %v1417 = vpop.f32.mrf.mxu0
        %v1418 = vadd.f32 %v730, %v1417
        %v1419 = vpop.f32.mrf.mxu0
        %v1420 = vadd.f32 %v726, %v1419
        %v1421 = vpop.f32.mrf.mxu0
        %v1422 = vadd.f32 %v730, %v1421
        %1423 = vmatprep.mubr.bf16.mxu0 0
        %1424 = vmatmul.mubr.bf16.gmra.mxu0 %v1054
        %v1425 = vpop.f32.mrf.mxu0
        %v1426 = vadd.f32 %v726, %v1425
        %v1427 = vpop.f32.mrf.mxu0
        %v1428 = vadd.f32 %v730, %v1427
        %v1429 = vpop.f32.mrf.mxu0
        %v1430 = vadd.f32 %v726, %v1429
        %v1431 = vpop.f32.mrf.mxu0
        %v1432 = vadd.f32 %v730, %v1431
        %1433 = vdwg.mxu0
        %1434 = vmatprep.subr.bf16.mxu0 0
        %1435 = vmatpush1.bf16.msra.mxu0 0
        %1436 = vmatprep.subr.bf16.mxu0 0
        %1437 = vmatpush1.bf16.msra.mxu0 0
        %1438 = vmatprep.subr.bf16.mxu0 0
        %1439 = vmatpush1.bf16.msra.mxu0 0
        %1440 = vmatprep.subr.bf16.mxu0 0
        %1441 = vmatpush1.bf16.msra.mxu0 0
        %1442 = vmatprep.subr.bf16.mxu0 0
        %1443 = vmatpush1.bf16.msra.mxu0 0
        %1444 = vmatprep.subr.bf16.mxu0 0
        %1445 = vmatpush1.bf16.msra.mxu0 0
        %1446 = vmatprep.subr.bf16.mxu0 0
        %1447 = vmatpush1.bf16.msra.mxu0 0
        %1448 = vmatprep.subr.bf16.mxu0 %v1067
        %1449 = vmatpush1.bf16.msra.mxu0 %v1064
        %1450 = vmatprep.subr.bf16.mxu0 0
        %1451 = vmatpush2.bf16.msra.mxu0 0
        %1452 = vmatprep.subr.bf16.mxu0 0
        %1453 = vmatpush2.bf16.msra.mxu0 0
        %1454 = vmatprep.subr.bf16.mxu0 0
        %1455 = vmatpush2.bf16.msra.mxu0 0
        %1456 = vmatprep.subr.bf16.mxu0 0
        %1457 = vmatpush2.bf16.msra.mxu0 0
        %1458 = vmatprep.subr.bf16.mxu0 0
        %1459 = vmatpush2.bf16.msra.mxu0 0
        %1460 = vmatprep.subr.bf16.mxu0 0
        %1461 = vmatpush2.bf16.msra.mxu0 0
        %1462 = vmatprep.subr.bf16.mxu0 0
        %1463 = vmatpush2.bf16.msra.mxu0 0
        %1464 = vmatprep.subr.bf16.mxu0 0
        %1465 = vmatpush2.bf16.msra.mxu0 0
        %1466 = vmatprep.mubr.bf16.mxu0 0
        %1467 = vmatmul.mubr.bf16.gmra.mxu0 %v961
        %v1468 = vpop.f32.mrf.mxu0
        %v1469 = vadd.f32 %v734, %v1468
        %v1470 = vpop.f32.mrf.mxu0
        %v1471 = vadd.f32 %v738, %v1470
        %v1472 = vpop.f32.mrf.mxu0
        %v1473 = vadd.f32 %v734, %v1472
        %v1474 = vpop.f32.mrf.mxu0
        %v1475 = vadd.f32 %v738, %v1474
        %1476 = vmatprep.mubr.bf16.mxu0 0
        %1477 = vmatmul.mubr.bf16.gmra.mxu0 %v964
        %v1478 = vpop.f32.mrf.mxu0
        %v1479 = vadd.f32 %v734, %v1478
        %v1480 = vpop.f32.mrf.mxu0
        %v1481 = vadd.f32 %v738, %v1480
        %v1482 = vpop.f32.mrf.mxu0
        %v1483 = vadd.f32 %v734, %v1482
        %v1484 = vpop.f32.mrf.mxu0
        %v1485 = vadd.f32 %v738, %v1484
        %1486 = vmatprep.mubr.bf16.mxu0 0
        %1487 = vmatmul.mubr.bf16.gmra.mxu0 %v967
        %v1488 = vpop.f32.mrf.mxu0
        %v1489 = vadd.f32 %v734, %v1488
        %v1490 = vpop.f32.mrf.mxu0
        %v1491 = vadd.f32 %v738, %v1490
        %v1492 = vpop.f32.mrf.mxu0
        %v1493 = vadd.f32 %v734, %v1492
        %v1494 = vpop.f32.mrf.mxu0
        %v1495 = vadd.f32 %v738, %v1494
        %1496 = vmatprep.mubr.bf16.mxu0 0
        %1497 = vmatmul.mubr.bf16.gmra.mxu0 %v970
        %v1498 = vpop.f32.mrf.mxu0
        %v1499 = vadd.f32 %v734, %v1498
        %v1500 = vpop.f32.mrf.mxu0
        %v1501 = vadd.f32 %v738, %v1500
        %v1502 = vpop.f32.mrf.mxu0
        %v1503 = vadd.f32 %v734, %v1502
        %v1504 = vpop.f32.mrf.mxu0
        %v1505 = vadd.f32 %v738, %v1504
        %1506 = vmatprep.mubr.bf16.mxu0 0
        %1507 = vmatmul.mubr.bf16.gmra.mxu0 %v973
        %v1508 = vpop.f32.mrf.mxu0
        %v1509 = vadd.f32 %v734, %v1508
        %v1510 = vpop.f32.mrf.mxu0
        %v1511 = vadd.f32 %v738, %v1510
        %v1512 = vpop.f32.mrf.mxu0
        %v1513 = vadd.f32 %v734, %v1512
        %v1514 = vpop.f32.mrf.mxu0
        %v1515 = vadd.f32 %v738, %v1514
        %1516 = vmatprep.mubr.bf16.mxu0 0
        %1517 = vmatmul.mubr.bf16.gmra.mxu0 %v976
        %v1518 = vpop.f32.mrf.mxu0
        %v1519 = vadd.f32 %v734, %v1518
        %v1520 = vpop.f32.mrf.mxu0
        %v1521 = vadd.f32 %v738, %v1520
        %v1522 = vpop.f32.mrf.mxu0
        %v1523 = vadd.f32 %v734, %v1522
        %v1524 = vpop.f32.mrf.mxu0
        %v1525 = vadd.f32 %v738, %v1524
        %1526 = vmatprep.mubr.bf16.mxu0 0
        %1527 = vmatmul.mubr.bf16.gmra.mxu0 %v979
        %v1528 = vpop.f32.mrf.mxu0
        %v1529 = vadd.f32 %v734, %v1528
        %v1530 = vpop.f32.mrf.mxu0
        %v1531 = vadd.f32 %v738, %v1530
        %v1532 = vpop.f32.mrf.mxu0
        %v1533 = vadd.f32 %v734, %v1532
        %v1534 = vpop.f32.mrf.mxu0
        %v1535 = vadd.f32 %v738, %v1534
        %1536 = vmatprep.mubr.bf16.mxu0 0
        %1537 = vmatmul.mubr.bf16.gmra.mxu0 %v982
        %v1538 = vpop.f32.mrf.mxu0
        %v1539 = vadd.f32 %v734, %v1538
        %v1540 = vpop.f32.mrf.mxu0
        %v1541 = vadd.f32 %v738, %v1540
        %v1542 = vpop.f32.mrf.mxu0
        %v1543 = vadd.f32 %v734, %v1542
        %v1544 = vpop.f32.mrf.mxu0
        %v1545 = vadd.f32 %v738, %v1544
        %1546 = vmatprep.mubr.bf16.mxu0 0
        %1547 = vmatmul.mubr.bf16.gmra.mxu0 %v985
        %v1548 = vpop.f32.mrf.mxu0
        %v1549 = vadd.f32 %v734, %v1548
        %v1550 = vpop.f32.mrf.mxu0
        %v1551 = vadd.f32 %v738, %v1550
        %v1552 = vpop.f32.mrf.mxu0
        %v1553 = vadd.f32 %v734, %v1552
        %v1554 = vpop.f32.mrf.mxu0
        %v1555 = vadd.f32 %v738, %v1554
        %1556 = vmatprep.mubr.bf16.mxu0 0
        %1557 = vmatmul.mubr.bf16.gmra.mxu0 %v988
        %v1558 = vpop.f32.mrf.mxu0
        %v1559 = vadd.f32 %v734, %v1558
        %v1560 = vpop.f32.mrf.mxu0
        %v1561 = vadd.f32 %v738, %v1560
        %v1562 = vpop.f32.mrf.mxu0
        %v1563 = vadd.f32 %v734, %v1562
        %v1564 = vpop.f32.mrf.mxu0
        %v1565 = vadd.f32 %v738, %v1564
        %1566 = vmatprep.mubr.bf16.mxu0 0
        %1567 = vmatmul.mubr.bf16.gmra.mxu0 %v991
        %v1568 = vpop.f32.mrf.mxu0
        %v1569 = vadd.f32 %v734, %v1568
        %v1570 = vpop.f32.mrf.mxu0
        %v1571 = vadd.f32 %v738, %v1570
        %v1572 = vpop.f32.mrf.mxu0
        %v1573 = vadd.f32 %v734, %v1572
        %v1574 = vpop.f32.mrf.mxu0
        %v1575 = vadd.f32 %v738, %v1574
        %1576 = vmatprep.mubr.bf16.mxu0 0
        %1577 = vmatmul.mubr.bf16.gmra.mxu0 %v994
        %v1578 = vpop.f32.mrf.mxu0
        %v1579 = vadd.f32 %v734, %v1578
        %v1580 = vpop.f32.mrf.mxu0
        %v1581 = vadd.f32 %v738, %v1580
        %v1582 = vpop.f32.mrf.mxu0
        %v1583 = vadd.f32 %v734, %v1582
        %v1584 = vpop.f32.mrf.mxu0
        %v1585 = vadd.f32 %v738, %v1584
        %1586 = vmatprep.mubr.bf16.mxu0 0
        %1587 = vmatmul.mubr.bf16.gmra.mxu0 %v997
        %v1588 = vpop.f32.mrf.mxu0
        %v1589 = vadd.f32 %v734, %v1588
        %v1590 = vpop.f32.mrf.mxu0
        %v1591 = vadd.f32 %v738, %v1590
        %v1592 = vpop.f32.mrf.mxu0
        %v1593 = vadd.f32 %v734, %v1592
        %v1594 = vpop.f32.mrf.mxu0
        %v1595 = vadd.f32 %v738, %v1594
        %1596 = vmatprep.mubr.bf16.mxu0 0
        %1597 = vmatmul.mubr.bf16.gmra.mxu0 %v1000
        %v1598 = vpop.f32.mrf.mxu0
        %v1599 = vadd.f32 %v734, %v1598
        %v1600 = vpop.f32.mrf.mxu0
        %v1601 = vadd.f32 %v738, %v1600
        %v1602 = vpop.f32.mrf.mxu0
        %v1603 = vadd.f32 %v734, %v1602
        %v1604 = vpop.f32.mrf.mxu0
        %v1605 = vadd.f32 %v738, %v1604
        %1606 = vmatprep.mubr.bf16.mxu0 0
        %1607 = vmatmul.mubr.bf16.gmra.mxu0 %v1003
        %v1608 = vpop.f32.mrf.mxu0
        %v1609 = vadd.f32 %v734, %v1608
        %v1610 = vpop.f32.mrf.mxu0
        %v1611 = vadd.f32 %v738, %v1610
        %v1612 = vpop.f32.mrf.mxu0
        %v1613 = vadd.f32 %v734, %v1612
        %v1614 = vpop.f32.mrf.mxu0
        %v1615 = vadd.f32 %v738, %v1614
        %1616 = vmatprep.mubr.bf16.mxu0 0
        %1617 = vmatmul.mubr.bf16.gmra.mxu0 %v1006
        %v1618 = vpop.f32.mrf.mxu0
        %v1619 = vadd.f32 %v734, %v1618
        %v1620 = vpop.f32.mrf.mxu0
        %v1621 = vadd.f32 %v738, %v1620
        %v1622 = vpop.f32.mrf.mxu0
        %v1623 = vadd.f32 %v734, %v1622
        %v1624 = vpop.f32.mrf.mxu0
        %v1625 = vadd.f32 %v738, %v1624
        %1626 = vmatprep.mubr.bf16.mxu0 0
        %1627 = vmatmul.mubr.bf16.gmra.mxu0 %v1009
        %v1628 = vpop.f32.mrf.mxu0
        %v1629 = vadd.f32 %v734, %v1628
        %v1630 = vpop.f32.mrf.mxu0
        %v1631 = vadd.f32 %v738, %v1630
        %v1632 = vpop.f32.mrf.mxu0
        %v1633 = vadd.f32 %v734, %v1632
        %v1634 = vpop.f32.mrf.mxu0
        %v1635 = vadd.f32 %v738, %v1634
        %1636 = vmatprep.mubr.bf16.mxu0 0
        %1637 = vmatmul.mubr.bf16.gmra.mxu0 %v1012
        %v1638 = vpop.f32.mrf.mxu0
        %v1639 = vadd.f32 %v734, %v1638
        %v1640 = vpop.f32.mrf.mxu0
        %v1641 = vadd.f32 %v738, %v1640
        %v1642 = vpop.f32.mrf.mxu0
        %v1643 = vadd.f32 %v734, %v1642
        %v1644 = vpop.f32.mrf.mxu0
        %v1645 = vadd.f32 %v738, %v1644
        %1646 = vmatprep.mubr.bf16.mxu0 0
        %1647 = vmatmul.mubr.bf16.gmra.mxu0 %v1015
        %v1648 = vpop.f32.mrf.mxu0
        %v1649 = vadd.f32 %v734, %v1648
        %v1650 = vpop.f32.mrf.mxu0
        %v1651 = vadd.f32 %v738, %v1650
        %v1652 = vpop.f32.mrf.mxu0
        %v1653 = vadd.f32 %v734, %v1652
        %v1654 = vpop.f32.mrf.mxu0
        %v1655 = vadd.f32 %v738, %v1654
        %1656 = vmatprep.mubr.bf16.mxu0 0
        %1657 = vmatmul.mubr.bf16.gmra.mxu0 %v1018
        %v1658 = vpop.f32.mrf.mxu0
        %v1659 = vadd.f32 %v734, %v1658
        %v1660 = vpop.f32.mrf.mxu0
        %v1661 = vadd.f32 %v738, %v1660
        %v1662 = vpop.f32.mrf.mxu0
        %v1663 = vadd.f32 %v734, %v1662
        %v1664 = vpop.f32.mrf.mxu0
        %v1665 = vadd.f32 %v738, %v1664
        %1666 = vmatprep.mubr.bf16.mxu0 0
        %1667 = vmatmul.mubr.bf16.gmra.mxu0 %v1021
        %v1668 = vpop.f32.mrf.mxu0
        %v1669 = vadd.f32 %v734, %v1668
        %v1670 = vpop.f32.mrf.mxu0
        %v1671 = vadd.f32 %v738, %v1670
        %v1672 = vpop.f32.mrf.mxu0
        %v1673 = vadd.f32 %v734, %v1672
        %v1674 = vpop.f32.mrf.mxu0
        %v1675 = vadd.f32 %v738, %v1674
        %1676 = vmatprep.mubr.bf16.mxu0 0
        %1677 = vmatmul.mubr.bf16.gmra.mxu0 %v1024
        %v1678 = vpop.f32.mrf.mxu0
        %v1679 = vadd.f32 %v734, %v1678
        %v1680 = vpop.f32.mrf.mxu0
        %v1681 = vadd.f32 %v738, %v1680
        %v1682 = vpop.f32.mrf.mxu0
        %v1683 = vadd.f32 %v734, %v1682
        %v1684 = vpop.f32.mrf.mxu0
        %v1685 = vadd.f32 %v738, %v1684
        %1686 = vmatprep.mubr.bf16.mxu0 0
        %1687 = vmatmul.mubr.bf16.gmra.mxu0 %v1027
        %v1688 = vpop.f32.mrf.mxu0
        %v1689 = vadd.f32 %v734, %v1688
        %v1690 = vpop.f32.mrf.mxu0
        %v1691 = vadd.f32 %v738, %v1690
        %v1692 = vpop.f32.mrf.mxu0
        %v1693 = vadd.f32 %v734, %v1692
        %v1694 = vpop.f32.mrf.mxu0
        %v1695 = vadd.f32 %v738, %v1694
        %1696 = vmatprep.mubr.bf16.mxu0 0
        %1697 = vmatmul.mubr.bf16.gmra.mxu0 %v1030
        %v1698 = vpop.f32.mrf.mxu0
        %v1699 = vadd.f32 %v734, %v1698
        %v1700 = vpop.f32.mrf.mxu0
        %v1701 = vadd.f32 %v738, %v1700
        %v1702 = vpop.f32.mrf.mxu0
        %v1703 = vadd.f32 %v734, %v1702
        %v1704 = vpop.f32.mrf.mxu0
        %v1705 = vadd.f32 %v738, %v1704
        %1706 = vmatprep.mubr.bf16.mxu0 0
        %1707 = vmatmul.mubr.bf16.gmra.mxu0 %v1033
        %v1708 = vpop.f32.mrf.mxu0
        %v1709 = vadd.f32 %v734, %v1708
        %v1710 = vpop.f32.mrf.mxu0
        %v1711 = vadd.f32 %v738, %v1710
        %v1712 = vpop.f32.mrf.mxu0
        %v1713 = vadd.f32 %v734, %v1712
        %v1714 = vpop.f32.mrf.mxu0
        %v1715 = vadd.f32 %v738, %v1714
        %1716 = vmatprep.mubr.bf16.mxu0 0
        %1717 = vmatmul.mubr.bf16.gmra.mxu0 %v1036
        %v1718 = vpop.f32.mrf.mxu0
        %v1719 = vadd.f32 %v734, %v1718
        %v1720 = vpop.f32.mrf.mxu0
        %v1721 = vadd.f32 %v738, %v1720
        %v1722 = vpop.f32.mrf.mxu0
        %v1723 = vadd.f32 %v734, %v1722
        %v1724 = vpop.f32.mrf.mxu0
        %v1725 = vadd.f32 %v738, %v1724
        %1726 = vmatprep.mubr.bf16.mxu0 0
        %1727 = vmatmul.mubr.bf16.gmra.mxu0 %v1039
        %v1728 = vpop.f32.mrf.mxu0
        %v1729 = vadd.f32 %v734, %v1728
        %v1730 = vpop.f32.mrf.mxu0
        %v1731 = vadd.f32 %v738, %v1730
        %v1732 = vpop.f32.mrf.mxu0
        %v1733 = vadd.f32 %v734, %v1732
        %v1734 = vpop.f32.mrf.mxu0
        %v1735 = vadd.f32 %v738, %v1734
        %1736 = vmatprep.mubr.bf16.mxu0 0
        %1737 = vmatmul.mubr.bf16.gmra.mxu0 %v1042
        %v1738 = vpop.f32.mrf.mxu0
        %v1739 = vadd.f32 %v734, %v1738
        %v1740 = vpop.f32.mrf.mxu0
        %v1741 = vadd.f32 %v738, %v1740
        %v1742 = vpop.f32.mrf.mxu0
        %v1743 = vadd.f32 %v734, %v1742
        %v1744 = vpop.f32.mrf.mxu0
        %v1745 = vadd.f32 %v738, %v1744
        %1746 = vmatprep.mubr.bf16.mxu0 0
        %1747 = vmatmul.mubr.bf16.gmra.mxu0 %v1045
        %v1748 = vpop.f32.mrf.mxu0
        %v1749 = vadd.f32 %v734, %v1748
        %v1750 = vpop.f32.mrf.mxu0
        %v1751 = vadd.f32 %v738, %v1750
        %v1752 = vpop.f32.mrf.mxu0
        %v1753 = vadd.f32 %v734, %v1752
        %v1754 = vpop.f32.mrf.mxu0
        %v1755 = vadd.f32 %v738, %v1754
        %1756 = vmatprep.mubr.bf16.mxu0 0
        %1757 = vmatmul.mubr.bf16.gmra.mxu0 %v1048
        %v1758 = vpop.f32.mrf.mxu0
        %v1759 = vadd.f32 %v734, %v1758
        %v1760 = vpop.f32.mrf.mxu0
        %v1761 = vadd.f32 %v738, %v1760
        %v1762 = vpop.f32.mrf.mxu0
        %v1763 = vadd.f32 %v734, %v1762
        %v1764 = vpop.f32.mrf.mxu0
        %v1765 = vadd.f32 %v738, %v1764
        %1766 = vmatprep.mubr.bf16.mxu0 0
        %1767 = vmatmul.mubr.bf16.gmra.mxu0 %v1051
        %v1768 = vpop.f32.mrf.mxu0
        %v1769 = vadd.f32 %v734, %v1768
        %v1770 = vpop.f32.mrf.mxu0
        %v1771 = vadd.f32 %v738, %v1770
        %v1772 = vpop.f32.mrf.mxu0
        %v1773 = vadd.f32 %v734, %v1772
        %v1774 = vpop.f32.mrf.mxu0
        %v1775 = vadd.f32 %v738, %v1774
        %1776 = vmatprep.mubr.bf16.mxu0 0
        %1777 = vmatmul.mubr.bf16.gmra.mxu0 %v1054
        %v1778 = vpop.f32.mrf.mxu0
        %v1779 = vadd.f32 %v734, %v1778
        %v1780 = vpop.f32.mrf.mxu0
        %v1781 = vadd.f32 %v738, %v1780
        %v1782 = vpop.f32.mrf.mxu0
        %v1783 = vadd.f32 %v734, %v1782
        %v1784 = vpop.f32.mrf.mxu0
        %v1785 = vadd.f32 %v738, %v1784
        %1786 = vdwg.mxu0
        %1787 = vmatprep.subr.bf16.mxu0 0
        %1788 = vmatpush1.bf16.msra.mxu0 0
        %1789 = vmatprep.subr.bf16.mxu0 0
        %1790 = vmatpush1.bf16.msra.mxu0 0
        %1791 = vmatprep.subr.bf16.mxu0 0
        %1792 = vmatpush1.bf16.msra.mxu0 0
        %1793 = vmatprep.subr.bf16.mxu0 0
        %1794 = vmatpush1.bf16.msra.mxu0 0
        %1795 = vmatprep.subr.bf16.mxu0 0
        %1796 = vmatpush1.bf16.msra.mxu0 0
        %1797 = vmatprep.subr.bf16.mxu0 0
        %1798 = vmatpush1.bf16.msra.mxu0 0
        %1799 = vmatprep.subr.bf16.mxu0 0
        %1800 = vmatpush1.bf16.msra.mxu0 0
        %1801 = vmatprep.subr.bf16.mxu0 %v1073
        %1802 = vmatpush1.bf16.msra.mxu0 %v1070
        %1803 = vmatprep.subr.bf16.mxu0 0
        %1804 = vmatpush2.bf16.msra.mxu0 0
        %1805 = vmatprep.subr.bf16.mxu0 0
        %1806 = vmatpush2.bf16.msra.mxu0 0
        %1807 = vmatprep.subr.bf16.mxu0 0
        %1808 = vmatpush2.bf16.msra.mxu0 0
        %1809 = vmatprep.subr.bf16.mxu0 0
        %1810 = vmatpush2.bf16.msra.mxu0 0
        %1811 = vmatprep.subr.bf16.mxu0 0
        %1812 = vmatpush2.bf16.msra.mxu0 0
        %1813 = vmatprep.subr.bf16.mxu0 0
        %1814 = vmatpush2.bf16.msra.mxu0 0
        %1815 = vmatprep.subr.bf16.mxu0 0
        %1816 = vmatpush2.bf16.msra.mxu0 0
        %1817 = vmatprep.subr.bf16.mxu0 0
        %1818 = vmatpush2.bf16.msra.mxu0 0
        %1819 = vmatprep.mubr.bf16.mxu0 0
        %1820 = vmatmul.mubr.bf16.gmra.mxu0 %v961
        %v1821 = vpop.f32.mrf.mxu0
        %v1822 = vadd.f32 %v742, %v1821
        %v1823 = vpop.f32.mrf.mxu0
        %v1824 = vadd.f32 %v746, %v1823
        %v1825 = vpop.f32.mrf.mxu0
        %v1826 = vadd.f32 %v742, %v1825
        %v1827 = vpop.f32.mrf.mxu0
        %v1828 = vadd.f32 %v746, %v1827
        %1829 = vmatprep.mubr.bf16.mxu0 0
        %1830 = vmatmul.mubr.bf16.gmra.mxu0 %v964
        %v1831 = vpop.f32.mrf.mxu0
        %v1832 = vadd.f32 %v742, %v1831
        %v1833 = vpop.f32.mrf.mxu0
        %v1834 = vadd.f32 %v746, %v1833
        %v1835 = vpop.f32.mrf.mxu0
        %v1836 = vadd.f32 %v742, %v1835
        %v1837 = vpop.f32.mrf.mxu0
        %v1838 = vadd.f32 %v746, %v1837
        %1839 = vmatprep.mubr.bf16.mxu0 0
        %1840 = vmatmul.mubr.bf16.gmra.mxu0 %v967
        %v1841 = vpop.f32.mrf.mxu0
        %v1842 = vadd.f32 %v742, %v1841
        %v1843 = vpop.f32.mrf.mxu0
        %v1844 = vadd.f32 %v746, %v1843
        %v1845 = vpop.f32.mrf.mxu0
        %v1846 = vadd.f32 %v742, %v1845
        %v1847 = vpop.f32.mrf.mxu0
        %v1848 = vadd.f32 %v746, %v1847
        %1849 = vmatprep.mubr.bf16.mxu0 0
        %1850 = vmatmul.mubr.bf16.gmra.mxu0 %v970
        %v1851 = vpop.f32.mrf.mxu0
        %v1852 = vadd.f32 %v742, %v1851
        %v1853 = vpop.f32.mrf.mxu0
        %v1854 = vadd.f32 %v746, %v1853
        %v1855 = vpop.f32.mrf.mxu0
        %v1856 = vadd.f32 %v742, %v1855
        %v1857 = vpop.f32.mrf.mxu0
        %v1858 = vadd.f32 %v746, %v1857
        %1859 = vmatprep.mubr.bf16.mxu0 0
        %1860 = vmatmul.mubr.bf16.gmra.mxu0 %v973
        %v1861 = vpop.f32.mrf.mxu0
        %v1862 = vadd.f32 %v742, %v1861
        %v1863 = vpop.f32.mrf.mxu0
        %v1864 = vadd.f32 %v746, %v1863
        %v1865 = vpop.f32.mrf.mxu0
        %v1866 = vadd.f32 %v742, %v1865
        %v1867 = vpop.f32.mrf.mxu0
        %v1868 = vadd.f32 %v746, %v1867
        %1869 = vmatprep.mubr.bf16.mxu0 0
        %1870 = vmatmul.mubr.bf16.gmra.mxu0 %v976
        %v1871 = vpop.f32.mrf.mxu0
        %v1872 = vadd.f32 %v742, %v1871
        %v1873 = vpop.f32.mrf.mxu0
        %v1874 = vadd.f32 %v746, %v1873
        %v1875 = vpop.f32.mrf.mxu0
        %v1876 = vadd.f32 %v742, %v1875
        %v1877 = vpop.f32.mrf.mxu0
        %v1878 = vadd.f32 %v746, %v1877
        %1879 = vmatprep.mubr.bf16.mxu0 0
        %1880 = vmatmul.mubr.bf16.gmra.mxu0 %v979
        %v1881 = vpop.f32.mrf.mxu0
        %v1882 = vadd.f32 %v742, %v1881
        %v1883 = vpop.f32.mrf.mxu0
        %v1884 = vadd.f32 %v746, %v1883
        %v1885 = vpop.f32.mrf.mxu0
        %v1886 = vadd.f32 %v742, %v1885
        %v1887 = vpop.f32.mrf.mxu0
        %v1888 = vadd.f32 %v746, %v1887
        %1889 = vmatprep.mubr.bf16.mxu0 0
        %1890 = vmatmul.mubr.bf16.gmra.mxu0 %v982
        %v1891 = vpop.f32.mrf.mxu0
        %v1892 = vadd.f32 %v742, %v1891
        %v1893 = vpop.f32.mrf.mxu0
        %v1894 = vadd.f32 %v746, %v1893
        %v1895 = vpop.f32.mrf.mxu0
        %v1896 = vadd.f32 %v742, %v1895
        %v1897 = vpop.f32.mrf.mxu0
        %v1898 = vadd.f32 %v746, %v1897
        %1899 = vmatprep.mubr.bf16.mxu0 0
        %1900 = vmatmul.mubr.bf16.gmra.mxu0 %v985
        %v1901 = vpop.f32.mrf.mxu0
        %v1902 = vadd.f32 %v742, %v1901
        %v1903 = vpop.f32.mrf.mxu0
        %v1904 = vadd.f32 %v746, %v1903
        %v1905 = vpop.f32.mrf.mxu0
        %v1906 = vadd.f32 %v742, %v1905
        %v1907 = vpop.f32.mrf.mxu0
        %v1908 = vadd.f32 %v746, %v1907
        %1909 = vmatprep.mubr.bf16.mxu0 0
        %1910 = vmatmul.mubr.bf16.gmra.mxu0 %v988
        %v1911 = vpop.f32.mrf.mxu0
        %v1912 = vadd.f32 %v742, %v1911
        %v1913 = vpop.f32.mrf.mxu0
        %v1914 = vadd.f32 %v746, %v1913
        %v1915 = vpop.f32.mrf.mxu0
        %v1916 = vadd.f32 %v742, %v1915
        %v1917 = vpop.f32.mrf.mxu0
        %v1918 = vadd.f32 %v746, %v1917
        %1919 = vmatprep.mubr.bf16.mxu0 0
        %1920 = vmatmul.mubr.bf16.gmra.mxu0 %v991
        %v1921 = vpop.f32.mrf.mxu0
        %v1922 = vadd.f32 %v742, %v1921
        %v1923 = vpop.f32.mrf.mxu0
        %v1924 = vadd.f32 %v746, %v1923
        %v1925 = vpop.f32.mrf.mxu0
        %v1926 = vadd.f32 %v742, %v1925
        %v1927 = vpop.f32.mrf.mxu0
        %v1928 = vadd.f32 %v746, %v1927
        %1929 = vmatprep.mubr.bf16.mxu0 0
        %1930 = vmatmul.mubr.bf16.gmra.mxu0 %v994
        %v1931 = vpop.f32.mrf.mxu0
        %v1932 = vadd.f32 %v742, %v1931
        %v1933 = vpop.f32.mrf.mxu0
        %v1934 = vadd.f32 %v746, %v1933
        %v1935 = vpop.f32.mrf.mxu0
        %v1936 = vadd.f32 %v742, %v1935
        %v1937 = vpop.f32.mrf.mxu0
        %v1938 = vadd.f32 %v746, %v1937
        %1939 = vmatprep.mubr.bf16.mxu0 0
        %1940 = vmatmul.mubr.bf16.gmra.mxu0 %v997
        %v1941 = vpop.f32.mrf.mxu0
        %v1942 = vadd.f32 %v742, %v1941
        %v1943 = vpop.f32.mrf.mxu0
        %v1944 = vadd.f32 %v746, %v1943
        %v1945 = vpop.f32.mrf.mxu0
        %v1946 = vadd.f32 %v742, %v1945
        %v1947 = vpop.f32.mrf.mxu0
        %v1948 = vadd.f32 %v746, %v1947
        %1949 = vmatprep.mubr.bf16.mxu0 0
        %1950 = vmatmul.mubr.bf16.gmra.mxu0 %v1000
        %v1951 = vpop.f32.mrf.mxu0
        %v1952 = vadd.f32 %v742, %v1951
        %v1953 = vpop.f32.mrf.mxu0
        %v1954 = vadd.f32 %v746, %v1953
        %v1955 = vpop.f32.mrf.mxu0
        %v1956 = vadd.f32 %v742, %v1955
        %v1957 = vpop.f32.mrf.mxu0
        %v1958 = vadd.f32 %v746, %v1957
        %1959 = vmatprep.mubr.bf16.mxu0 0
        %1960 = vmatmul.mubr.bf16.gmra.mxu0 %v1003
        %v1961 = vpop.f32.mrf.mxu0
        %v1962 = vadd.f32 %v742, %v1961
        %v1963 = vpop.f32.mrf.mxu0
        %v1964 = vadd.f32 %v746, %v1963
        %v1965 = vpop.f32.mrf.mxu0
        %v1966 = vadd.f32 %v742, %v1965
        %v1967 = vpop.f32.mrf.mxu0
        %v1968 = vadd.f32 %v746, %v1967
        %1969 = vmatprep.mubr.bf16.mxu0 0
        %1970 = vmatmul.mubr.bf16.gmra.mxu0 %v1006
        %v1971 = vpop.f32.mrf.mxu0
        %v1972 = vadd.f32 %v742, %v1971
        %v1973 = vpop.f32.mrf.mxu0
        %v1974 = vadd.f32 %v746, %v1973
        %v1975 = vpop.f32.mrf.mxu0
        %v1976 = vadd.f32 %v742, %v1975
        %v1977 = vpop.f32.mrf.mxu0
        %v1978 = vadd.f32 %v746, %v1977
        %1979 = vmatprep.mubr.bf16.mxu0 0
        %1980 = vmatmul.mubr.bf16.gmra.mxu0 %v1009
        %v1981 = vpop.f32.mrf.mxu0
        %v1982 = vadd.f32 %v742, %v1981
        %v1983 = vpop.f32.mrf.mxu0
        %v1984 = vadd.f32 %v746, %v1983
        %v1985 = vpop.f32.mrf.mxu0
        %v1986 = vadd.f32 %v742, %v1985
        %v1987 = vpop.f32.mrf.mxu0
        %v1988 = vadd.f32 %v746, %v1987
        %1989 = vmatprep.mubr.bf16.mxu0 0
        %1990 = vmatmul.mubr.bf16.gmra.mxu0 %v1012
        %v1991 = vpop.f32.mrf.mxu0
        %v1992 = vadd.f32 %v742, %v1991
        %v1993 = vpop.f32.mrf.mxu0
        %v1994 = vadd.f32 %v746, %v1993
        %v1995 = vpop.f32.mrf.mxu0
        %v1996 = vadd.f32 %v742, %v1995
        %v1997 = vpop.f32.mrf.mxu0
        %v1998 = vadd.f32 %v746, %v1997
        %1999 = vmatprep.mubr.bf16.mxu0 0
        %2000 = vmatmul.mubr.bf16.gmra.mxu0 %v1015
        %v2001 = vpop.f32.mrf.mxu0
        %v2002 = vadd.f32 %v742, %v2001
        %v2003 = vpop.f32.mrf.mxu0
        %v2004 = vadd.f32 %v746, %v2003
        %v2005 = vpop.f32.mrf.mxu0
        %v2006 = vadd.f32 %v742, %v2005
        %v2007 = vpop.f32.mrf.mxu0
        %v2008 = vadd.f32 %v746, %v2007
        %2009 = vmatprep.mubr.bf16.mxu0 0
        %2010 = vmatmul.mubr.bf16.gmra.mxu0 %v1018
        %v2011 = vpop.f32.mrf.mxu0
        %v2012 = vadd.f32 %v742, %v2011
        %v2013 = vpop.f32.mrf.mxu0
        %v2014 = vadd.f32 %v746, %v2013
        %v2015 = vpop.f32.mrf.mxu0
        %v2016 = vadd.f32 %v742, %v2015
        %v2017 = vpop.f32.mrf.mxu0
        %v2018 = vadd.f32 %v746, %v2017
        %2019 = vmatprep.mubr.bf16.mxu0 0
        %2020 = vmatmul.mubr.bf16.gmra.mxu0 %v1021
        %v2021 = vpop.f32.mrf.mxu0
        %v2022 = vadd.f32 %v742, %v2021
        %v2023 = vpop.f32.mrf.mxu0
        %v2024 = vadd.f32 %v746, %v2023
        %v2025 = vpop.f32.mrf.mxu0
        %v2026 = vadd.f32 %v742, %v2025
        %v2027 = vpop.f32.mrf.mxu0
        %v2028 = vadd.f32 %v746, %v2027
        %2029 = vmatprep.mubr.bf16.mxu0 0
        %2030 = vmatmul.mubr.bf16.gmra.mxu0 %v1024
        %v2031 = vpop.f32.mrf.mxu0
        %v2032 = vadd.f32 %v742, %v2031
        %v2033 = vpop.f32.mrf.mxu0
        %v2034 = vadd.f32 %v746, %v2033
        %v2035 = vpop.f32.mrf.mxu0
        %v2036 = vadd.f32 %v742, %v2035
        %v2037 = vpop.f32.mrf.mxu0
        %v2038 = vadd.f32 %v746, %v2037
        %2039 = vmatprep.mubr.bf16.mxu0 0
        %2040 = vmatmul.mubr.bf16.gmra.mxu0 %v1027
        %v2041 = vpop.f32.mrf.mxu0
        %v2042 = vadd.f32 %v742, %v2041
        %v2043 = vpop.f32.mrf.mxu0
        %v2044 = vadd.f32 %v746, %v2043
        %v2045 = vpop.f32.mrf.mxu0
        %v2046 = vadd.f32 %v742, %v2045
        %v2047 = vpop.f32.mrf.mxu0
        %v2048 = vadd.f32 %v746, %v2047
        %2049 = vmatprep.mubr.bf16.mxu0 0
        %2050 = vmatmul.mubr.bf16.gmra.mxu0 %v1030
        %v2051 = vpop.f32.mrf.mxu0
        %v2052 = vadd.f32 %v742, %v2051
        %v2053 = vpop.f32.mrf.mxu0
        %v2054 = vadd.f32 %v746, %v2053
        %v2055 = vpop.f32.mrf.mxu0
        %v2056 = vadd.f32 %v742, %v2055
        %v2057 = vpop.f32.mrf.mxu0
        %v2058 = vadd.f32 %v746, %v2057
        %2059 = vmatprep.mubr.bf16.mxu0 0
        %2060 = vmatmul.mubr.bf16.gmra.mxu0 %v1033
        %v2061 = vpop.f32.mrf.mxu0
        %v2062 = vadd.f32 %v742, %v2061
        %v2063 = vpop.f32.mrf.mxu0
        %v2064 = vadd.f32 %v746, %v2063
        %v2065 = vpop.f32.mrf.mxu0
        %v2066 = vadd.f32 %v742, %v2065
        %v2067 = vpop.f32.mrf.mxu0
        %v2068 = vadd.f32 %v746, %v2067
        %2069 = vmatprep.mubr.bf16.mxu0 0
        %2070 = vmatmul.mubr.bf16.gmra.mxu0 %v1036
        %v2071 = vpop.f32.mrf.mxu0
        %v2072 = vadd.f32 %v742, %v2071
        %v2073 = vpop.f32.mrf.mxu0
        %v2074 = vadd.f32 %v746, %v2073
        %v2075 = vpop.f32.mrf.mxu0
        %v2076 = vadd.f32 %v742, %v2075
        %v2077 = vpop.f32.mrf.mxu0
        %v2078 = vadd.f32 %v746, %v2077
        %2079 = vmatprep.mubr.bf16.mxu0 0
        %2080 = vmatmul.mubr.bf16.gmra.mxu0 %v1039
        %v2081 = vpop.f32.mrf.mxu0
        %v2082 = vadd.f32 %v742, %v2081
        %v2083 = vpop.f32.mrf.mxu0
        %v2084 = vadd.f32 %v746, %v2083
        %v2085 = vpop.f32.mrf.mxu0
        %v2086 = vadd.f32 %v742, %v2085
        %v2087 = vpop.f32.mrf.mxu0
        %v2088 = vadd.f32 %v746, %v2087
        %2089 = vmatprep.mubr.bf16.mxu0 0
        %2090 = vmatmul.mubr.bf16.gmra.mxu0 %v1042
        %v2091 = vpop.f32.mrf.mxu0
        %v2092 = vadd.f32 %v742, %v2091
        %v2093 = vpop.f32.mrf.mxu0
        %v2094 = vadd.f32 %v746, %v2093
        %v2095 = vpop.f32.mrf.mxu0
        %v2096 = vadd.f32 %v742, %v2095
        %v2097 = vpop.f32.mrf.mxu0
        %v2098 = vadd.f32 %v746, %v2097
        %2099 = vmatprep.mubr.bf16.mxu0 0
        %2100 = vmatmul.mubr.bf16.gmra.mxu0 %v1045
        %v2101 = vpop.f32.mrf.mxu0
        %v2102 = vadd.f32 %v742, %v2101
        %v2103 = vpop.f32.mrf.mxu0
        %v2104 = vadd.f32 %v746, %v2103
        %v2105 = vpop.f32.mrf.mxu0
        %v2106 = vadd.f32 %v742, %v2105
        %v2107 = vpop.f32.mrf.mxu0
        %v2108 = vadd.f32 %v746, %v2107
        %2109 = vmatprep.mubr.bf16.mxu0 0
        %2110 = vmatmul.mubr.bf16.gmra.mxu0 %v1048
        %v2111 = vpop.f32.mrf.mxu0
        %v2112 = vadd.f32 %v742, %v2111
        %v2113 = vpop.f32.mrf.mxu0
        %v2114 = vadd.f32 %v746, %v2113
        %v2115 = vpop.f32.mrf.mxu0
        %v2116 = vadd.f32 %v742, %v2115
        %v2117 = vpop.f32.mrf.mxu0
        %v2118 = vadd.f32 %v746, %v2117
        %2119 = vmatprep.mubr.bf16.mxu0 0
        %2120 = vmatmul.mubr.bf16.gmra.mxu0 %v1051
        %v2121 = vpop.f32.mrf.mxu0
        %v2122 = vadd.f32 %v742, %v2121
        %v2123 = vpop.f32.mrf.mxu0
        %v2124 = vadd.f32 %v746, %v2123
        %v2125 = vpop.f32.mrf.mxu0
        %v2126 = vadd.f32 %v742, %v2125
        %v2127 = vpop.f32.mrf.mxu0
        %v2128 = vadd.f32 %v746, %v2127
        %2129 = vmatprep.mubr.bf16.mxu0 0
        %2130 = vmatmul.mubr.bf16.gmra.mxu0 %v1054
        %v2131 = vpop.f32.mrf.mxu0
        %v2132 = vadd.f32 %v742, %v2131
        %v2133 = vpop.f32.mrf.mxu0
        %v2134 = vadd.f32 %v746, %v2133
        %v2135 = vpop.f32.mrf.mxu0
        %v2136 = vadd.f32 %v742, %v2135
        %v2137 = vpop.f32.mrf.mxu0
        %v2138 = vadd.f32 %v746, %v2137
        %2139 = vdwg.mxu0
        %2140 = vmatprep.subr.bf16.mxu0 0
        %2141 = vmatpush1.bf16.msra.mxu0 0
        %2142 = vmatprep.subr.bf16.mxu0 0
        %2143 = vmatpush1.bf16.msra.mxu0 0
        %2144 = vmatprep.subr.bf16.mxu0 0
        %2145 = vmatpush1.bf16.msra.mxu0 0
        %2146 = vmatprep.subr.bf16.mxu0 0
        %2147 = vmatpush1.bf16.msra.mxu0 0
        %2148 = vmatprep.subr.bf16.mxu0 0
        %2149 = vmatpush1.bf16.msra.mxu0 0
        %2150 = vmatprep.subr.bf16.mxu0 0
        %2151 = vmatpush1.bf16.msra.mxu0 0
        %2152 = vmatprep.subr.bf16.mxu0 0
        %2153 = vmatpush1.bf16.msra.mxu0 0
        %2154 = vmatprep.subr.bf16.mxu0 %v1079
        %2155 = vmatpush1.bf16.msra.mxu0 %v1076
        %2156 = vmatprep.subr.bf16.mxu0 0
        %2157 = vmatpush2.bf16.msra.mxu0 0
        %2158 = vmatprep.subr.bf16.mxu0 0
        %2159 = vmatpush2.bf16.msra.mxu0 0
        %2160 = vmatprep.subr.bf16.mxu0 0
        %2161 = vmatpush2.bf16.msra.mxu0 0
        %2162 = vmatprep.subr.bf16.mxu0 0
        %2163 = vmatpush2.bf16.msra.mxu0 0
        %2164 = vmatprep.subr.bf16.mxu0 0
        %2165 = vmatpush2.bf16.msra.mxu0 0
        %2166 = vmatprep.subr.bf16.mxu0 0
        %2167 = vmatpush2.bf16.msra.mxu0 0
        %2168 = vmatprep.subr.bf16.mxu0 0
        %2169 = vmatpush2.bf16.msra.mxu0 0
        %2170 = vmatprep.subr.bf16.mxu0 0
        %2171 = vmatpush2.bf16.msra.mxu0 0
        %2172 = vmatprep.mubr.bf16.mxu0 0
        %2173 = vmatmul.mubr.bf16.gmra.mxu0 %v961
        %v2174 = vpop.f32.mrf.mxu0
        %v2175 = vadd.f32 %v750, %v2174
        %v2176 = vpop.f32.mrf.mxu0
        %v2177 = vadd.f32 %v754, %v2176
        %v2178 = vpop.f32.mrf.mxu0
        %v2179 = vadd.f32 %v750, %v2178
        %v2180 = vpop.f32.mrf.mxu0
        %v2181 = vadd.f32 %v754, %v2180
        %2182 = vmatprep.mubr.bf16.mxu0 0
        %2183 = vmatmul.mubr.bf16.gmra.mxu0 %v964
        %v2184 = vpop.f32.mrf.mxu0
        %v2185 = vadd.f32 %v750, %v2184
        %v2186 = vpop.f32.mrf.mxu0
        %v2187 = vadd.f32 %v754, %v2186
        %v2188 = vpop.f32.mrf.mxu0
        %v2189 = vadd.f32 %v750, %v2188
        %v2190 = vpop.f32.mrf.mxu0
        %v2191 = vadd.f32 %v754, %v2190
        %2192 = vmatprep.mubr.bf16.mxu0 0
        %2193 = vmatmul.mubr.bf16.gmra.mxu0 %v967
        %v2194 = vpop.f32.mrf.mxu0
        %v2195 = vadd.f32 %v750, %v2194
        %v2196 = vpop.f32.mrf.mxu0
        %v2197 = vadd.f32 %v754, %v2196
        %v2198 = vpop.f32.mrf.mxu0
        %v2199 = vadd.f32 %v750, %v2198
        %v2200 = vpop.f32.mrf.mxu0
        %v2201 = vadd.f32 %v754, %v2200
        %2202 = vmatprep.mubr.bf16.mxu0 0
        %2203 = vmatmul.mubr.bf16.gmra.mxu0 %v970
        %v2204 = vpop.f32.mrf.mxu0
        %v2205 = vadd.f32 %v750, %v2204
        %v2206 = vpop.f32.mrf.mxu0
        %v2207 = vadd.f32 %v754, %v2206
        %v2208 = vpop.f32.mrf.mxu0
        %v2209 = vadd.f32 %v750, %v2208
        %v2210 = vpop.f32.mrf.mxu0
        %v2211 = vadd.f32 %v754, %v2210
        %2212 = vmatprep.mubr.bf16.mxu0 0
        %2213 = vmatmul.mubr.bf16.gmra.mxu0 %v973
        %v2214 = vpop.f32.mrf.mxu0
        %v2215 = vadd.f32 %v750, %v2214
        %v2216 = vpop.f32.mrf.mxu0
        %v2217 = vadd.f32 %v754, %v2216
        %v2218 = vpop.f32.mrf.mxu0
        %v2219 = vadd.f32 %v750, %v2218
        %v2220 = vpop.f32.mrf.mxu0
        %v2221 = vadd.f32 %v754, %v2220
        %2222 = vmatprep.mubr.bf16.mxu0 0
        %2223 = vmatmul.mubr.bf16.gmra.mxu0 %v976
        %v2224 = vpop.f32.mrf.mxu0
        %v2225 = vadd.f32 %v750, %v2224
        %v2226 = vpop.f32.mrf.mxu0
        %v2227 = vadd.f32 %v754, %v2226
        %v2228 = vpop.f32.mrf.mxu0
        %v2229 = vadd.f32 %v750, %v2228
        %v2230 = vpop.f32.mrf.mxu0
        %v2231 = vadd.f32 %v754, %v2230
        %2232 = vmatprep.mubr.bf16.mxu0 0
        %2233 = vmatmul.mubr.bf16.gmra.mxu0 %v979
        %v2234 = vpop.f32.mrf.mxu0
        %v2235 = vadd.f32 %v750, %v2234
        %v2236 = vpop.f32.mrf.mxu0
        %v2237 = vadd.f32 %v754, %v2236
        %v2238 = vpop.f32.mrf.mxu0
        %v2239 = vadd.f32 %v750, %v2238
        %v2240 = vpop.f32.mrf.mxu0
        %v2241 = vadd.f32 %v754, %v2240
        %2242 = vmatprep.mubr.bf16.mxu0 0
        %2243 = vmatmul.mubr.bf16.gmra.mxu0 %v982
        %v2244 = vpop.f32.mrf.mxu0
        %v2245 = vadd.f32 %v750, %v2244
        %v2246 = vpop.f32.mrf.mxu0
        %v2247 = vadd.f32 %v754, %v2246
        %v2248 = vpop.f32.mrf.mxu0
        %v2249 = vadd.f32 %v750, %v2248
        %v2250 = vpop.f32.mrf.mxu0
        %v2251 = vadd.f32 %v754, %v2250
        %2252 = vmatprep.mubr.bf16.mxu0 0
        %2253 = vmatmul.mubr.bf16.gmra.mxu0 %v985
        %v2254 = vpop.f32.mrf.mxu0
        %v2255 = vadd.f32 %v750, %v2254
        %v2256 = vpop.f32.mrf.mxu0
        %v2257 = vadd.f32 %v754, %v2256
        %v2258 = vpop.f32.mrf.mxu0
        %v2259 = vadd.f32 %v750, %v2258
        %v2260 = vpop.f32.mrf.mxu0
        %v2261 = vadd.f32 %v754, %v2260
        %2262 = vmatprep.mubr.bf16.mxu0 0
        %2263 = vmatmul.mubr.bf16.gmra.mxu0 %v988
        %v2264 = vpop.f32.mrf.mxu0
        %v2265 = vadd.f32 %v750, %v2264
        %v2266 = vpop.f32.mrf.mxu0
        %v2267 = vadd.f32 %v754, %v2266
        %v2268 = vpop.f32.mrf.mxu0
        %v2269 = vadd.f32 %v750, %v2268
        %v2270 = vpop.f32.mrf.mxu0
        %v2271 = vadd.f32 %v754, %v2270
        %2272 = vmatprep.mubr.bf16.mxu0 0
        %2273 = vmatmul.mubr.bf16.gmra.mxu0 %v991
        %v2274 = vpop.f32.mrf.mxu0
        %v2275 = vadd.f32 %v750, %v2274
        %v2276 = vpop.f32.mrf.mxu0
        %v2277 = vadd.f32 %v754, %v2276
        %v2278 = vpop.f32.mrf.mxu0
        %v2279 = vadd.f32 %v750, %v2278
        %v2280 = vpop.f32.mrf.mxu0
        %v2281 = vadd.f32 %v754, %v2280
        %2282 = vmatprep.mubr.bf16.mxu0 0
        %2283 = vmatmul.mubr.bf16.gmra.mxu0 %v994
        %v2284 = vpop.f32.mrf.mxu0
        %v2285 = vadd.f32 %v750, %v2284
        %v2286 = vpop.f32.mrf.mxu0
        %v2287 = vadd.f32 %v754, %v2286
        %v2288 = vpop.f32.mrf.mxu0
        %v2289 = vadd.f32 %v750, %v2288
        %v2290 = vpop.f32.mrf.mxu0
        %v2291 = vadd.f32 %v754, %v2290
        %2292 = vmatprep.mubr.bf16.mxu0 0
        %2293 = vmatmul.mubr.bf16.gmra.mxu0 %v997
        %v2294 = vpop.f32.mrf.mxu0
        %v2295 = vadd.f32 %v750, %v2294
        %v2296 = vpop.f32.mrf.mxu0
        %v2297 = vadd.f32 %v754, %v2296
        %v2298 = vpop.f32.mrf.mxu0
        %v2299 = vadd.f32 %v750, %v2298
        %v2300 = vpop.f32.mrf.mxu0
        %v2301 = vadd.f32 %v754, %v2300
        %2302 = vmatprep.mubr.bf16.mxu0 0
        %2303 = vmatmul.mubr.bf16.gmra.mxu0 %v1000
        %v2304 = vpop.f32.mrf.mxu0
        %v2305 = vadd.f32 %v750, %v2304
        %v2306 = vpop.f32.mrf.mxu0
        %v2307 = vadd.f32 %v754, %v2306
        %v2308 = vpop.f32.mrf.mxu0
        %v2309 = vadd.f32 %v750, %v2308
        %v2310 = vpop.f32.mrf.mxu0
        %v2311 = vadd.f32 %v754, %v2310
        %2312 = vmatprep.mubr.bf16.mxu0 0
        %2313 = vmatmul.mubr.bf16.gmra.mxu0 %v1003
        %v2314 = vpop.f32.mrf.mxu0
        %v2315 = vadd.f32 %v750, %v2314
        %v2316 = vpop.f32.mrf.mxu0
        %v2317 = vadd.f32 %v754, %v2316
        %v2318 = vpop.f32.mrf.mxu0
        %v2319 = vadd.f32 %v750, %v2318
        %v2320 = vpop.f32.mrf.mxu0
        %v2321 = vadd.f32 %v754, %v2320
        %2322 = vmatprep.mubr.bf16.mxu0 0
        %2323 = vmatmul.mubr.bf16.gmra.mxu0 %v1006
        %v2324 = vpop.f32.mrf.mxu0
        %v2325 = vadd.f32 %v750, %v2324
        %v2326 = vpop.f32.mrf.mxu0
        %v2327 = vadd.f32 %v754, %v2326
        %v2328 = vpop.f32.mrf.mxu0
        %v2329 = vadd.f32 %v750, %v2328
        %v2330 = vpop.f32.mrf.mxu0
        %v2331 = vadd.f32 %v754, %v2330
        %2332 = vmatprep.mubr.bf16.mxu0 0
        %2333 = vmatmul.mubr.bf16.gmra.mxu0 %v1009
        %v2334 = vpop.f32.mrf.mxu0
        %v2335 = vadd.f32 %v750, %v2334
        %v2336 = vpop.f32.mrf.mxu0
        %v2337 = vadd.f32 %v754, %v2336
        %v2338 = vpop.f32.mrf.mxu0
        %v2339 = vadd.f32 %v750, %v2338
        %v2340 = vpop.f32.mrf.mxu0
        %v2341 = vadd.f32 %v754, %v2340
        %2342 = vmatprep.mubr.bf16.mxu0 0
        %2343 = vmatmul.mubr.bf16.gmra.mxu0 %v1012
        %v2344 = vpop.f32.mrf.mxu0
        %v2345 = vadd.f32 %v750, %v2344
        %v2346 = vpop.f32.mrf.mxu0
        %v2347 = vadd.f32 %v754, %v2346
        %v2348 = vpop.f32.mrf.mxu0
        %v2349 = vadd.f32 %v750, %v2348
        %v2350 = vpop.f32.mrf.mxu0
        %v2351 = vadd.f32 %v754, %v2350
        %2352 = vmatprep.mubr.bf16.mxu0 0
        %2353 = vmatmul.mubr.bf16.gmra.mxu0 %v1015
        %v2354 = vpop.f32.mrf.mxu0
        %v2355 = vadd.f32 %v750, %v2354
        %v2356 = vpop.f32.mrf.mxu0
        %v2357 = vadd.f32 %v754, %v2356
        %v2358 = vpop.f32.mrf.mxu0
        %v2359 = vadd.f32 %v750, %v2358
        %v2360 = vpop.f32.mrf.mxu0
        %v2361 = vadd.f32 %v754, %v2360
        %2362 = vmatprep.mubr.bf16.mxu0 0
        %2363 = vmatmul.mubr.bf16.gmra.mxu0 %v1018
        %v2364 = vpop.f32.mrf.mxu0
        %v2365 = vadd.f32 %v750, %v2364
        %v2366 = vpop.f32.mrf.mxu0
        %v2367 = vadd.f32 %v754, %v2366
        %v2368 = vpop.f32.mrf.mxu0
        %v2369 = vadd.f32 %v750, %v2368
        %v2370 = vpop.f32.mrf.mxu0
        %v2371 = vadd.f32 %v754, %v2370
        %2372 = vmatprep.mubr.bf16.mxu0 0
        %2373 = vmatmul.mubr.bf16.gmra.mxu0 %v1021
        %v2374 = vpop.f32.mrf.mxu0
        %v2375 = vadd.f32 %v750, %v2374
        %v2376 = vpop.f32.mrf.mxu0
        %v2377 = vadd.f32 %v754, %v2376
        %v2378 = vpop.f32.mrf.mxu0
        %v2379 = vadd.f32 %v750, %v2378
        %v2380 = vpop.f32.mrf.mxu0
        %v2381 = vadd.f32 %v754, %v2380
        %2382 = vmatprep.mubr.bf16.mxu0 0
        %2383 = vmatmul.mubr.bf16.gmra.mxu0 %v1024
        %v2384 = vpop.f32.mrf.mxu0
        %v2385 = vadd.f32 %v750, %v2384
        %v2386 = vpop.f32.mrf.mxu0
        %v2387 = vadd.f32 %v754, %v2386
        %v2388 = vpop.f32.mrf.mxu0
        %v2389 = vadd.f32 %v750, %v2388
        %v2390 = vpop.f32.mrf.mxu0
        %v2391 = vadd.f32 %v754, %v2390
        %2392 = vmatprep.mubr.bf16.mxu0 0
        %2393 = vmatmul.mubr.bf16.gmra.mxu0 %v1027
        %v2394 = vpop.f32.mrf.mxu0
        %v2395 = vadd.f32 %v750, %v2394
        %v2396 = vpop.f32.mrf.mxu0
        %v2397 = vadd.f32 %v754, %v2396
        %v2398 = vpop.f32.mrf.mxu0
        %v2399 = vadd.f32 %v750, %v2398
        %v2400 = vpop.f32.mrf.mxu0
        %v2401 = vadd.f32 %v754, %v2400
        %2402 = vmatprep.mubr.bf16.mxu0 0
        %2403 = vmatmul.mubr.bf16.gmra.mxu0 %v1030
        %v2404 = vpop.f32.mrf.mxu0
        %v2405 = vadd.f32 %v750, %v2404
        %v2406 = vpop.f32.mrf.mxu0
        %v2407 = vadd.f32 %v754, %v2406
        %v2408 = vpop.f32.mrf.mxu0
        %v2409 = vadd.f32 %v750, %v2408
        %v2410 = vpop.f32.mrf.mxu0
        %v2411 = vadd.f32 %v754, %v2410
        %2412 = vmatprep.mubr.bf16.mxu0 0
        %2413 = vmatmul.mubr.bf16.gmra.mxu0 %v1033
        %v2414 = vpop.f32.mrf.mxu0
        %v2415 = vadd.f32 %v750, %v2414
        %v2416 = vpop.f32.mrf.mxu0
        %v2417 = vadd.f32 %v754, %v2416
        %v2418 = vpop.f32.mrf.mxu0
        %v2419 = vadd.f32 %v750, %v2418
        %v2420 = vpop.f32.mrf.mxu0
        %v2421 = vadd.f32 %v754, %v2420
        %2422 = vmatprep.mubr.bf16.mxu0 0
        %2423 = vmatmul.mubr.bf16.gmra.mxu0 %v1036
        %v2424 = vpop.f32.mrf.mxu0
        %v2425 = vadd.f32 %v750, %v2424
        %v2426 = vpop.f32.mrf.mxu0
        %v2427 = vadd.f32 %v754, %v2426
        %v2428 = vpop.f32.mrf.mxu0
        %v2429 = vadd.f32 %v750, %v2428
        %v2430 = vpop.f32.mrf.mxu0
        %v2431 = vadd.f32 %v754, %v2430
        %2432 = vmatprep.mubr.bf16.mxu0 0
        %2433 = vmatmul.mubr.bf16.gmra.mxu0 %v1039
        %v2434 = vpop.f32.mrf.mxu0
        %v2435 = vadd.f32 %v750, %v2434
        %v2436 = vpop.f32.mrf.mxu0
        %v2437 = vadd.f32 %v754, %v2436
        %v2438 = vpop.f32.mrf.mxu0
        %v2439 = vadd.f32 %v750, %v2438
        %v2440 = vpop.f32.mrf.mxu0
        %v2441 = vadd.f32 %v754, %v2440
        %2442 = vmatprep.mubr.bf16.mxu0 0
        %2443 = vmatmul.mubr.bf16.gmra.mxu0 %v1042
        %v2444 = vpop.f32.mrf.mxu0
        %v2445 = vadd.f32 %v750, %v2444
        %v2446 = vpop.f32.mrf.mxu0
        %v2447 = vadd.f32 %v754, %v2446
        %v2448 = vpop.f32.mrf.mxu0
        %v2449 = vadd.f32 %v750, %v2448
        %v2450 = vpop.f32.mrf.mxu0
        %v2451 = vadd.f32 %v754, %v2450
        %2452 = vmatprep.mubr.bf16.mxu0 0
        %2453 = vmatmul.mubr.bf16.gmra.mxu0 %v1045
        %v2454 = vpop.f32.mrf.mxu0
        %v2455 = vadd.f32 %v750, %v2454
        %v2456 = vpop.f32.mrf.mxu0
        %v2457 = vadd.f32 %v754, %v2456
        %v2458 = vpop.f32.mrf.mxu0
        %v2459 = vadd.f32 %v750, %v2458
        %v2460 = vpop.f32.mrf.mxu0
        %v2461 = vadd.f32 %v754, %v2460
        %2462 = vmatprep.mubr.bf16.mxu0 0
        %2463 = vmatmul.mubr.bf16.gmra.mxu0 %v1048
        %v2464 = vpop.f32.mrf.mxu0
        %v2465 = vadd.f32 %v750, %v2464
        %v2466 = vpop.f32.mrf.mxu0
        %v2467 = vadd.f32 %v754, %v2466
        %v2468 = vpop.f32.mrf.mxu0
        %v2469 = vadd.f32 %v750, %v2468
        %v2470 = vpop.f32.mrf.mxu0
        %v2471 = vadd.f32 %v754, %v2470
        %2472 = vmatprep.mubr.bf16.mxu0 0
        %2473 = vmatmul.mubr.bf16.gmra.mxu0 %v1051
        %v2474 = vpop.f32.mrf.mxu0
        %v2475 = vadd.f32 %v750, %v2474
        %v2476 = vpop.f32.mrf.mxu0
        %v2477 = vadd.f32 %v754, %v2476
        %v2478 = vpop.f32.mrf.mxu0
        %v2479 = vadd.f32 %v750, %v2478
        %v2480 = vpop.f32.mrf.mxu0
        %v2481 = vadd.f32 %v754, %v2480
        %2482 = vmatprep.mubr.bf16.mxu0 0
        %2483 = vmatmul.mubr.bf16.gmra.mxu0 %v1054
        %v2484 = vpop.f32.mrf.mxu0
        %v2485 = vadd.f32 %v750, %v2484
        %v2486 = vpop.f32.mrf.mxu0
        %v2487 = vadd.f32 %v754, %v2486
        %v2488 = vpop.f32.mrf.mxu0
        %v2489 = vadd.f32 %v750, %v2488
        %v2490 = vpop.f32.mrf.mxu0
        %v2491 = vadd.f32 %v754, %v2490
        %2492 = vdwg.mxu0
        %v2493 = vmax.f32 %v1116, 0.0
        %v2494 = vmax.f32 %v1118, 0.0
        %v2495 = vmax.f32 %v1469, 0.0
        %v2496 = vmax.f32 %v1471, 0.0
        %v2497 = vmax.f32 %v1822, 0.0
        %v2498 = vmax.f32 %v1824, 0.0
        %v2499 = vmax.f32 %v2175, 0.0
        %v2500 = vmax.f32 %v2177, 0.0
        %v2501 = vmax.f32 %v1120, 0.0
        %v2502 = vmax.f32 %v1122, 0.0
        %v2503 = vmax.f32 %v1473, 0.0
        %v2504 = vmax.f32 %v1475, 0.0
        %v2505 = vmax.f32 %v1826, 0.0
        %v2506 = vmax.f32 %v1828, 0.0
        %v2507 = vmax.f32 %v2179, 0.0
        %v2508 = vmax.f32 %v2181, 0.0
        %v2509 = vmax.f32 %v1126, 0.0
        %v2510 = vmax.f32 %v1128, 0.0
        %v2511 = vmax.f32 %v1479, 0.0
        %v2512 = vmax.f32 %v1481, 0.0
        %v2513 = vmax.f32 %v1832, 0.0
        %v2514 = vmax.f32 %v1834, 0.0
        %v2515 = vmax.f32 %v2185, 0.0
        %v2516 = vmax.f32 %v2187, 0.0
        %v2517 = vmax.f32 %v1130, 0.0
        %v2518 = vmax.f32 %v1132, 0.0
        %v2519 = vmax.f32 %v1483, 0.0
        %v2520 = vmax.f32 %v1485, 0.0
        %v2521 = vmax.f32 %v1836, 0.0
        %v2522 = vmax.f32 %v1838, 0.0
        %v2523 = vmax.f32 %v2189, 0.0
        %v2524 = vmax.f32 %v2191, 0.0
        %v2525 = vmax.f32 %v1136, 0.0
        %v2526 = vmax.f32 %v1138, 0.0
        %v2527 = vmax.f32 %v1489, 0.0
        %v2528 = vmax.f32 %v1491, 0.0
        %v2529 = vmax.f32 %v1842, 0.0
        %v2530 = vmax.f32 %v1844, 0.0
        %v2531 = vmax.f32 %v2195, 0.0
        %v2532 = vmax.f32 %v2197, 0.0
        %v2533 = vmax.f32 %v1140, 0.0
        %v2534 = vmax.f32 %v1142, 0.0
        %v2535 = vmax.f32 %v1493, 0.0
        %v2536 = vmax.f32 %v1495, 0.0
        %v2537 = vmax.f32 %v1846, 0.0
        %v2538 = vmax.f32 %v1848, 0.0
        %v2539 = vmax.f32 %v2199, 0.0
        %v2540 = vmax.f32 %v2201, 0.0
        %v2541 = vmax.f32 %v1146, 0.0
        %v2542 = vmax.f32 %v1148, 0.0
        %v2543 = vmax.f32 %v1499, 0.0
        %v2544 = vmax.f32 %v1501, 0.0
        %v2545 = vmax.f32 %v1852, 0.0
        %v2546 = vmax.f32 %v1854, 0.0
        %v2547 = vmax.f32 %v2205, 0.0
        %v2548 = vmax.f32 %v2207, 0.0
        %v2549 = vmax.f32 %v1150, 0.0
        %v2550 = vmax.f32 %v1152, 0.0
        %v2551 = vmax.f32 %v1503, 0.0
        %v2552 = vmax.f32 %v1505, 0.0
        %v2553 = vmax.f32 %v1856, 0.0
        %v2554 = vmax.f32 %v1858, 0.0
        %v2555 = vmax.f32 %v2209, 0.0
        %v2556 = vmax.f32 %v2211, 0.0
        %v2557 = vmax.f32 %v1156, 0.0
        %v2558 = vmax.f32 %v1158, 0.0
        %v2559 = vmax.f32 %v1509, 0.0
        %v2560 = vmax.f32 %v1511, 0.0
        %v2561 = vmax.f32 %v1862, 0.0
        %v2562 = vmax.f32 %v1864, 0.0
        %v2563 = vmax.f32 %v2215, 0.0
        %v2564 = vmax.f32 %v2217, 0.0
        %v2565 = vmax.f32 %v1160, 0.0
        %v2566 = vmax.f32 %v1162, 0.0
        %v2567 = vmax.f32 %v1513, 0.0
        %v2568 = vmax.f32 %v1515, 0.0
        %v2569 = vmax.f32 %v1866, 0.0
        %v2570 = vmax.f32 %v1868, 0.0
        %v2571 = vmax.f32 %v2219, 0.0
        %v2572 = vmax.f32 %v2221, 0.0
        %v2573 = vmax.f32 %v1166, 0.0
        %v2574 = vmax.f32 %v1168, 0.0
        %v2575 = vmax.f32 %v1519, 0.0
        %v2576 = vmax.f32 %v1521, 0.0
        %v2577 = vmax.f32 %v1872, 0.0
        %v2578 = vmax.f32 %v1874, 0.0
        %v2579 = vmax.f32 %v2225, 0.0
        %v2580 = vmax.f32 %v2227, 0.0
        %v2581 = vmax.f32 %v1170, 0.0
        %v2582 = vmax.f32 %v1172, 0.0
        %v2583 = vmax.f32 %v1523, 0.0
        %v2584 = vmax.f32 %v1525, 0.0
        %v2585 = vmax.f32 %v1876, 0.0
        %v2586 = vmax.f32 %v1878, 0.0
        %v2587 = vmax.f32 %v2229, 0.0
        %v2588 = vmax.f32 %v2231, 0.0
        %v2589 = vmax.f32 %v1176, 0.0
        %v2590 = vmax.f32 %v1178, 0.0
        %v2591 = vmax.f32 %v1529, 0.0
        %v2592 = vmax.f32 %v1531, 0.0
        %v2593 = vmax.f32 %v1882, 0.0
        %v2594 = vmax.f32 %v1884, 0.0
        %v2595 = vmax.f32 %v2235, 0.0
        %v2596 = vmax.f32 %v2237, 0.0
        %v2597 = vmax.f32 %v1180, 0.0
        %v2598 = vmax.f32 %v1182, 0.0
        %v2599 = vmax.f32 %v1533, 0.0
        %v2600 = vmax.f32 %v1535, 0.0
        %v2601 = vmax.f32 %v1886, 0.0
        %v2602 = vmax.f32 %v1888, 0.0
        %v2603 = vmax.f32 %v2239, 0.0
        %v2604 = vmax.f32 %v2241, 0.0
        %v2605 = vmax.f32 %v1186, 0.0
        %v2606 = vmax.f32 %v1188, 0.0
        %v2607 = vmax.f32 %v1539, 0.0
        %v2608 = vmax.f32 %v1541, 0.0
        %v2609 = vmax.f32 %v1892, 0.0
        %v2610 = vmax.f32 %v1894, 0.0
        %v2611 = vmax.f32 %v2245, 0.0
        %v2612 = vmax.f32 %v2247, 0.0
        %v2613 = vmax.f32 %v1190, 0.0
        %v2614 = vmax.f32 %v1192, 0.0
        %v2615 = vmax.f32 %v1543, 0.0
        %v2616 = vmax.f32 %v1545, 0.0
        %v2617 = vmax.f32 %v1896, 0.0
        %v2618 = vmax.f32 %v1898, 0.0
        %v2619 = vmax.f32 %v2249, 0.0
        %v2620 = vmax.f32 %v2251, 0.0
        %v2621 = vmax.f32 %v1196, 0.0
        %v2622 = vmax.f32 %v1198, 0.0
        %v2623 = vmax.f32 %v1549, 0.0
        %v2624 = vmax.f32 %v1551, 0.0
        %v2625 = vmax.f32 %v1902, 0.0
        %v2626 = vmax.f32 %v1904, 0.0
        %v2627 = vmax.f32 %v2255, 0.0
        %v2628 = vmax.f32 %v2257, 0.0
        %v2629 = vmax.f32 %v1200, 0.0
        %v2630 = vmax.f32 %v1202, 0.0
        %v2631 = vmax.f32 %v1553, 0.0
        %v2632 = vmax.f32 %v1555, 0.0
        %v2633 = vmax.f32 %v1906, 0.0
        %v2634 = vmax.f32 %v1908, 0.0
        %v2635 = vmax.f32 %v2259, 0.0
        %v2636 = vmax.f32 %v2261, 0.0
        %v2637 = vmax.f32 %v1206, 0.0
        %v2638 = vmax.f32 %v1208, 0.0
        %v2639 = vmax.f32 %v1559, 0.0
        %v2640 = vmax.f32 %v1561, 0.0
        %v2641 = vmax.f32 %v1912, 0.0
        %v2642 = vmax.f32 %v1914, 0.0
        %v2643 = vmax.f32 %v2265, 0.0
        %v2644 = vmax.f32 %v2267, 0.0
        %v2645 = vmax.f32 %v1210, 0.0
        %v2646 = vmax.f32 %v1212, 0.0
        %v2647 = vmax.f32 %v1563, 0.0
        %v2648 = vmax.f32 %v1565, 0.0
        %v2649 = vmax.f32 %v1916, 0.0
        %v2650 = vmax.f32 %v1918, 0.0
        %v2651 = vmax.f32 %v2269, 0.0
        %v2652 = vmax.f32 %v2271, 0.0
        %v2653 = vmax.f32 %v1216, 0.0
        %v2654 = vmax.f32 %v1218, 0.0
        %v2655 = vmax.f32 %v1569, 0.0
        %v2656 = vmax.f32 %v1571, 0.0
        %v2657 = vmax.f32 %v1922, 0.0
        %v2658 = vmax.f32 %v1924, 0.0
        %v2659 = vmax.f32 %v2275, 0.0
        %v2660 = vmax.f32 %v2277, 0.0
        %v2661 = vmax.f32 %v1220, 0.0
        %v2662 = vmax.f32 %v1222, 0.0
        %v2663 = vmax.f32 %v1573, 0.0
        %v2664 = vmax.f32 %v1575, 0.0
        %v2665 = vmax.f32 %v1926, 0.0
        %v2666 = vmax.f32 %v1928, 0.0
        %v2667 = vmax.f32 %v2279, 0.0
        %v2668 = vmax.f32 %v2281, 0.0
        %v2669 = vmax.f32 %v1226, 0.0
        %v2670 = vmax.f32 %v1228, 0.0
        %v2671 = vmax.f32 %v1579, 0.0
        %v2672 = vmax.f32 %v1581, 0.0
        %v2673 = vmax.f32 %v1932, 0.0
        %v2674 = vmax.f32 %v1934, 0.0
        %v2675 = vmax.f32 %v2285, 0.0
        %v2676 = vmax.f32 %v2287, 0.0
        %v2677 = vmax.f32 %v1230, 0.0
        %v2678 = vmax.f32 %v1232, 0.0
        %v2679 = vmax.f32 %v1583, 0.0
        %v2680 = vmax.f32 %v1585, 0.0
        %v2681 = vmax.f32 %v1936, 0.0
        %v2682 = vmax.f32 %v1938, 0.0
        %v2683 = vmax.f32 %v2289, 0.0
        %v2684 = vmax.f32 %v2291, 0.0
        %v2685 = vmax.f32 %v1236, 0.0
        %v2686 = vmax.f32 %v1238, 0.0
        %v2687 = vmax.f32 %v1589, 0.0
        %v2688 = vmax.f32 %v1591, 0.0
        %v2689 = vmax.f32 %v1942, 0.0
        %v2690 = vmax.f32 %v1944, 0.0
        %v2691 = vmax.f32 %v2295, 0.0
        %v2692 = vmax.f32 %v2297, 0.0
        %v2693 = vmax.f32 %v1240, 0.0
        %v2694 = vmax.f32 %v1242, 0.0
        %v2695 = vmax.f32 %v1593, 0.0
        %v2696 = vmax.f32 %v1595, 0.0
        %v2697 = vmax.f32 %v1946, 0.0
        %v2698 = vmax.f32 %v1948, 0.0
        %v2699 = vmax.f32 %v2299, 0.0
        %v2700 = vmax.f32 %v2301, 0.0
        %v2701 = vmax.f32 %v1246, 0.0
        %v2702 = vmax.f32 %v1248, 0.0
        %v2703 = vmax.f32 %v1599, 0.0
        %v2704 = vmax.f32 %v1601, 0.0
        %v2705 = vmax.f32 %v1952, 0.0
        %v2706 = vmax.f32 %v1954, 0.0
        %v2707 = vmax.f32 %v2305, 0.0
        %v2708 = vmax.f32 %v2307, 0.0
        %v2709 = vmax.f32 %v1250, 0.0
        %v2710 = vmax.f32 %v1252, 0.0
        %v2711 = vmax.f32 %v1603, 0.0
        %v2712 = vmax.f32 %v1605, 0.0
        %v2713 = vmax.f32 %v1956, 0.0
        %v2714 = vmax.f32 %v1958, 0.0
        %v2715 = vmax.f32 %v2309, 0.0
        %v2716 = vmax.f32 %v2311, 0.0
        %v2717 = vmax.f32 %v1256, 0.0
        %v2718 = vmax.f32 %v1258, 0.0
        %v2719 = vmax.f32 %v1609, 0.0
        %v2720 = vmax.f32 %v1611, 0.0
        %v2721 = vmax.f32 %v1962, 0.0
        %v2722 = vmax.f32 %v1964, 0.0
        %v2723 = vmax.f32 %v2315, 0.0
        %v2724 = vmax.f32 %v2317, 0.0
        %v2725 = vmax.f32 %v1260, 0.0
        %v2726 = vmax.f32 %v1262, 0.0
        %v2727 = vmax.f32 %v1613, 0.0
        %v2728 = vmax.f32 %v1615, 0.0
        %v2729 = vmax.f32 %v1966, 0.0
        %v2730 = vmax.f32 %v1968, 0.0
        %v2731 = vmax.f32 %v2319, 0.0
        %v2732 = vmax.f32 %v2321, 0.0
        %v2733 = vmax.f32 %v1266, 0.0
        %v2734 = vmax.f32 %v1268, 0.0
        %v2735 = vmax.f32 %v1619, 0.0
        %v2736 = vmax.f32 %v1621, 0.0
        %v2737 = vmax.f32 %v1972, 0.0
        %v2738 = vmax.f32 %v1974, 0.0
        %v2739 = vmax.f32 %v2325, 0.0
        %v2740 = vmax.f32 %v2327, 0.0
        %v2741 = vmax.f32 %v1270, 0.0
        %v2742 = vmax.f32 %v1272, 0.0
        %v2743 = vmax.f32 %v1623, 0.0
        %v2744 = vmax.f32 %v1625, 0.0
        %v2745 = vmax.f32 %v1976, 0.0
        %v2746 = vmax.f32 %v1978, 0.0
        %v2747 = vmax.f32 %v2329, 0.0
        %v2748 = vmax.f32 %v2331, 0.0
        %v2749 = vmax.f32 %v1276, 0.0
        %v2750 = vmax.f32 %v1278, 0.0
        %v2751 = vmax.f32 %v1629, 0.0
        %v2752 = vmax.f32 %v1631, 0.0
        %v2753 = vmax.f32 %v1982, 0.0
        %v2754 = vmax.f32 %v1984, 0.0
        %v2755 = vmax.f32 %v2335, 0.0
        %v2756 = vmax.f32 %v2337, 0.0
        %v2757 = vmax.f32 %v1280, 0.0
        %v2758 = vmax.f32 %v1282, 0.0
        %v2759 = vmax.f32 %v1633, 0.0
        %v2760 = vmax.f32 %v1635, 0.0
        %v2761 = vmax.f32 %v1986, 0.0
        %v2762 = vmax.f32 %v1988, 0.0
        %v2763 = vmax.f32 %v2339, 0.0
        %v2764 = vmax.f32 %v2341, 0.0
        %v2765 = vmax.f32 %v1286, 0.0
        %v2766 = vmax.f32 %v1288, 0.0
        %v2767 = vmax.f32 %v1639, 0.0
        %v2768 = vmax.f32 %v1641, 0.0
        %v2769 = vmax.f32 %v1992, 0.0
        %v2770 = vmax.f32 %v1994, 0.0
        %v2771 = vmax.f32 %v2345, 0.0
        %v2772 = vmax.f32 %v2347, 0.0
        %v2773 = vmax.f32 %v1290, 0.0
        %v2774 = vmax.f32 %v1292, 0.0
        %v2775 = vmax.f32 %v1643, 0.0
        %v2776 = vmax.f32 %v1645, 0.0
        %v2777 = vmax.f32 %v1996, 0.0
        %v2778 = vmax.f32 %v1998, 0.0
        %v2779 = vmax.f32 %v2349, 0.0
        %v2780 = vmax.f32 %v2351, 0.0
        %v2781 = vmax.f32 %v1296, 0.0
        %v2782 = vmax.f32 %v1298, 0.0
        %v2783 = vmax.f32 %v1649, 0.0
        %v2784 = vmax.f32 %v1651, 0.0
        %v2785 = vmax.f32 %v2002, 0.0
        %v2786 = vmax.f32 %v2004, 0.0
        %v2787 = vmax.f32 %v2355, 0.0
        %v2788 = vmax.f32 %v2357, 0.0
        %v2789 = vmax.f32 %v1300, 0.0
        %v2790 = vmax.f32 %v1302, 0.0
        %v2791 = vmax.f32 %v1653, 0.0
        %v2792 = vmax.f32 %v1655, 0.0
        %v2793 = vmax.f32 %v2006, 0.0
        %v2794 = vmax.f32 %v2008, 0.0
        %v2795 = vmax.f32 %v2359, 0.0
        %v2796 = vmax.f32 %v2361, 0.0
        %v2797 = vmax.f32 %v1306, 0.0
        %v2798 = vmax.f32 %v1308, 0.0
        %v2799 = vmax.f32 %v1659, 0.0
        %v2800 = vmax.f32 %v1661, 0.0
        %v2801 = vmax.f32 %v2012, 0.0
        %v2802 = vmax.f32 %v2014, 0.0
        %v2803 = vmax.f32 %v2365, 0.0
        %v2804 = vmax.f32 %v2367, 0.0
        %v2805 = vmax.f32 %v1310, 0.0
        %v2806 = vmax.f32 %v1312, 0.0
        %v2807 = vmax.f32 %v1663, 0.0
        %v2808 = vmax.f32 %v1665, 0.0
        %v2809 = vmax.f32 %v2016, 0.0
        %v2810 = vmax.f32 %v2018, 0.0
        %v2811 = vmax.f32 %v2369, 0.0
        %v2812 = vmax.f32 %v2371, 0.0
        %v2813 = vmax.f32 %v1316, 0.0
        %v2814 = vmax.f32 %v1318, 0.0
        %v2815 = vmax.f32 %v1669, 0.0
        %v2816 = vmax.f32 %v1671, 0.0
        %v2817 = vmax.f32 %v2022, 0.0
        %v2818 = vmax.f32 %v2024, 0.0
        %v2819 = vmax.f32 %v2375, 0.0
        %v2820 = vmax.f32 %v2377, 0.0
        %v2821 = vmax.f32 %v1320, 0.0
        %v2822 = vmax.f32 %v1322, 0.0
        %v2823 = vmax.f32 %v1673, 0.0
        %v2824 = vmax.f32 %v1675, 0.0
        %v2825 = vmax.f32 %v2026, 0.0
        %v2826 = vmax.f32 %v2028, 0.0
        %v2827 = vmax.f32 %v2379, 0.0
        %v2828 = vmax.f32 %v2381, 0.0
        %v2829 = vmax.f32 %v1326, 0.0
        %v2830 = vmax.f32 %v1328, 0.0
        %v2831 = vmax.f32 %v1679, 0.0
        %v2832 = vmax.f32 %v1681, 0.0
        %v2833 = vmax.f32 %v2032, 0.0
        %v2834 = vmax.f32 %v2034, 0.0
        %v2835 = vmax.f32 %v2385, 0.0
        %v2836 = vmax.f32 %v2387, 0.0
        %v2837 = vmax.f32 %v1330, 0.0
        %v2838 = vmax.f32 %v1332, 0.0
        %v2839 = vmax.f32 %v1683, 0.0
        %v2840 = vmax.f32 %v1685, 0.0
        %v2841 = vmax.f32 %v2036, 0.0
        %v2842 = vmax.f32 %v2038, 0.0
        %v2843 = vmax.f32 %v2389, 0.0
        %v2844 = vmax.f32 %v2391, 0.0
        %v2845 = vmax.f32 %v1336, 0.0
        %v2846 = vmax.f32 %v1338, 0.0
        %v2847 = vmax.f32 %v1689, 0.0
        %v2848 = vmax.f32 %v1691, 0.0
        %v2849 = vmax.f32 %v2042, 0.0
        %v2850 = vmax.f32 %v2044, 0.0
        %v2851 = vmax.f32 %v2395, 0.0
        %v2852 = vmax.f32 %v2397, 0.0
        %v2853 = vmax.f32 %v1340, 0.0
        %v2854 = vmax.f32 %v1342, 0.0
        %v2855 = vmax.f32 %v1693, 0.0
        %v2856 = vmax.f32 %v1695, 0.0
        %v2857 = vmax.f32 %v2046, 0.0
        %v2858 = vmax.f32 %v2048, 0.0
        %v2859 = vmax.f32 %v2399, 0.0
        %v2860 = vmax.f32 %v2401, 0.0
        %v2861 = vmax.f32 %v1346, 0.0
        %v2862 = vmax.f32 %v1348, 0.0
        %v2863 = vmax.f32 %v1699, 0.0
        %v2864 = vmax.f32 %v1701, 0.0
        %v2865 = vmax.f32 %v2052, 0.0
        %v2866 = vmax.f32 %v2054, 0.0
        %v2867 = vmax.f32 %v2405, 0.0
        %v2868 = vmax.f32 %v2407, 0.0
        %v2869 = vmax.f32 %v1350, 0.0
        %v2870 = vmax.f32 %v1352, 0.0
        %v2871 = vmax.f32 %v1703, 0.0
        %v2872 = vmax.f32 %v1705, 0.0
        %v2873 = vmax.f32 %v2056, 0.0
        %v2874 = vmax.f32 %v2058, 0.0
        %v2875 = vmax.f32 %v2409, 0.0
        %v2876 = vmax.f32 %v2411, 0.0
        %v2877 = vmax.f32 %v1356, 0.0
        %v2878 = vmax.f32 %v1358, 0.0
        %v2879 = vmax.f32 %v1709, 0.0
        %v2880 = vmax.f32 %v1711, 0.0
        %v2881 = vmax.f32 %v2062, 0.0
        %v2882 = vmax.f32 %v2064, 0.0
        %v2883 = vmax.f32 %v2415, 0.0
        %v2884 = vmax.f32 %v2417, 0.0
        %v2885 = vmax.f32 %v1360, 0.0
        %v2886 = vmax.f32 %v1362, 0.0
        %v2887 = vmax.f32 %v1713, 0.0
        %v2888 = vmax.f32 %v1715, 0.0
        %v2889 = vmax.f32 %v2066, 0.0
        %v2890 = vmax.f32 %v2068, 0.0
        %v2891 = vmax.f32 %v2419, 0.0
        %v2892 = vmax.f32 %v2421, 0.0
        %v2893 = vmax.f32 %v1366, 0.0
        %v2894 = vmax.f32 %v1368, 0.0
        %v2895 = vmax.f32 %v1719, 0.0
        %v2896 = vmax.f32 %v1721, 0.0
        %v2897 = vmax.f32 %v2072, 0.0
        %v2898 = vmax.f32 %v2074, 0.0
        %v2899 = vmax.f32 %v2425, 0.0
        %v2900 = vmax.f32 %v2427, 0.0
        %v2901 = vmax.f32 %v1370, 0.0
        %v2902 = vmax.f32 %v1372, 0.0
        %v2903 = vmax.f32 %v1723, 0.0
        %v2904 = vmax.f32 %v1725, 0.0
        %v2905 = vmax.f32 %v2076, 0.0
        %v2906 = vmax.f32 %v2078, 0.0
        %v2907 = vmax.f32 %v2429, 0.0
        %v2908 = vmax.f32 %v2431, 0.0
        %v2909 = vmax.f32 %v1376, 0.0
        %v2910 = vmax.f32 %v1378, 0.0
        %v2911 = vmax.f32 %v1729, 0.0
        %v2912 = vmax.f32 %v1731, 0.0
        %v2913 = vmax.f32 %v2082, 0.0
        %v2914 = vmax.f32 %v2084, 0.0
        %v2915 = vmax.f32 %v2435, 0.0
        %v2916 = vmax.f32 %v2437, 0.0
        %v2917 = vmax.f32 %v1380, 0.0
        %v2918 = vmax.f32 %v1382, 0.0
        %v2919 = vmax.f32 %v1733, 0.0
        %v2920 = vmax.f32 %v1735, 0.0
        %v2921 = vmax.f32 %v2086, 0.0
        %v2922 = vmax.f32 %v2088, 0.0
        %v2923 = vmax.f32 %v2439, 0.0
        %v2924 = vmax.f32 %v2441, 0.0
        %v2925 = vmax.f32 %v1386, 0.0
        %v2926 = vmax.f32 %v1388, 0.0
        %v2927 = vmax.f32 %v1739, 0.0
        %v2928 = vmax.f32 %v1741, 0.0
        %v2929 = vmax.f32 %v2092, 0.0
        %v2930 = vmax.f32 %v2094, 0.0
        %v2931 = vmax.f32 %v2445, 0.0
        %v2932 = vmax.f32 %v2447, 0.0
        %v2933 = vmax.f32 %v1390, 0.0
        %v2934 = vmax.f32 %v1392, 0.0
        %v2935 = vmax.f32 %v1743, 0.0
        %v2936 = vmax.f32 %v1745, 0.0
        %v2937 = vmax.f32 %v2096, 0.0
        %v2938 = vmax.f32 %v2098, 0.0
        %v2939 = vmax.f32 %v2449, 0.0
        %v2940 = vmax.f32 %v2451, 0.0
        %v2941 = vmax.f32 %v1396, 0.0
        %v2942 = vmax.f32 %v1398, 0.0
        %v2943 = vmax.f32 %v1749, 0.0
        %v2944 = vmax.f32 %v1751, 0.0
        %v2945 = vmax.f32 %v2102, 0.0
        %v2946 = vmax.f32 %v2104, 0.0
        %v2947 = vmax.f32 %v2455, 0.0
        %v2948 = vmax.f32 %v2457, 0.0
        %v2949 = vmax.f32 %v1400, 0.0
        %v2950 = vmax.f32 %v1402, 0.0
        %v2951 = vmax.f32 %v1753, 0.0
        %v2952 = vmax.f32 %v1755, 0.0
        %v2953 = vmax.f32 %v2106, 0.0
        %v2954 = vmax.f32 %v2108, 0.0
        %v2955 = vmax.f32 %v2459, 0.0
        %v2956 = vmax.f32 %v2461, 0.0
        %v2957 = vmax.f32 %v1406, 0.0
        %v2958 = vmax.f32 %v1408, 0.0
        %v2959 = vmax.f32 %v1759, 0.0
        %v2960 = vmax.f32 %v1761, 0.0
        %v2961 = vmax.f32 %v2112, 0.0
        %v2962 = vmax.f32 %v2114, 0.0
        %v2963 = vmax.f32 %v2465, 0.0
        %v2964 = vmax.f32 %v2467, 0.0
        %v2965 = vmax.f32 %v1410, 0.0
        %v2966 = vmax.f32 %v1412, 0.0
        %v2967 = vmax.f32 %v1763, 0.0
        %v2968 = vmax.f32 %v1765, 0.0
        %v2969 = vmax.f32 %v2116, 0.0
        %v2970 = vmax.f32 %v2118, 0.0
        %v2971 = vmax.f32 %v2469, 0.0
        %v2972 = vmax.f32 %v2471, 0.0
        %v2973 = vmax.f32 %v1416, 0.0
        %v2974 = vmax.f32 %v1418, 0.0
        %v2975 = vmax.f32 %v1769, 0.0
        %v2976 = vmax.f32 %v1771, 0.0
        %v2977 = vmax.f32 %v2122, 0.0
        %v2978 = vmax.f32 %v2124, 0.0
        %v2979 = vmax.f32 %v2475, 0.0
        %v2980 = vmax.f32 %v2477, 0.0
        %v2981 = vmax.f32 %v1420, 0.0
        %v2982 = vmax.f32 %v1422, 0.0
        %v2983 = vmax.f32 %v1773, 0.0
        %v2984 = vmax.f32 %v1775, 0.0
        %v2985 = vmax.f32 %v2126, 0.0
        %v2986 = vmax.f32 %v2128, 0.0
        %v2987 = vmax.f32 %v2479, 0.0
        %v2988 = vmax.f32 %v2481, 0.0
        %v2989 = vmax.f32 %v1426, 0.0
        %v2990 = vmax.f32 %v1428, 0.0
        %v2991 = vmax.f32 %v1779, 0.0
        %v2992 = vmax.f32 %v1781, 0.0
        %v2993 = vmax.f32 %v2132, 0.0
        %v2994 = vmax.f32 %v2134, 0.0
        %v2995 = vmax.f32 %v2485, 0.0
        %v2996 = vmax.f32 %v2487, 0.0
        %v2997 = vmax.f32 %v1430, 0.0
        %v2998 = vmax.f32 %v1432, 0.0
        %v2999 = vmax.f32 %v1783, 0.0
        %v3000 = vmax.f32 %v1785, 0.0
        %v3001 = vmax.f32 %v2136, 0.0
        %v3002 = vmax.f32 %v2138, 0.0
        %v3003 = vmax.f32 %v2489, 0.0
        %v3004 = vmax.f32 %v2491, 0.0
        %v3005 = vld [vmem:[#allocation2] sm:$0xff]
        %v3006 = vld [vmem:[#allocation2 + $0x8] sm:$0xff]
        %v3007 = vld [vmem:[#allocation2 + $0x10] sm:$0xff]
        %v3008 = vld [vmem:[#allocation2 + $0x18] sm:$0xff]
        %v3009 = vadd.f32 %v2493, %v2501
        %v3010 = vadd.f32 %v3009, %v2509
        %v3011 = vadd.f32 %v3010, %v2517
        %v3012 = vadd.f32 %v3011, %v2525
        %v3013 = vadd.f32 %v3012, %v2533
        %v3014 = vadd.f32 %v3013, %v2541
        %v3015 = vadd.f32 %v3014, %v2549
        %v3016 = vadd.f32 %v3015, %v2557
        %v3017 = vadd.f32 %v3016, %v2565
        %v3018 = vadd.f32 %v3017, %v2573
        %v3019 = vadd.f32 %v3018, %v2581
        %v3020 = vadd.f32 %v3019, %v2589
        %v3021 = vadd.f32 %v3020, %v2597
        %v3022 = vadd.f32 %v3021, %v2605
        %v3023 = vadd.f32 %v3022, %v2613
        %v3024 = vrot.slane %v3023, 4
        %v3025 = vadd.f32 %v3023, %v3024
        %v3026 = vrot.slane %v3025, 2
        %v3027 = vadd.f32 %v3025, %v3026
        %v3028 = vrot.slane %v3027, 1
        %v3029 = vadd.f32 %v3027, %v3028
        %v3030 = vadd.f32 %v2494, %v2502
        %v3031 = vadd.f32 %v3030, %v2510
        %v3032 = vadd.f32 %v3031, %v2518
        %v3033 = vadd.f32 %v3032, %v2526
        %v3034 = vadd.f32 %v3033, %v2534
        %v3035 = vadd.f32 %v3034, %v2542
        %v3036 = vadd.f32 %v3035, %v2550
        %v3037 = vadd.f32 %v3036, %v2558
        %v3038 = vadd.f32 %v3037, %v2566
        %v3039 = vadd.f32 %v3038, %v2574
        %v3040 = vadd.f32 %v3039, %v2582
        %v3041 = vadd.f32 %v3040, %v2590
        %v3042 = vadd.f32 %v3041, %v2598
        %v3043 = vadd.f32 %v3042, %v2606
        %v3044 = vadd.f32 %v3043, %v2614
        %v3045 = vrot.slane %v3044, 4
        %v3046 = vadd.f32 %v3044, %v3045
        %v3047 = vrot.slane %v3046, 2
        %v3048 = vadd.f32 %v3046, %v3047
        %v3049 = vrot.slane %v3048, 1
        %v3050 = vadd.f32 %v3048, %v3049
        %v3051 = vadd.f32 %v2495, %v2503
        %v3052 = vadd.f32 %v3051, %v2511
        %v3053 = vadd.f32 %v3052, %v2519
        %v3054 = vadd.f32 %v3053, %v2527
        %v3055 = vadd.f32 %v3054, %v2535
        %v3056 = vadd.f32 %v3055, %v2543
        %v3057 = vadd.f32 %v3056, %v2551
        %v3058 = vadd.f32 %v3057, %v2559
        %v3059 = vadd.f32 %v3058, %v2567
        %v3060 = vadd.f32 %v3059, %v2575
        %v3061 = vadd.f32 %v3060, %v2583
        %v3062 = vadd.f32 %v3061, %v2591
        %v3063 = vadd.f32 %v3062, %v2599
        %v3064 = vadd.f32 %v3063, %v2607
        %v3065 = vadd.f32 %v3064, %v2615
        %v3066 = vrot.slane %v3065, 4
        %v3067 = vadd.f32 %v3065, %v3066
        %v3068 = vrot.slane %v3067, 2
        %v3069 = vadd.f32 %v3067, %v3068
        %v3070 = vrot.slane %v3069, 1
        %v3071 = vadd.f32 %v3069, %v3070
        %v3072 = vadd.f32 %v2496, %v2504
        %v3073 = vadd.f32 %v3072, %v2512
        %v3074 = vadd.f32 %v3073, %v2520
        %v3075 = vadd.f32 %v3074, %v2528
        %v3076 = vadd.f32 %v3075, %v2536
        %v3077 = vadd.f32 %v3076, %v2544
        %v3078 = vadd.f32 %v3077, %v2552
        %v3079 = vadd.f32 %v3078, %v2560
        %v3080 = vadd.f32 %v3079, %v2568
        %v3081 = vadd.f32 %v3080, %v2576
        %v3082 = vadd.f32 %v3081, %v2584
        %v3083 = vadd.f32 %v3082, %v2592
        %v3084 = vadd.f32 %v3083, %v2600
        %v3085 = vadd.f32 %v3084, %v2608
        %v3086 = vadd.f32 %v3085, %v2616
        %v3087 = vrot.slane %v3086, 4
        %v3088 = vadd.f32 %v3086, %v3087
        %v3089 = vrot.slane %v3088, 2
        %v3090 = vadd.f32 %v3088, %v3089
        %v3091 = vrot.slane %v3090, 1
        %v3092 = vadd.f32 %v3090, %v3091
        %v3093 = vadd.f32 %v2497, %v2505
        %v3094 = vadd.f32 %v3093, %v2513
        %v3095 = vadd.f32 %v3094, %v2521
        %v3096 = vadd.f32 %v3095, %v2529
        %v3097 = vadd.f32 %v3096, %v2537
        %v3098 = vadd.f32 %v3097, %v2545
        %v3099 = vadd.f32 %v3098, %v2553
        %v3100 = vadd.f32 %v3099, %v2561
        %v3101 = vadd.f32 %v3100, %v2569
        %v3102 = vadd.f32 %v3101, %v2577
        %v3103 = vadd.f32 %v3102, %v2585
        %v3104 = vadd.f32 %v3103, %v2593
        %v3105 = vadd.f32 %v3104, %v2601
        %v3106 = vadd.f32 %v3105, %v2609
        %v3107 = vadd.f32 %v3106, %v2617
        %v3108 = vrot.slane %v3107, 4
        %v3109 = vadd.f32 %v3107, %v3108
        %v3110 = vrot.slane %v3109, 2
        %v3111 = vadd.f32 %v3109, %v3110
        %v3112 = vrot.slane %v3111, 1
        %v3113 = vadd.f32 %v3111, %v3112
        %v3114 = vadd.f32 %v2498, %v2506
        %v3115 = vadd.f32 %v3114, %v2514
        %v3116 = vadd.f32 %v3115, %v2522
        %v3117 = vadd.f32 %v3116, %v2530
        %v3118 = vadd.f32 %v3117, %v2538
        %v3119 = vadd.f32 %v3118, %v2546
        %v3120 = vadd.f32 %v3119, %v2554
        %v3121 = vadd.f32 %v3120, %v2562
        %v3122 = vadd.f32 %v3121, %v2570
        %v3123 = vadd.f32 %v3122, %v2578
        %v3124 = vadd.f32 %v3123, %v2586
        %v3125 = vadd.f32 %v3124, %v2594
        %v3126 = vadd.f32 %v3125, %v2602
        %v3127 = vadd.f32 %v3126, %v2610
        %v3128 = vadd.f32 %v3127, %v2618
        %v3129 = vrot.slane %v3128, 4
        %v3130 = vadd.f32 %v3128, %v3129
        %v3131 = vrot.slane %v3130, 2
        %v3132 = vadd.f32 %v3130, %v3131
        %v3133 = vrot.slane %v3132, 1
        %v3134 = vadd.f32 %v3132, %v3133
        %v3135 = vadd.f32 %v2499, %v2507
        %v3136 = vadd.f32 %v3135, %v2515
        %v3137 = vadd.f32 %v3136, %v2523
        %v3138 = vadd.f32 %v3137, %v2531
        %v3139 = vadd.f32 %v3138, %v2539
        %v3140 = vadd.f32 %v3139, %v2547
        %v3141 = vadd.f32 %v3140, %v2555
        %v3142 = vadd.f32 %v3141, %v2563
        %v3143 = vadd.f32 %v3142, %v2571
        %v3144 = vadd.f32 %v3143, %v2579
        %v3145 = vadd.f32 %v3144, %v2587
        %v3146 = vadd.f32 %v3145, %v2595
        %v3147 = vadd.f32 %v3146, %v2603
        %v3148 = vadd.f32 %v3147, %v2611
        %v3149 = vadd.f32 %v3148, %v2619
        %v3150 = vrot.slane %v3149, 4
        %v3151 = vadd.f32 %v3149, %v3150
        %v3152 = vrot.slane %v3151, 2
        %v3153 = vadd.f32 %v3151, %v3152
        %v3154 = vrot.slane %v3153, 1
        %v3155 = vadd.f32 %v3153, %v3154
        %v3156 = vadd.f32 %v2500, %v2508
        %v3157 = vadd.f32 %v3156, %v2516
        %v3158 = vadd.f32 %v3157, %v2524
        %v3159 = vadd.f32 %v3158, %v2532
        %v3160 = vadd.f32 %v3159, %v2540
        %v3161 = vadd.f32 %v3160, %v2548
        %v3162 = vadd.f32 %v3161, %v2556
        %v3163 = vadd.f32 %v3162, %v2564
        %v3164 = vadd.f32 %v3163, %v2572
        %v3165 = vadd.f32 %v3164, %v2580
        %v3166 = vadd.f32 %v3165, %v2588
        %v3167 = vadd.f32 %v3166, %v2596
        %v3168 = vadd.f32 %v3167, %v2604
        %v3169 = vadd.f32 %v3168, %v2612
        %v3170 = vadd.f32 %v3169, %v2620
        %v3171 = vrot.slane %v3170, 4
        %v3172 = vadd.f32 %v3170, %v3171
        %v3173 = vrot.slane %v3172, 2
        %v3174 = vadd.f32 %v3172, %v3173
        %v3175 = vrot.slane %v3174, 1
        %v3176 = vadd.f32 %v3174, %v3175
        %v3177 = vadd.f32 %v2621, %v2629
        %v3178 = vadd.f32 %v3177, %v2637
        %v3179 = vadd.f32 %v3178, %v2645
        %v3180 = vadd.f32 %v3179, %v2653
        %v3181 = vadd.f32 %v3180, %v2661
        %v3182 = vadd.f32 %v3181, %v2669
        %v3183 = vadd.f32 %v3182, %v2677
        %v3184 = vadd.f32 %v3183, %v2685
        %v3185 = vadd.f32 %v3184, %v2693
        %v3186 = vadd.f32 %v3185, %v2701
        %v3187 = vadd.f32 %v3186, %v2709
        %v3188 = vadd.f32 %v3187, %v2717
        %v3189 = vadd.f32 %v3188, %v2725
        %v3190 = vadd.f32 %v3189, %v2733
        %v3191 = vadd.f32 %v3190, %v2741
        %v3192 = vrot.slane %v3191, 4
        %v3193 = vadd.f32 %v3191, %v3192
        %v3194 = vrot.slane %v3193, 2
        %v3195 = vadd.f32 %v3193, %v3194
        %v3196 = vrot.slane %v3195, 1
        %v3197 = vadd.f32 %v3195, %v3196
        %v3198 = vadd.f32 %v2622, %v2630
        %v3199 = vadd.f32 %v3198, %v2638
        %v3200 = vadd.f32 %v3199, %v2646
        %v3201 = vadd.f32 %v3200, %v2654
        %v3202 = vadd.f32 %v3201, %v2662
        %v3203 = vadd.f32 %v3202, %v2670
        %v3204 = vadd.f32 %v3203, %v2678
        %v3205 = vadd.f32 %v3204, %v2686
        %v3206 = vadd.f32 %v3205, %v2694
        %v3207 = vadd.f32 %v3206, %v2702
        %v3208 = vadd.f32 %v3207, %v2710
        %v3209 = vadd.f32 %v3208, %v2718
        %v3210 = vadd.f32 %v3209, %v2726
        %v3211 = vadd.f32 %v3210, %v2734
        %v3212 = vadd.f32 %v3211, %v2742
        %v3213 = vrot.slane %v3212, 4
        %v3214 = vadd.f32 %v3212, %v3213
        %v3215 = vrot.slane %v3214, 2
        %v3216 = vadd.f32 %v3214, %v3215
        %v3217 = vrot.slane %v3216, 1
        %v3218 = vadd.f32 %v3216, %v3217
        %v3219 = vadd.f32 %v2623, %v2631
        %v3220 = vadd.f32 %v3219, %v2639
        %v3221 = vadd.f32 %v3220, %v2647
        %v3222 = vadd.f32 %v3221, %v2655
        %v3223 = vadd.f32 %v3222, %v2663
        %v3224 = vadd.f32 %v3223, %v2671
        %v3225 = vadd.f32 %v3224, %v2679
        %v3226 = vadd.f32 %v3225, %v2687
        %v3227 = vadd.f32 %v3226, %v2695
        %v3228 = vadd.f32 %v3227, %v2703
        %v3229 = vadd.f32 %v3228, %v2711
        %v3230 = vadd.f32 %v3229, %v2719
        %v3231 = vadd.f32 %v3230, %v2727
        %v3232 = vadd.f32 %v3231, %v2735
        %v3233 = vadd.f32 %v3232, %v2743
        %v3234 = vrot.slane %v3233, 4
        %v3235 = vadd.f32 %v3233, %v3234
        %v3236 = vrot.slane %v3235, 2
        %v3237 = vadd.f32 %v3235, %v3236
        %v3238 = vrot.slane %v3237, 1
        %v3239 = vadd.f32 %v3237, %v3238
        %v3240 = vadd.f32 %v2624, %v2632
        %v3241 = vadd.f32 %v3240, %v2640
        %v3242 = vadd.f32 %v3241, %v2648
        %v3243 = vadd.f32 %v3242, %v2656
        %v3244 = vadd.f32 %v3243, %v2664
        %v3245 = vadd.f32 %v3244, %v2672
        %v3246 = vadd.f32 %v3245, %v2680
        %v3247 = vadd.f32 %v3246, %v2688
        %v3248 = vadd.f32 %v3247, %v2696
        %v3249 = vadd.f32 %v3248, %v2704
        %v3250 = vadd.f32 %v3249, %v2712
        %v3251 = vadd.f32 %v3250, %v2720
        %v3252 = vadd.f32 %v3251, %v2728
        %v3253 = vadd.f32 %v3252, %v2736
        %v3254 = vadd.f32 %v3253, %v2744
        %v3255 = vrot.slane %v3254, 4
        %v3256 = vadd.f32 %v3254, %v3255
        %v3257 = vrot.slane %v3256, 2
        %v3258 = vadd.f32 %v3256, %v3257
        %v3259 = vrot.slane %v3258, 1
        %v3260 = vadd.f32 %v3258, %v3259
        %v3261 = vadd.f32 %v2625, %v2633
        %v3262 = vadd.f32 %v3261, %v2641
        %v3263 = vadd.f32 %v3262, %v2649
        %v3264 = vadd.f32 %v3263, %v2657
        %v3265 = vadd.f32 %v3264, %v2665
        %v3266 = vadd.f32 %v3265, %v2673
        %v3267 = vadd.f32 %v3266, %v2681
        %v3268 = vadd.f32 %v3267, %v2689
        %v3269 = vadd.f32 %v3268, %v2697
        %v3270 = vadd.f32 %v3269, %v2705
        %v3271 = vadd.f32 %v3270, %v2713
        %v3272 = vadd.f32 %v3271, %v2721
        %v3273 = vadd.f32 %v3272, %v2729
        %v3274 = vadd.f32 %v3273, %v2737
        %v3275 = vadd.f32 %v3274, %v2745
        %v3276 = vrot.slane %v3275, 4
        %v3277 = vadd.f32 %v3275, %v3276
        %v3278 = vrot.slane %v3277, 2
        %v3279 = vadd.f32 %v3277, %v3278
        %v3280 = vrot.slane %v3279, 1
        %v3281 = vadd.f32 %v3279, %v3280
        %v3282 = vadd.f32 %v2626, %v2634
        %v3283 = vadd.f32 %v3282, %v2642
        %v3284 = vadd.f32 %v3283, %v2650
        %v3285 = vadd.f32 %v3284, %v2658
        %v3286 = vadd.f32 %v3285, %v2666
        %v3287 = vadd.f32 %v3286, %v2674
        %v3288 = vadd.f32 %v3287, %v2682
        %v3289 = vadd.f32 %v3288, %v2690
        %v3290 = vadd.f32 %v3289, %v2698
        %v3291 = vadd.f32 %v3290, %v2706
        %v3292 = vadd.f32 %v3291, %v2714
        %v3293 = vadd.f32 %v3292, %v2722
        %v3294 = vadd.f32 %v3293, %v2730
        %v3295 = vadd.f32 %v3294, %v2738
        %v3296 = vadd.f32 %v3295, %v2746
        %v3297 = vrot.slane %v3296, 4
        %v3298 = vadd.f32 %v3296, %v3297
        %v3299 = vrot.slane %v3298, 2
        %v3300 = vadd.f32 %v3298, %v3299
        %v3301 = vrot.slane %v3300, 1
        %v3302 = vadd.f32 %v3300, %v3301
        %v3303 = vadd.f32 %v2627, %v2635
        %v3304 = vadd.f32 %v3303, %v2643
        %v3305 = vadd.f32 %v3304, %v2651
        %v3306 = vadd.f32 %v3305, %v2659
        %v3307 = vadd.f32 %v3306, %v2667
        %v3308 = vadd.f32 %v3307, %v2675
        %v3309 = vadd.f32 %v3308, %v2683
        %v3310 = vadd.f32 %v3309, %v2691
        %v3311 = vadd.f32 %v3310, %v2699
        %v3312 = vadd.f32 %v3311, %v2707
        %v3313 = vadd.f32 %v3312, %v2715
        %v3314 = vadd.f32 %v3313, %v2723
        %v3315 = vadd.f32 %v3314, %v2731
        %v3316 = vadd.f32 %v3315, %v2739
        %v3317 = vadd.f32 %v3316, %v2747
        %v3318 = vrot.slane %v3317, 4
        %v3319 = vadd.f32 %v3317, %v3318
        %v3320 = vrot.slane %v3319, 2
        %v3321 = vadd.f32 %v3319, %v3320
        %v3322 = vrot.slane %v3321, 1
        %v3323 = vadd.f32 %v3321, %v3322
        %v3324 = vadd.f32 %v2628, %v2636
        %v3325 = vadd.f32 %v3324, %v2644
        %v3326 = vadd.f32 %v3325, %v2652
        %v3327 = vadd.f32 %v3326, %v2660
        %v3328 = vadd.f32 %v3327, %v2668
        %v3329 = vadd.f32 %v3328, %v2676
        %v3330 = vadd.f32 %v3329, %v2684
        %v3331 = vadd.f32 %v3330, %v2692
        %v3332 = vadd.f32 %v3331, %v2700
        %v3333 = vadd.f32 %v3332, %v2708
        %v3334 = vadd.f32 %v3333, %v2716
        %v3335 = vadd.f32 %v3334, %v2724
        %v3336 = vadd.f32 %v3335, %v2732
        %v3337 = vadd.f32 %v3336, %v2740
        %v3338 = vadd.f32 %v3337, %v2748
        %v3339 = vrot.slane %v3338, 4
        %v3340 = vadd.f32 %v3338, %v3339
        %v3341 = vrot.slane %v3340, 2
        %v3342 = vadd.f32 %v3340, %v3341
        %v3343 = vrot.slane %v3342, 1
        %v3344 = vadd.f32 %v3342, %v3343
        %v3345 = vadd.f32 %v2749, %v2757
        %v3346 = vadd.f32 %v3345, %v2765
        %v3347 = vadd.f32 %v3346, %v2773
        %v3348 = vadd.f32 %v3347, %v2781
        %v3349 = vadd.f32 %v3348, %v2789
        %v3350 = vadd.f32 %v3349, %v2797
        %v3351 = vadd.f32 %v3350, %v2805
        %v3352 = vadd.f32 %v3351, %v2813
        %v3353 = vadd.f32 %v3352, %v2821
        %v3354 = vadd.f32 %v3353, %v2829
        %v3355 = vadd.f32 %v3354, %v2837
        %v3356 = vadd.f32 %v3355, %v2845
        %v3357 = vadd.f32 %v3356, %v2853
        %v3358 = vadd.f32 %v3357, %v2861
        %v3359 = vadd.f32 %v3358, %v2869
        %v3360 = vrot.slane %v3359, 4
        %v3361 = vadd.f32 %v3359, %v3360
        %v3362 = vrot.slane %v3361, 2
        %v3363 = vadd.f32 %v3361, %v3362
        %v3364 = vrot.slane %v3363, 1
        %v3365 = vadd.f32 %v3363, %v3364
        %v3366 = vadd.f32 %v2750, %v2758
        %v3367 = vadd.f32 %v3366, %v2766
        %v3368 = vadd.f32 %v3367, %v2774
        %v3369 = vadd.f32 %v3368, %v2782
        %v3370 = vadd.f32 %v3369, %v2790
        %v3371 = vadd.f32 %v3370, %v2798
        %v3372 = vadd.f32 %v3371, %v2806
        %v3373 = vadd.f32 %v3372, %v2814
        %v3374 = vadd.f32 %v3373, %v2822
        %v3375 = vadd.f32 %v3374, %v2830
        %v3376 = vadd.f32 %v3375, %v2838
        %v3377 = vadd.f32 %v3376, %v2846
        %v3378 = vadd.f32 %v3377, %v2854
        %v3379 = vadd.f32 %v3378, %v2862
        %v3380 = vadd.f32 %v3379, %v2870
        %v3381 = vrot.slane %v3380, 4
        %v3382 = vadd.f32 %v3380, %v3381
        %v3383 = vrot.slane %v3382, 2
        %v3384 = vadd.f32 %v3382, %v3383
        %v3385 = vrot.slane %v3384, 1
        %v3386 = vadd.f32 %v3384, %v3385
        %v3387 = vadd.f32 %v2751, %v2759
        %v3388 = vadd.f32 %v3387, %v2767
        %v3389 = vadd.f32 %v3388, %v2775
        %v3390 = vadd.f32 %v3389, %v2783
        %v3391 = vadd.f32 %v3390, %v2791
        %v3392 = vadd.f32 %v3391, %v2799
        %v3393 = vadd.f32 %v3392, %v2807
        %v3394 = vadd.f32 %v3393, %v2815
        %v3395 = vadd.f32 %v3394, %v2823
        %v3396 = vadd.f32 %v3395, %v2831
        %v3397 = vadd.f32 %v3396, %v2839
        %v3398 = vadd.f32 %v3397, %v2847
        %v3399 = vadd.f32 %v3398, %v2855
        %v3400 = vadd.f32 %v3399, %v2863
        %v3401 = vadd.f32 %v3400, %v2871
        %v3402 = vrot.slane %v3401, 4
        %v3403 = vadd.f32 %v3401, %v3402
        %v3404 = vrot.slane %v3403, 2
        %v3405 = vadd.f32 %v3403, %v3404
        %v3406 = vrot.slane %v3405, 1
        %v3407 = vadd.f32 %v3405, %v3406
        %v3408 = vadd.f32 %v2752, %v2760
        %v3409 = vadd.f32 %v3408, %v2768
        %v3410 = vadd.f32 %v3409, %v2776
        %v3411 = vadd.f32 %v3410, %v2784
        %v3412 = vadd.f32 %v3411, %v2792
        %v3413 = vadd.f32 %v3412, %v2800
        %v3414 = vadd.f32 %v3413, %v2808
        %v3415 = vadd.f32 %v3414, %v2816
        %v3416 = vadd.f32 %v3415, %v2824
        %v3417 = vadd.f32 %v3416, %v2832
        %v3418 = vadd.f32 %v3417, %v2840
        %v3419 = vadd.f32 %v3418, %v2848
        %v3420 = vadd.f32 %v3419, %v2856
        %v3421 = vadd.f32 %v3420, %v2864
        %v3422 = vadd.f32 %v3421, %v2872
        %v3423 = vrot.slane %v3422, 4
        %v3424 = vadd.f32 %v3422, %v3423
        %v3425 = vrot.slane %v3424, 2
        %v3426 = vadd.f32 %v3424, %v3425
        %v3427 = vrot.slane %v3426, 1
        %v3428 = vadd.f32 %v3426, %v3427
        %v3429 = vadd.f32 %v2753, %v2761
        %v3430 = vadd.f32 %v3429, %v2769
        %v3431 = vadd.f32 %v3430, %v2777
        %v3432 = vadd.f32 %v3431, %v2785
        %v3433 = vadd.f32 %v3432, %v2793
        %v3434 = vadd.f32 %v3433, %v2801
        %v3435 = vadd.f32 %v3434, %v2809
        %v3436 = vadd.f32 %v3435, %v2817
        %v3437 = vadd.f32 %v3436, %v2825
        %v3438 = vadd.f32 %v3437, %v2833
        %v3439 = vadd.f32 %v3438, %v2841
        %v3440 = vadd.f32 %v3439, %v2849
        %v3441 = vadd.f32 %v3440, %v2857
        %v3442 = vadd.f32 %v3441, %v2865
        %v3443 = vadd.f32 %v3442, %v2873
        %v3444 = vrot.slane %v3443, 4
        %v3445 = vadd.f32 %v3443, %v3444
        %v3446 = vrot.slane %v3445, 2
        %v3447 = vadd.f32 %v3445, %v3446
        %v3448 = vrot.slane %v3447, 1
        %v3449 = vadd.f32 %v3447, %v3448
        %v3450 = vadd.f32 %v2754, %v2762
        %v3451 = vadd.f32 %v3450, %v2770
        %v3452 = vadd.f32 %v3451, %v2778
        %v3453 = vadd.f32 %v3452, %v2786
        %v3454 = vadd.f32 %v3453, %v2794
        %v3455 = vadd.f32 %v3454, %v2802
        %v3456 = vadd.f32 %v3455, %v2810
        %v3457 = vadd.f32 %v3456, %v2818
        %v3458 = vadd.f32 %v3457, %v2826
        %v3459 = vadd.f32 %v3458, %v2834
        %v3460 = vadd.f32 %v3459, %v2842
        %v3461 = vadd.f32 %v3460, %v2850
        %v3462 = vadd.f32 %v3461, %v2858
        %v3463 = vadd.f32 %v3462, %v2866
        %v3464 = vadd.f32 %v3463, %v2874
        %v3465 = vrot.slane %v3464, 4
        %v3466 = vadd.f32 %v3464, %v3465
        %v3467 = vrot.slane %v3466, 2
        %v3468 = vadd.f32 %v3466, %v3467
        %v3469 = vrot.slane %v3468, 1
        %v3470 = vadd.f32 %v3468, %v3469
        %v3471 = vadd.f32 %v2755, %v2763
        %v3472 = vadd.f32 %v3471, %v2771
        %v3473 = vadd.f32 %v3472, %v2779
        %v3474 = vadd.f32 %v3473, %v2787
        %v3475 = vadd.f32 %v3474, %v2795
        %v3476 = vadd.f32 %v3475, %v2803
        %v3477 = vadd.f32 %v3476, %v2811
        %v3478 = vadd.f32 %v3477, %v2819
        %v3479 = vadd.f32 %v3478, %v2827
        %v3480 = vadd.f32 %v3479, %v2835
        %v3481 = vadd.f32 %v3480, %v2843
        %v3482 = vadd.f32 %v3481, %v2851
        %v3483 = vadd.f32 %v3482, %v2859
        %v3484 = vadd.f32 %v3483, %v2867
        %v3485 = vadd.f32 %v3484, %v2875
        %v3486 = vrot.slane %v3485, 4
        %v3487 = vadd.f32 %v3485, %v3486
        %v3488 = vrot.slane %v3487, 2
        %v3489 = vadd.f32 %v3487, %v3488
        %v3490 = vrot.slane %v3489, 1
        %v3491 = vadd.f32 %v3489, %v3490
        %v3492 = vadd.f32 %v2756, %v2764
        %v3493 = vadd.f32 %v3492, %v2772
        %v3494 = vadd.f32 %v3493, %v2780
        %v3495 = vadd.f32 %v3494, %v2788
        %v3496 = vadd.f32 %v3495, %v2796
        %v3497 = vadd.f32 %v3496, %v2804
        %v3498 = vadd.f32 %v3497, %v2812
        %v3499 = vadd.f32 %v3498, %v2820
        %v3500 = vadd.f32 %v3499, %v2828
        %v3501 = vadd.f32 %v3500, %v2836
        %v3502 = vadd.f32 %v3501, %v2844
        %v3503 = vadd.f32 %v3502, %v2852
        %v3504 = vadd.f32 %v3503, %v2860
        %v3505 = vadd.f32 %v3504, %v2868
        %v3506 = vadd.f32 %v3505, %v2876
        %v3507 = vrot.slane %v3506, 4
        %v3508 = vadd.f32 %v3506, %v3507
        %v3509 = vrot.slane %v3508, 2
        %v3510 = vadd.f32 %v3508, %v3509
        %v3511 = vrot.slane %v3510, 1
        %v3512 = vadd.f32 %v3510, %v3511
        %v3513 = vadd.f32 %v2877, %v2885
        %v3514 = vadd.f32 %v3513, %v2893
        %v3515 = vadd.f32 %v3514, %v2901
        %v3516 = vadd.f32 %v3515, %v2909
        %v3517 = vadd.f32 %v3516, %v2917
        %v3518 = vadd.f32 %v3517, %v2925
        %v3519 = vadd.f32 %v3518, %v2933
        %v3520 = vadd.f32 %v3519, %v2941
        %v3521 = vadd.f32 %v3520, %v2949
        %v3522 = vadd.f32 %v3521, %v2957
        %v3523 = vadd.f32 %v3522, %v2965
        %v3524 = vadd.f32 %v3523, %v2973
        %v3525 = vadd.f32 %v3524, %v2981
        %v3526 = vadd.f32 %v3525, %v2989
        %v3527 = vadd.f32 %v3526, %v2997
        %v3528 = vrot.slane %v3527, 4
        %v3529 = vadd.f32 %v3527, %v3528
        %v3530 = vrot.slane %v3529, 2
        %v3531 = vadd.f32 %v3529, %v3530
        %v3532 = vrot.slane %v3531, 1
        %v3533 = vadd.f32 %v3531, %v3532
        %v3534 = vadd.f32 %v2878, %v2886
        %v3535 = vadd.f32 %v3534, %v2894
        %v3536 = vadd.f32 %v3535, %v2902
        %v3537 = vadd.f32 %v3536, %v2910
        %v3538 = vadd.f32 %v3537, %v2918
        %v3539 = vadd.f32 %v3538, %v2926
        %v3540 = vadd.f32 %v3539, %v2934
        %v3541 = vadd.f32 %v3540, %v2942
        %v3542 = vadd.f32 %v3541, %v2950
        %v3543 = vadd.f32 %v3542, %v2958
        %v3544 = vadd.f32 %v3543, %v2966
        %v3545 = vadd.f32 %v3544, %v2974
        %v3546 = vadd.f32 %v3545, %v2982
        %v3547 = vadd.f32 %v3546, %v2990
        %v3548 = vadd.f32 %v3547, %v2998
        %v3549 = vrot.slane %v3548, 4
        %v3550 = vadd.f32 %v3548, %v3549
        %v3551 = vrot.slane %v3550, 2
        %v3552 = vadd.f32 %v3550, %v3551
        %v3553 = vrot.slane %v3552, 1
        %v3554 = vadd.f32 %v3552, %v3553
        %v3555 = vadd.f32 %v2879, %v2887
        %v3556 = vadd.f32 %v3555, %v2895
        %v3557 = vadd.f32 %v3556, %v2903
        %v3558 = vadd.f32 %v3557, %v2911
        %v3559 = vadd.f32 %v3558, %v2919
        %v3560 = vadd.f32 %v3559, %v2927
        %v3561 = vadd.f32 %v3560, %v2935
        %v3562 = vadd.f32 %v3561, %v2943
        %v3563 = vadd.f32 %v3562, %v2951
        %v3564 = vadd.f32 %v3563, %v2959
        %v3565 = vadd.f32 %v3564, %v2967
        %v3566 = vadd.f32 %v3565, %v2975
        %v3567 = vadd.f32 %v3566, %v2983
        %v3568 = vadd.f32 %v3567, %v2991
        %v3569 = vadd.f32 %v3568, %v2999
        %v3570 = vrot.slane %v3569, 4
        %v3571 = vadd.f32 %v3569, %v3570
        %v3572 = vrot.slane %v3571, 2
        %v3573 = vadd.f32 %v3571, %v3572
        %v3574 = vrot.slane %v3573, 1
        %v3575 = vadd.f32 %v3573, %v3574
        %v3576 = vadd.f32 %v2880, %v2888
        %v3577 = vadd.f32 %v3576, %v2896
        %v3578 = vadd.f32 %v3577, %v2904
        %v3579 = vadd.f32 %v3578, %v2912
        %v3580 = vadd.f32 %v3579, %v2920
        %v3581 = vadd.f32 %v3580, %v2928
        %v3582 = vadd.f32 %v3581, %v2936
        %v3583 = vadd.f32 %v3582, %v2944
        %v3584 = vadd.f32 %v3583, %v2952
        %v3585 = vadd.f32 %v3584, %v2960
        %v3586 = vadd.f32 %v3585, %v2968
        %v3587 = vadd.f32 %v3586, %v2976
        %v3588 = vadd.f32 %v3587, %v2984
        %v3589 = vadd.f32 %v3588, %v2992
        %v3590 = vadd.f32 %v3589, %v3000
        %v3591 = vrot.slane %v3590, 4
        %v3592 = vadd.f32 %v3590, %v3591
        %v3593 = vrot.slane %v3592, 2
        %v3594 = vadd.f32 %v3592, %v3593
        %v3595 = vrot.slane %v3594, 1
        %v3596 = vadd.f32 %v3594, %v3595
        %v3597 = vadd.f32 %v2881, %v2889
        %v3598 = vadd.f32 %v3597, %v2897
        %v3599 = vadd.f32 %v3598, %v2905
        %v3600 = vadd.f32 %v3599, %v2913
        %v3601 = vadd.f32 %v3600, %v2921
        %v3602 = vadd.f32 %v3601, %v2929
        %v3603 = vadd.f32 %v3602, %v2937
        %v3604 = vadd.f32 %v3603, %v2945
        %v3605 = vadd.f32 %v3604, %v2953
        %v3606 = vadd.f32 %v3605, %v2961
        %v3607 = vadd.f32 %v3606, %v2969
        %v3608 = vadd.f32 %v3607, %v2977
        %v3609 = vadd.f32 %v3608, %v2985
        %v3610 = vadd.f32 %v3609, %v2993
        %v3611 = vadd.f32 %v3610, %v3001
        %v3612 = vrot.slane %v3611, 4
        %v3613 = vadd.f32 %v3611, %v3612
        %v3614 = vrot.slane %v3613, 2
        %v3615 = vadd.f32 %v3613, %v3614
        %v3616 = vrot.slane %v3615, 1
        %v3617 = vadd.f32 %v3615, %v3616
        %v3618 = vadd.f32 %v2882, %v2890
        %v3619 = vadd.f32 %v3618, %v2898
        %v3620 = vadd.f32 %v3619, %v2906
        %v3621 = vadd.f32 %v3620, %v2914
        %v3622 = vadd.f32 %v3621, %v2922
        %v3623 = vadd.f32 %v3622, %v2930
        %v3624 = vadd.f32 %v3623, %v2938
        %v3625 = vadd.f32 %v3624, %v2946
        %v3626 = vadd.f32 %v3625, %v2954
        %v3627 = vadd.f32 %v3626, %v2962
        %v3628 = vadd.f32 %v3627, %v2970
        %v3629 = vadd.f32 %v3628, %v2978
        %v3630 = vadd.f32 %v3629, %v2986
        %v3631 = vadd.f32 %v3630, %v2994
        %v3632 = vadd.f32 %v3631, %v3002
        %v3633 = vrot.slane %v3632, 4
        %v3634 = vadd.f32 %v3632, %v3633
        %v3635 = vrot.slane %v3634, 2
        %v3636 = vadd.f32 %v3634, %v3635
        %v3637 = vrot.slane %v3636, 1
        %v3638 = vadd.f32 %v3636, %v3637
        %v3639 = vadd.f32 %v2883, %v2891
        %v3640 = vadd.f32 %v3639, %v2899
        %v3641 = vadd.f32 %v3640, %v2907
        %v3642 = vadd.f32 %v3641, %v2915
        %v3643 = vadd.f32 %v3642, %v2923
        %v3644 = vadd.f32 %v3643, %v2931
        %v3645 = vadd.f32 %v3644, %v2939
        %v3646 = vadd.f32 %v3645, %v2947
        %v3647 = vadd.f32 %v3646, %v2955
        %v3648 = vadd.f32 %v3647, %v2963
        %v3649 = vadd.f32 %v3648, %v2971
        %v3650 = vadd.f32 %v3649, %v2979
        %v3651 = vadd.f32 %v3650, %v2987
        %v3652 = vadd.f32 %v3651, %v2995
        %v3653 = vadd.f32 %v3652, %v3003
        %v3654 = vrot.slane %v3653, 4
        %v3655 = vadd.f32 %v3653, %v3654
        %v3656 = vrot.slane %v3655, 2
        %v3657 = vadd.f32 %v3655, %v3656
        %v3658 = vrot.slane %v3657, 1
        %v3659 = vadd.f32 %v3657, %v3658
        %v3660 = vadd.f32 %v2884, %v2892
        %v3661 = vadd.f32 %v3660, %v2900
        %v3662 = vadd.f32 %v3661, %v2908
        %v3663 = vadd.f32 %v3662, %v2916
        %v3664 = vadd.f32 %v3663, %v2924
        %v3665 = vadd.f32 %v3664, %v2932
        %v3666 = vadd.f32 %v3665, %v2940
        %v3667 = vadd.f32 %v3666, %v2948
        %v3668 = vadd.f32 %v3667, %v2956
        %v3669 = vadd.f32 %v3668, %v2964
        %v3670 = vadd.f32 %v3669, %v2972
        %v3671 = vadd.f32 %v3670, %v2980
        %v3672 = vadd.f32 %v3671, %v2988
        %v3673 = vadd.f32 %v3672, %v2996
        %v3674 = vadd.f32 %v3673, %v3004
        %v3675 = vrot.slane %v3674, 4
        %v3676 = vadd.f32 %v3674, %v3675
        %v3677 = vrot.slane %v3676, 2
        %v3678 = vadd.f32 %v3676, %v3677
        %v3679 = vrot.slane %v3678, 1
        %v3680 = vadd.f32 %v3678, %v3679
        %v3713 = vcombine.low %v3029, %v3050
        %v3714 = vcombine.low %v3071, %v3092
        %v3715 = vcombine.low %v3113, %v3134
        %v3716 = vcombine.low %v3155, %v3176
        %v3717 = vcombine.low %v3197, %v3218
        %v3718 = vcombine.low %v3239, %v3260
        %v3719 = vcombine.low %v3281, %v3302
        %v3720 = vcombine.low %v3323, %v3344
        %v3721 = vcombine.low %v3365, %v3386
        %v3722 = vcombine.low %v3407, %v3428
        %v3723 = vcombine.low %v3449, %v3470
        %v3724 = vcombine.low %v3491, %v3512
        %v3725 = vcombine.low %v3533, %v3554
        %v3726 = vcombine.low %v3575, %v3596
        %v3727 = vcombine.low %v3617, %v3638
        %v3728 = vcombine.low %v3659, %v3680
        %v3729 = vrot.slane %v3717, 7
        %vm3730 = vcmask 1041409
        %v3731 = vsel %vm3730, %v3729, %v3713
        %vm3732 = vcmask 1045509
        %v3733 = vsel %vm3732, %v3729, %v3731
        %v3734 = vrot.slane %v3721, 6
        %vm3735 = vcmask 1042434
        %v3736 = vsel %vm3735, %v3734, %v3733
        %vm3737 = vcmask 1046534
        %v3738 = vsel %vm3737, %v3734, %v3736
        %v3739 = vrot.slane %v3725, 5
        %vm3740 = vcmask 1043459
        %v3741 = vsel %vm3740, %v3739, %v3738
        %vm3742 = vcmask 1047559
        %v3743 = vsel %vm3742, %v3739, %v3741
        %v3744 = vrot.slane %v3718, 7
        %v3745 = vsel %vm3730, %v3744, %v3714
        %v3746 = vsel %vm3732, %v3744, %v3745
        %v3747 = vrot.slane %v3722, 6
        %v3748 = vsel %vm3735, %v3747, %v3746
        %v3749 = vsel %vm3737, %v3747, %v3748
        %v3750 = vrot.slane %v3726, 5
        %v3751 = vsel %vm3740, %v3750, %v3749
        %v3752 = vsel %vm3742, %v3750, %v3751
        %v3753 = vrot.slane %v3719, 7
        %v3754 = vsel %vm3730, %v3753, %v3715
        %v3755 = vsel %vm3732, %v3753, %v3754
        %v3756 = vrot.slane %v3723, 6
        %v3757 = vsel %vm3735, %v3756, %v3755
        %v3758 = vsel %vm3737, %v3756, %v3757
        %v3759 = vrot.slane %v3727, 5
        %v3760 = vsel %vm3740, %v3759, %v3758
        %v3761 = vsel %vm3742, %v3759, %v3760
        %v3762 = vrot.slane %v3720, 7
        %v3763 = vsel %vm3730, %v3762, %v3716
        %v3764 = vsel %vm3732, %v3762, %v3763
        %v3765 = vrot.slane %v3724, 6
        %v3766 = vsel %vm3735, %v3765, %v3764
        %v3767 = vsel %vm3737, %v3765, %v3766
        %v3768 = vrot.slane %v3728, 5
        %v3769 = vsel %vm3740, %v3768, %v3767
        %v3770 = vsel %vm3742, %v3768, %v3769
        %v3775 = vadd.f32 %v3005, %v3743
        %v3776 = vadd.f32 %v3006, %v3752
        %v3777 = vadd.f32 %v3007, %v3761
        %v3778 = vadd.f32 %v3008, %v3770
        %3779 = vst [vmem:[#allocation2] sm:$0xff] %v3775
        %3780 = vst [vmem:[#allocation2 + $0x8] sm:$0xff] %v3776
        %3781 = vst [vmem:[#allocation2 + $0x10] sm:$0xff] %v3777
        %3782 = vst [vmem:[#allocation2 + $0x18] sm:$0xff] %v3778
        %p3783 = scmp.eq.s32.totalorder %s25, 1
        // Predicated region
        $region102: #{siamese_forward.1} parent=92 // pred_check
          %p3784 = pneg %p3783
        $region103: #{siamese_forward.1} parent=92 // pred_check_branch
          %3786 = sbr.rel (%p3784) target = $region105
        $region104: #{siamese_forward.1} parent=92 // pred_region
          %v3787 = vld [vmem:[#allocation2] sm:$0xff]
          %v3788 = vld [vmem:[#allocation2 + $0x8] sm:$0xff]
          %v3789 = vld [vmem:[#allocation2 + $0x10] sm:$0xff]
          %v3790 = vld [vmem:[#allocation2 + $0x18] sm:$0xff]
          %v3795 = vcombine.high %v3787, %v3787
          %v3796 = vcombine.high %v3788, %v3788
          %v3797 = vcombine.high %v3789, %v3789
          %v3798 = vcombine.high %v3790, %v3790
          %v3803 = vpack.c.bf16 %v3787, %v3787
          %v3804 = vpack.c.bf16 %v3795, %v3795
          %v3805 = vpack.c.bf16 %v3788, %v3788
          %v3806 = vpack.c.bf16 %v3796, %v3796
          %v3807 = vpack.c.bf16 %v3789, %v3789
          %v3808 = vpack.c.bf16 %v3797, %v3797
          %v3809 = vpack.c.bf16 %v3790, %v3790
          %v3810 = vpack.c.bf16 %v3798, %v3798
          %v3811 = vld [vmem:[%s3] sm:$0xff]
          %v3812 = vld [vmem:[%s3 + $0x8] sm:$0xff]
          %v3813 = vld [vmem:[%s3 + $0x10] sm:$0xff]
          %v3814 = vld [vmem:[%s3 + $0x18] sm:$0xff]
          %v3815 = vld [vmem:[%s3 + $0x20] sm:$0xff]
          %v3816 = vld [vmem:[%s3 + $0x28] sm:$0xff]
          %v3817 = vld [vmem:[%s3 + $0x30] sm:$0xff]
          %v3818 = vld [vmem:[%s3 + $0x38] sm:$0xff]
          %v3819 = vld [vmem:[%s3 + $0x40] sm:$0xff]
          %v3820 = vld [vmem:[%s3 + $0x48] sm:$0xff]
          %v3821 = vld [vmem:[%s3 + $0x50] sm:$0xff]
          %v3822 = vld [vmem:[%s3 + $0x58] sm:$0xff]
          %v3823 = vld [vmem:[%s3 + $0x60] sm:$0xff]
          %v3824 = vld [vmem:[%s3 + $0x68] sm:$0xff]
          %v3825 = vld [vmem:[%s3 + $0x70] sm:$0xff]
          %v3826 = vld [vmem:[%s3 + $0x78] sm:$0xff]
          %v3827 = vld [vmem:[%s3 + $0x80] sm:$0xff]
          %v3828 = vld [vmem:[%s3 + $0x88] sm:$0xff]
          %v3829 = vld [vmem:[%s3 + $0x90] sm:$0xff]
          %v3830 = vld [vmem:[%s3 + $0x98] sm:$0xff]
          %v3831 = vld [vmem:[%s3 + $0xa0] sm:$0xff]
          %v3832 = vld [vmem:[%s3 + $0xa8] sm:$0xff]
          %v3833 = vld [vmem:[%s3 + $0xb0] sm:$0xff]
          %v3834 = vld [vmem:[%s3 + $0xb8] sm:$0xff]
          %v3835 = vld [vmem:[%s3 + $0xc0] sm:$0xff]
          %v3836 = vld [vmem:[%s3 + $0xc8] sm:$0xff]
          %v3837 = vld [vmem:[%s3 + $0xd0] sm:$0xff]
          %v3838 = vld [vmem:[%s3 + $0xd8] sm:$0xff]
          %v3839 = vld [vmem:[%s3 + $0xe0] sm:$0xff]
          %v3840 = vld [vmem:[%s3 + $0xe8] sm:$0xff]
          %v3841 = vld [vmem:[%s3 + $0xf0] sm:$0xff]
          %v3842 = vld [vmem:[%s3 + $0xf8] sm:$0xff]
          %v3843 = vld [vmem:[%s3 + $0x100] sm:$0xff]
          %v3844 = vld [vmem:[%s3 + $0x108] sm:$0xff]
          %v3845 = vld [vmem:[%s3 + $0x110] sm:$0xff]
          %v3846 = vld [vmem:[%s3 + $0x118] sm:$0xff]
          %v3847 = vld [vmem:[%s3 + $0x120] sm:$0xff]
          %v3848 = vld [vmem:[%s3 + $0x128] sm:$0xff]
          %v3849 = vld [vmem:[%s3 + $0x130] sm:$0xff]
          %v3850 = vld [vmem:[%s3 + $0x138] sm:$0xff]
          %v3851 = vld [vmem:[%s3 + $0x140] sm:$0xff]
          %v3852 = vld [vmem:[%s3 + $0x148] sm:$0xff]
          %v3853 = vld [vmem:[%s3 + $0x150] sm:$0xff]
          %v3854 = vld [vmem:[%s3 + $0x158] sm:$0xff]
          %v3855 = vld [vmem:[%s3 + $0x160] sm:$0xff]
          %v3856 = vld [vmem:[%s3 + $0x168] sm:$0xff]
          %v3857 = vld [vmem:[%s3 + $0x170] sm:$0xff]
          %v3858 = vld [vmem:[%s3 + $0x178] sm:$0xff]
          %v3859 = vld [vmem:[%s3 + $0x180] sm:$0xff]
          %v3860 = vld [vmem:[%s3 + $0x188] sm:$0xff]
          %v3861 = vld [vmem:[%s3 + $0x190] sm:$0xff]
          %v3862 = vld [vmem:[%s3 + $0x198] sm:$0xff]
          %v3863 = vld [vmem:[%s3 + $0x1a0] sm:$0xff]
          %v3864 = vld [vmem:[%s3 + $0x1a8] sm:$0xff]
          %v3865 = vld [vmem:[%s3 + $0x1b0] sm:$0xff]
          %v3866 = vld [vmem:[%s3 + $0x1b8] sm:$0xff]
          %v3867 = vld [vmem:[%s3 + $0x1c0] sm:$0xff]
          %v3868 = vld [vmem:[%s3 + $0x1c8] sm:$0xff]
          %v3869 = vld [vmem:[%s3 + $0x1d0] sm:$0xff]
          %v3870 = vld [vmem:[%s3 + $0x1d8] sm:$0xff]
          %v3871 = vld [vmem:[%s3 + $0x1e0] sm:$0xff]
          %v3872 = vld [vmem:[%s3 + $0x1e8] sm:$0xff]
          %v3873 = vld [vmem:[%s3 + $0x1f0] sm:$0xff]
          %v3874 = vld [vmem:[%s3 + $0x1f8] sm:$0xff]
          %v3875 = vld [vmem:[%s3 + $0x200] sm:$0xff]
          %v3876 = vld [vmem:[%s3 + $0x208] sm:$0xff]
          %v3877 = vld [vmem:[%s3 + $0x210] sm:$0xff]
          %v3878 = vld [vmem:[%s3 + $0x218] sm:$0xff]
          %v3879 = vld [vmem:[%s3 + $0x220] sm:$0xff]
          %v3880 = vld [vmem:[%s3 + $0x228] sm:$0xff]
          %v3881 = vld [vmem:[%s3 + $0x230] sm:$0xff]
          %v3882 = vld [vmem:[%s3 + $0x238] sm:$0xff]
          %v3883 = vld [vmem:[%s3 + $0x240] sm:$0xff]
          %v3884 = vld [vmem:[%s3 + $0x248] sm:$0xff]
          %v3885 = vld [vmem:[%s3 + $0x250] sm:$0xff]
          %v3886 = vld [vmem:[%s3 + $0x258] sm:$0xff]
          %v3887 = vld [vmem:[%s3 + $0x260] sm:$0xff]
          %v3888 = vld [vmem:[%s3 + $0x268] sm:$0xff]
          %v3889 = vld [vmem:[%s3 + $0x270] sm:$0xff]
          %v3890 = vld [vmem:[%s3 + $0x278] sm:$0xff]
          %v3891 = vld [vmem:[%s3 + $0x280] sm:$0xff]
          %v3892 = vld [vmem:[%s3 + $0x288] sm:$0xff]
          %v3893 = vld [vmem:[%s3 + $0x290] sm:$0xff]
          %v3894 = vld [vmem:[%s3 + $0x298] sm:$0xff]
          %v3895 = vld [vmem:[%s3 + $0x2a0] sm:$0xff]
          %v3896 = vld [vmem:[%s3 + $0x2a8] sm:$0xff]
          %v3897 = vld [vmem:[%s3 + $0x2b0] sm:$0xff]
          %v3898 = vld [vmem:[%s3 + $0x2b8] sm:$0xff]
          %v3899 = vld [vmem:[%s3 + $0x2c0] sm:$0xff]
          %v3900 = vld [vmem:[%s3 + $0x2c8] sm:$0xff]
          %v3901 = vld [vmem:[%s3 + $0x2d0] sm:$0xff]
          %v3902 = vld [vmem:[%s3 + $0x2d8] sm:$0xff]
          %v3903 = vld [vmem:[%s3 + $0x2e0] sm:$0xff]
          %v3904 = vld [vmem:[%s3 + $0x2e8] sm:$0xff]
          %v3905 = vld [vmem:[%s3 + $0x2f0] sm:$0xff]
          %v3906 = vld [vmem:[%s3 + $0x2f8] sm:$0xff]
          %v3907 = vld [vmem:[%s3 + $0x300] sm:$0xff]
          %v3908 = vld [vmem:[%s3 + $0x308] sm:$0xff]
          %v3909 = vld [vmem:[%s3 + $0x310] sm:$0xff]
          %v3910 = vld [vmem:[%s3 + $0x318] sm:$0xff]
          %v3911 = vld [vmem:[%s3 + $0x320] sm:$0xff]
          %v3912 = vld [vmem:[%s3 + $0x328] sm:$0xff]
          %v3913 = vld [vmem:[%s3 + $0x330] sm:$0xff]
          %v3914 = vld [vmem:[%s3 + $0x338] sm:$0xff]
          %v3915 = vld [vmem:[%s3 + $0x340] sm:$0xff]
          %v3916 = vld [vmem:[%s3 + $0x348] sm:$0xff]
          %v3917 = vld [vmem:[%s3 + $0x350] sm:$0xff]
          %v3918 = vld [vmem:[%s3 + $0x358] sm:$0xff]
          %v3919 = vld [vmem:[%s3 + $0x360] sm:$0xff]
          %v3920 = vld [vmem:[%s3 + $0x368] sm:$0xff]
          %v3921 = vld [vmem:[%s3 + $0x370] sm:$0xff]
          %v3922 = vld [vmem:[%s3 + $0x378] sm:$0xff]
          %v3923 = vld [vmem:[%s3 + $0x380] sm:$0xff]
          %v3924 = vld [vmem:[%s3 + $0x388] sm:$0xff]
          %v3925 = vld [vmem:[%s3 + $0x390] sm:$0xff]
          %v3926 = vld [vmem:[%s3 + $0x398] sm:$0xff]
          %v3927 = vld [vmem:[%s3 + $0x3a0] sm:$0xff]
          %v3928 = vld [vmem:[%s3 + $0x3a8] sm:$0xff]
          %v3929 = vld [vmem:[%s3 + $0x3b0] sm:$0xff]
          %v3930 = vld [vmem:[%s3 + $0x3b8] sm:$0xff]
          %v3931 = vld [vmem:[%s3 + $0x3c0] sm:$0xff]
          %v3932 = vld [vmem:[%s3 + $0x3c8] sm:$0xff]
          %v3933 = vld [vmem:[%s3 + $0x3d0] sm:$0xff]
          %v3934 = vld [vmem:[%s3 + $0x3d8] sm:$0xff]
          %v3935 = vld [vmem:[%s3 + $0x3e0] sm:$0xff]
          %v3936 = vld [vmem:[%s3 + $0x3e8] sm:$0xff]
          %v3937 = vld [vmem:[%s3 + $0x3f0] sm:$0xff]
          %v3938 = vld [vmem:[%s3 + $0x3f8] sm:$0xff]
          %v3939 = vld [vmem:[%s3 + $0x400] sm:$0xff]
          %v3940 = vld [vmem:[%s3 + $0x408] sm:$0xff]
          %v3941 = vld [vmem:[%s3 + $0x410] sm:$0xff]
          %v3942 = vld [vmem:[%s3 + $0x418] sm:$0xff]
          %v3943 = vld [vmem:[%s3 + $0x420] sm:$0xff]
          %v3944 = vld [vmem:[%s3 + $0x428] sm:$0xff]
          %v3945 = vld [vmem:[%s3 + $0x430] sm:$0xff]
          %v3946 = vld [vmem:[%s3 + $0x438] sm:$0xff]
          %v3947 = vld [vmem:[%s3 + $0x440] sm:$0xff]
          %v3948 = vld [vmem:[%s3 + $0x448] sm:$0xff]
          %v3949 = vld [vmem:[%s3 + $0x450] sm:$0xff]
          %v3950 = vld [vmem:[%s3 + $0x458] sm:$0xff]
          %v3951 = vld [vmem:[%s3 + $0x460] sm:$0xff]
          %v3952 = vld [vmem:[%s3 + $0x468] sm:$0xff]
          %v3953 = vld [vmem:[%s3 + $0x470] sm:$0xff]
          %v3954 = vld [vmem:[%s3 + $0x478] sm:$0xff]
          %v3955 = vld [vmem:[%s3 + $0x480] sm:$0xff]
          %v3956 = vld [vmem:[%s3 + $0x488] sm:$0xff]
          %v3957 = vld [vmem:[%s3 + $0x490] sm:$0xff]
          %v3958 = vld [vmem:[%s3 + $0x498] sm:$0xff]
          %v3959 = vld [vmem:[%s3 + $0x4a0] sm:$0xff]
          %v3960 = vld [vmem:[%s3 + $0x4a8] sm:$0xff]
          %v3961 = vld [vmem:[%s3 + $0x4b0] sm:$0xff]
          %v3962 = vld [vmem:[%s3 + $0x4b8] sm:$0xff]
          %v3963 = vld [vmem:[%s3 + $0x4c0] sm:$0xff]
          %v3964 = vld [vmem:[%s3 + $0x4c8] sm:$0xff]
          %v3965 = vld [vmem:[%s3 + $0x4d0] sm:$0xff]
          %v3966 = vld [vmem:[%s3 + $0x4d8] sm:$0xff]
          %v3967 = vld [vmem:[%s3 + $0x4e0] sm:$0xff]
          %v3968 = vld [vmem:[%s3 + $0x4e8] sm:$0xff]
          %v3969 = vld [vmem:[%s3 + $0x4f0] sm:$0xff]
          %v3970 = vld [vmem:[%s3 + $0x4f8] sm:$0xff]
          %v3971 = vld [vmem:[%s3 + $0x500] sm:$0xff]
          %v3972 = vld [vmem:[%s3 + $0x508] sm:$0xff]
          %v3973 = vld [vmem:[%s3 + $0x510] sm:$0xff]
          %v3974 = vld [vmem:[%s3 + $0x518] sm:$0xff]
          %v3975 = vld [vmem:[%s3 + $0x520] sm:$0xff]
          %v3976 = vld [vmem:[%s3 + $0x528] sm:$0xff]
          %v3977 = vld [vmem:[%s3 + $0x530] sm:$0xff]
          %v3978 = vld [vmem:[%s3 + $0x538] sm:$0xff]
          %v3979 = vld [vmem:[%s3 + $0x540] sm:$0xff]
          %v3980 = vld [vmem:[%s3 + $0x548] sm:$0xff]
          %v3981 = vld [vmem:[%s3 + $0x550] sm:$0xff]
          %v3982 = vld [vmem:[%s3 + $0x558] sm:$0xff]
          %v3983 = vld [vmem:[%s3 + $0x560] sm:$0xff]
          %v3984 = vld [vmem:[%s3 + $0x568] sm:$0xff]
          %v3985 = vld [vmem:[%s3 + $0x570] sm:$0xff]
          %v3986 = vld [vmem:[%s3 + $0x578] sm:$0xff]
          %v3987 = vld [vmem:[%s3 + $0x580] sm:$0xff]
          %v3988 = vld [vmem:[%s3 + $0x588] sm:$0xff]
          %v3989 = vld [vmem:[%s3 + $0x590] sm:$0xff]
          %v3990 = vld [vmem:[%s3 + $0x598] sm:$0xff]
          %v3991 = vld [vmem:[%s3 + $0x5a0] sm:$0xff]
          %v3992 = vld [vmem:[%s3 + $0x5a8] sm:$0xff]
          %v3993 = vld [vmem:[%s3 + $0x5b0] sm:$0xff]
          %v3994 = vld [vmem:[%s3 + $0x5b8] sm:$0xff]
          %v3995 = vld [vmem:[%s3 + $0x5c0] sm:$0xff]
          %v3996 = vld [vmem:[%s3 + $0x5c8] sm:$0xff]
          %v3997 = vld [vmem:[%s3 + $0x5d0] sm:$0xff]
          %v3998 = vld [vmem:[%s3 + $0x5d8] sm:$0xff]
          %v3999 = vld [vmem:[%s3 + $0x5e0] sm:$0xff]
          %v4000 = vld [vmem:[%s3 + $0x5e8] sm:$0xff]
          %v4001 = vld [vmem:[%s3 + $0x5f0] sm:$0xff]
          %v4002 = vld [vmem:[%s3 + $0x5f8] sm:$0xff]
          %v4003 = vld [vmem:[%s3 + $0x600] sm:$0xff]
          %v4004 = vld [vmem:[%s3 + $0x608] sm:$0xff]
          %v4005 = vld [vmem:[%s3 + $0x610] sm:$0xff]
          %v4006 = vld [vmem:[%s3 + $0x618] sm:$0xff]
          %v4007 = vld [vmem:[%s3 + $0x620] sm:$0xff]
          %v4008 = vld [vmem:[%s3 + $0x628] sm:$0xff]
          %v4009 = vld [vmem:[%s3 + $0x630] sm:$0xff]
          %v4010 = vld [vmem:[%s3 + $0x638] sm:$0xff]
          %v4011 = vld [vmem:[%s3 + $0x640] sm:$0xff]
          %v4012 = vld [vmem:[%s3 + $0x648] sm:$0xff]
          %v4013 = vld [vmem:[%s3 + $0x650] sm:$0xff]
          %v4014 = vld [vmem:[%s3 + $0x658] sm:$0xff]
          %v4015 = vld [vmem:[%s3 + $0x660] sm:$0xff]
          %v4016 = vld [vmem:[%s3 + $0x668] sm:$0xff]
          %v4017 = vld [vmem:[%s3 + $0x670] sm:$0xff]
          %v4018 = vld [vmem:[%s3 + $0x678] sm:$0xff]
          %v4019 = vld [vmem:[%s3 + $0x680] sm:$0xff]
          %v4020 = vld [vmem:[%s3 + $0x688] sm:$0xff]
          %v4021 = vld [vmem:[%s3 + $0x690] sm:$0xff]
          %v4022 = vld [vmem:[%s3 + $0x698] sm:$0xff]
          %v4023 = vld [vmem:[%s3 + $0x6a0] sm:$0xff]
          %v4024 = vld [vmem:[%s3 + $0x6a8] sm:$0xff]
          %v4025 = vld [vmem:[%s3 + $0x6b0] sm:$0xff]
          %v4026 = vld [vmem:[%s3 + $0x6b8] sm:$0xff]
          %v4027 = vld [vmem:[%s3 + $0x6c0] sm:$0xff]
          %v4028 = vld [vmem:[%s3 + $0x6c8] sm:$0xff]
          %v4029 = vld [vmem:[%s3 + $0x6d0] sm:$0xff]
          %v4030 = vld [vmem:[%s3 + $0x6d8] sm:$0xff]
          %v4031 = vld [vmem:[%s3 + $0x6e0] sm:$0xff]
          %v4032 = vld [vmem:[%s3 + $0x6e8] sm:$0xff]
          %v4033 = vld [vmem:[%s3 + $0x6f0] sm:$0xff]
          %v4034 = vld [vmem:[%s3 + $0x6f8] sm:$0xff]
          %v4035 = vld [vmem:[%s3 + $0x700] sm:$0xff]
          %v4036 = vld [vmem:[%s3 + $0x708] sm:$0xff]
          %v4037 = vld [vmem:[%s3 + $0x710] sm:$0xff]
          %v4038 = vld [vmem:[%s3 + $0x718] sm:$0xff]
          %v4039 = vld [vmem:[%s3 + $0x720] sm:$0xff]
          %v4040 = vld [vmem:[%s3 + $0x728] sm:$0xff]
          %v4041 = vld [vmem:[%s3 + $0x730] sm:$0xff]
          %v4042 = vld [vmem:[%s3 + $0x738] sm:$0xff]
          %v4043 = vld [vmem:[%s3 + $0x740] sm:$0xff]
          %v4044 = vld [vmem:[%s3 + $0x748] sm:$0xff]
          %v4045 = vld [vmem:[%s3 + $0x750] sm:$0xff]
          %v4046 = vld [vmem:[%s3 + $0x758] sm:$0xff]
          %v4047 = vld [vmem:[%s3 + $0x760] sm:$0xff]
          %v4048 = vld [vmem:[%s3 + $0x768] sm:$0xff]
          %v4049 = vld [vmem:[%s3 + $0x770] sm:$0xff]
          %v4050 = vld [vmem:[%s3 + $0x778] sm:$0xff]
          %v4051 = vld [vmem:[%s3 + $0x780] sm:$0xff]
          %v4052 = vld [vmem:[%s3 + $0x788] sm:$0xff]
          %v4053 = vld [vmem:[%s3 + $0x790] sm:$0xff]
          %v4054 = vld [vmem:[%s3 + $0x798] sm:$0xff]
          %v4055 = vld [vmem:[%s3 + $0x7a0] sm:$0xff]
          %v4056 = vld [vmem:[%s3 + $0x7a8] sm:$0xff]
          %v4057 = vld [vmem:[%s3 + $0x7b0] sm:$0xff]
          %v4058 = vld [vmem:[%s3 + $0x7b8] sm:$0xff]
          %v4059 = vld [vmem:[%s3 + $0x7c0] sm:$0xff]
          %v4060 = vld [vmem:[%s3 + $0x7c8] sm:$0xff]
          %v4061 = vld [vmem:[%s3 + $0x7d0] sm:$0xff]
          %v4062 = vld [vmem:[%s3 + $0x7d8] sm:$0xff]
          %v4063 = vld [vmem:[%s3 + $0x7e0] sm:$0xff]
          %v4064 = vld [vmem:[%s3 + $0x7e8] sm:$0xff]
          %v4065 = vld [vmem:[%s3 + $0x7f0] sm:$0xff]
          %v4066 = vld [vmem:[%s3 + $0x7f8] sm:$0xff]
          %v4067 = vld [vmem:[%s4] sm:$0xf]
          %v4069 = vlaneseq
          %v4070 = vshrl.u32 %v4069, 7
          %v4071 = vsub.s32 0, %v4070
          %v4072 = vrot.slane %v4067, %v4071
          %v4073 = vlaneseq
          %v4074 = vshrl.u32 %v4073, 7
          %v4075 = vsub.s32 1, %v4074
          %v4076 = vrot.slane %v4067, %v4075
          %v4077 = vlaneseq
          %v4078 = vshrl.u32 %v4077, 7
          %v4079 = vsub.s32 2, %v4078
          %v4080 = vrot.slane %v4067, %v4079
          %v4081 = vlaneseq
          %v4082 = vshrl.u32 %v4081, 7
          %v4083 = vsub.s32 3, %v4082
          %v4084 = vrot.slane %v4067, %v4083
          %v4345 = vunpack.c.l.b16 %v3811
          %v4346 = vunpack.c.h.b16 %v3811
          %v4347 = vunpack.c.l.b16 %v3812
          %v4348 = vunpack.c.h.b16 %v3812
          %v4349 = vunpack.c.l.b16 %v3813
          %v4350 = vunpack.c.h.b16 %v3813
          %v4351 = vunpack.c.l.b16 %v3814
          %v4352 = vunpack.c.h.b16 %v3814
          %v4353 = vunpack.c.l.b16 %v3815
          %v4354 = vunpack.c.h.b16 %v3815
          %v4355 = vunpack.c.l.b16 %v3816
          %v4356 = vunpack.c.h.b16 %v3816
          %v4357 = vunpack.c.l.b16 %v3817
          %v4358 = vunpack.c.h.b16 %v3817
          %v4359 = vunpack.c.l.b16 %v3818
          %v4360 = vunpack.c.h.b16 %v3818
          %v4361 = vunpack.c.l.b16 %v3819
          %v4362 = vunpack.c.h.b16 %v3819
          %v4363 = vunpack.c.l.b16 %v3820
          %v4364 = vunpack.c.h.b16 %v3820
          %v4365 = vunpack.c.l.b16 %v3821
          %v4366 = vunpack.c.h.b16 %v3821
          %v4367 = vunpack.c.l.b16 %v3822
          %v4368 = vunpack.c.h.b16 %v3822
          %v4369 = vunpack.c.l.b16 %v3823
          %v4370 = vunpack.c.h.b16 %v3823
          %v4371 = vunpack.c.l.b16 %v3824
          %v4372 = vunpack.c.h.b16 %v3824
          %v4373 = vunpack.c.l.b16 %v3825
          %v4374 = vunpack.c.h.b16 %v3825
          %v4375 = vunpack.c.l.b16 %v3826
          %v4376 = vunpack.c.h.b16 %v3826
          %v4377 = vunpack.c.l.b16 %v3827
          %v4378 = vunpack.c.h.b16 %v3827
          %v4379 = vunpack.c.l.b16 %v3828
          %v4380 = vunpack.c.h.b16 %v3828
          %v4381 = vunpack.c.l.b16 %v3829
          %v4382 = vunpack.c.h.b16 %v3829
          %v4383 = vunpack.c.l.b16 %v3830
          %v4384 = vunpack.c.h.b16 %v3830
          %v4385 = vunpack.c.l.b16 %v3831
          %v4386 = vunpack.c.h.b16 %v3831
          %v4387 = vunpack.c.l.b16 %v3832
          %v4388 = vunpack.c.h.b16 %v3832
          %v4389 = vunpack.c.l.b16 %v3833
          %v4390 = vunpack.c.h.b16 %v3833
          %v4391 = vunpack.c.l.b16 %v3834
          %v4392 = vunpack.c.h.b16 %v3834
          %v4393 = vunpack.c.l.b16 %v3835
          %v4394 = vunpack.c.h.b16 %v3835
          %v4395 = vunpack.c.l.b16 %v3836
          %v4396 = vunpack.c.h.b16 %v3836
          %v4397 = vunpack.c.l.b16 %v3837
          %v4398 = vunpack.c.h.b16 %v3837
          %v4399 = vunpack.c.l.b16 %v3838
          %v4400 = vunpack.c.h.b16 %v3838
          %v4401 = vunpack.c.l.b16 %v3839
          %v4402 = vunpack.c.h.b16 %v3839
          %v4403 = vunpack.c.l.b16 %v3840
          %v4404 = vunpack.c.h.b16 %v3840
          %v4405 = vunpack.c.l.b16 %v3841
          %v4406 = vunpack.c.h.b16 %v3841
          %v4407 = vunpack.c.l.b16 %v3842
          %v4408 = vunpack.c.h.b16 %v3842
          %v4409 = vunpack.c.l.b16 %v3843
          %v4410 = vunpack.c.h.b16 %v3843
          %v4411 = vunpack.c.l.b16 %v3844
          %v4412 = vunpack.c.h.b16 %v3844
          %v4413 = vunpack.c.l.b16 %v3845
          %v4414 = vunpack.c.h.b16 %v3845
          %v4415 = vunpack.c.l.b16 %v3846
          %v4416 = vunpack.c.h.b16 %v3846
          %v4417 = vunpack.c.l.b16 %v3847
          %v4418 = vunpack.c.h.b16 %v3847
          %v4419 = vunpack.c.l.b16 %v3848
          %v4420 = vunpack.c.h.b16 %v3848
          %v4421 = vunpack.c.l.b16 %v3849
          %v4422 = vunpack.c.h.b16 %v3849
          %v4423 = vunpack.c.l.b16 %v3850
          %v4424 = vunpack.c.h.b16 %v3850
          %v4425 = vunpack.c.l.b16 %v3851
          %v4426 = vunpack.c.h.b16 %v3851
          %v4427 = vunpack.c.l.b16 %v3852
          %v4428 = vunpack.c.h.b16 %v3852
          %v4429 = vunpack.c.l.b16 %v3853
          %v4430 = vunpack.c.h.b16 %v3853
          %v4431 = vunpack.c.l.b16 %v3854
          %v4432 = vunpack.c.h.b16 %v3854
          %v4433 = vunpack.c.l.b16 %v3855
          %v4434 = vunpack.c.h.b16 %v3855
          %v4435 = vunpack.c.l.b16 %v3856
          %v4436 = vunpack.c.h.b16 %v3856
          %v4437 = vunpack.c.l.b16 %v3857
          %v4438 = vunpack.c.h.b16 %v3857
          %v4439 = vunpack.c.l.b16 %v3858
          %v4440 = vunpack.c.h.b16 %v3858
          %v4441 = vunpack.c.l.b16 %v3859
          %v4442 = vunpack.c.h.b16 %v3859
          %v4443 = vunpack.c.l.b16 %v3860
          %v4444 = vunpack.c.h.b16 %v3860
          %v4445 = vunpack.c.l.b16 %v3861
          %v4446 = vunpack.c.h.b16 %v3861
          %v4447 = vunpack.c.l.b16 %v3862
          %v4448 = vunpack.c.h.b16 %v3862
          %v4449 = vunpack.c.l.b16 %v3863
          %v4450 = vunpack.c.h.b16 %v3863
          %v4451 = vunpack.c.l.b16 %v3864
          %v4452 = vunpack.c.h.b16 %v3864
          %v4453 = vunpack.c.l.b16 %v3865
          %v4454 = vunpack.c.h.b16 %v3865
          %v4455 = vunpack.c.l.b16 %v3866
          %v4456 = vunpack.c.h.b16 %v3866
          %v4457 = vunpack.c.l.b16 %v3867
          %v4458 = vunpack.c.h.b16 %v3867
          %v4459 = vunpack.c.l.b16 %v3868
          %v4460 = vunpack.c.h.b16 %v3868
          %v4461 = vunpack.c.l.b16 %v3869
          %v4462 = vunpack.c.h.b16 %v3869
          %v4463 = vunpack.c.l.b16 %v3870
          %v4464 = vunpack.c.h.b16 %v3870
          %v4465 = vunpack.c.l.b16 %v3871
          %v4466 = vunpack.c.h.b16 %v3871
          %v4467 = vunpack.c.l.b16 %v3872
          %v4468 = vunpack.c.h.b16 %v3872
          %v4469 = vunpack.c.l.b16 %v3873
          %v4470 = vunpack.c.h.b16 %v3873
          %v4471 = vunpack.c.l.b16 %v3874
          %v4472 = vunpack.c.h.b16 %v3874
          %v4473 = vunpack.c.l.b16 %v3875
          %v4474 = vunpack.c.h.b16 %v3875
          %v4475 = vunpack.c.l.b16 %v3876
          %v4476 = vunpack.c.h.b16 %v3876
          %v4477 = vunpack.c.l.b16 %v3877
          %v4478 = vunpack.c.h.b16 %v3877
          %v4479 = vunpack.c.l.b16 %v3878
          %v4480 = vunpack.c.h.b16 %v3878
          %v4481 = vunpack.c.l.b16 %v3879
          %v4482 = vunpack.c.h.b16 %v3879
          %v4483 = vunpack.c.l.b16 %v3880
          %v4484 = vunpack.c.h.b16 %v3880
          %v4485 = vunpack.c.l.b16 %v3881
          %v4486 = vunpack.c.h.b16 %v3881
          %v4487 = vunpack.c.l.b16 %v3882
          %v4488 = vunpack.c.h.b16 %v3882
          %v4489 = vunpack.c.l.b16 %v3883
          %v4490 = vunpack.c.h.b16 %v3883
          %v4491 = vunpack.c.l.b16 %v3884
          %v4492 = vunpack.c.h.b16 %v3884
          %v4493 = vunpack.c.l.b16 %v3885
          %v4494 = vunpack.c.h.b16 %v3885
          %v4495 = vunpack.c.l.b16 %v3886
          %v4496 = vunpack.c.h.b16 %v3886
          %v4497 = vunpack.c.l.b16 %v3887
          %v4498 = vunpack.c.h.b16 %v3887
          %v4499 = vunpack.c.l.b16 %v3888
          %v4500 = vunpack.c.h.b16 %v3888
          %v4501 = vunpack.c.l.b16 %v3889
          %v4502 = vunpack.c.h.b16 %v3889
          %v4503 = vunpack.c.l.b16 %v3890
          %v4504 = vunpack.c.h.b16 %v3890
          %v4505 = vunpack.c.l.b16 %v3891
          %v4506 = vunpack.c.h.b16 %v3891
          %v4507 = vunpack.c.l.b16 %v3892
          %v4508 = vunpack.c.h.b16 %v3892
          %v4509 = vunpack.c.l.b16 %v3893
          %v4510 = vunpack.c.h.b16 %v3893
          %v4511 = vunpack.c.l.b16 %v3894
          %v4512 = vunpack.c.h.b16 %v3894
          %v4513 = vunpack.c.l.b16 %v3895
          %v4514 = vunpack.c.h.b16 %v3895
          %v4515 = vunpack.c.l.b16 %v3896
          %v4516 = vunpack.c.h.b16 %v3896
          %v4517 = vunpack.c.l.b16 %v3897
          %v4518 = vunpack.c.h.b16 %v3897
          %v4519 = vunpack.c.l.b16 %v3898
          %v4520 = vunpack.c.h.b16 %v3898
          %v4521 = vunpack.c.l.b16 %v3899
          %v4522 = vunpack.c.h.b16 %v3899
          %v4523 = vunpack.c.l.b16 %v3900
          %v4524 = vunpack.c.h.b16 %v3900
          %v4525 = vunpack.c.l.b16 %v3901
          %v4526 = vunpack.c.h.b16 %v3901
          %v4527 = vunpack.c.l.b16 %v3902
          %v4528 = vunpack.c.h.b16 %v3902
          %v4529 = vunpack.c.l.b16 %v3903
          %v4530 = vunpack.c.h.b16 %v3903
          %v4531 = vunpack.c.l.b16 %v3904
          %v4532 = vunpack.c.h.b16 %v3904
          %v4533 = vunpack.c.l.b16 %v3905
          %v4534 = vunpack.c.h.b16 %v3905
          %v4535 = vunpack.c.l.b16 %v3906
          %v4536 = vunpack.c.h.b16 %v3906
          %v4537 = vunpack.c.l.b16 %v3907
          %v4538 = vunpack.c.h.b16 %v3907
          %v4539 = vunpack.c.l.b16 %v3908
          %v4540 = vunpack.c.h.b16 %v3908
          %v4541 = vunpack.c.l.b16 %v3909
          %v4542 = vunpack.c.h.b16 %v3909
          %v4543 = vunpack.c.l.b16 %v3910
          %v4544 = vunpack.c.h.b16 %v3910
          %v4545 = vunpack.c.l.b16 %v3911
          %v4546 = vunpack.c.h.b16 %v3911
          %v4547 = vunpack.c.l.b16 %v3912
          %v4548 = vunpack.c.h.b16 %v3912
          %v4549 = vunpack.c.l.b16 %v3913
          %v4550 = vunpack.c.h.b16 %v3913
          %v4551 = vunpack.c.l.b16 %v3914
          %v4552 = vunpack.c.h.b16 %v3914
          %v4553 = vunpack.c.l.b16 %v3915
          %v4554 = vunpack.c.h.b16 %v3915
          %v4555 = vunpack.c.l.b16 %v3916
          %v4556 = vunpack.c.h.b16 %v3916
          %v4557 = vunpack.c.l.b16 %v3917
          %v4558 = vunpack.c.h.b16 %v3917
          %v4559 = vunpack.c.l.b16 %v3918
          %v4560 = vunpack.c.h.b16 %v3918
          %v4561 = vunpack.c.l.b16 %v3919
          %v4562 = vunpack.c.h.b16 %v3919
          %v4563 = vunpack.c.l.b16 %v3920
          %v4564 = vunpack.c.h.b16 %v3920
          %v4565 = vunpack.c.l.b16 %v3921
          %v4566 = vunpack.c.h.b16 %v3921
          %v4567 = vunpack.c.l.b16 %v3922
          %v4568 = vunpack.c.h.b16 %v3922
          %v4569 = vunpack.c.l.b16 %v3923
          %v4570 = vunpack.c.h.b16 %v3923
          %v4571 = vunpack.c.l.b16 %v3924
          %v4572 = vunpack.c.h.b16 %v3924
          %v4573 = vunpack.c.l.b16 %v3925
          %v4574 = vunpack.c.h.b16 %v3925
          %v4575 = vunpack.c.l.b16 %v3926
          %v4576 = vunpack.c.h.b16 %v3926
          %v4577 = vunpack.c.l.b16 %v3927
          %v4578 = vunpack.c.h.b16 %v3927
          %v4579 = vunpack.c.l.b16 %v3928
          %v4580 = vunpack.c.h.b16 %v3928
          %v4581 = vunpack.c.l.b16 %v3929
          %v4582 = vunpack.c.h.b16 %v3929
          %v4583 = vunpack.c.l.b16 %v3930
          %v4584 = vunpack.c.h.b16 %v3930
          %v4585 = vunpack.c.l.b16 %v3931
          %v4586 = vunpack.c.h.b16 %v3931
          %v4587 = vunpack.c.l.b16 %v3932
          %v4588 = vunpack.c.h.b16 %v3932
          %v4589 = vunpack.c.l.b16 %v3933
          %v4590 = vunpack.c.h.b16 %v3933
          %v4591 = vunpack.c.l.b16 %v3934
          %v4592 = vunpack.c.h.b16 %v3934
          %v4593 = vunpack.c.l.b16 %v3935
          %v4594 = vunpack.c.h.b16 %v3935
          %v4595 = vunpack.c.l.b16 %v3936
          %v4596 = vunpack.c.h.b16 %v3936
          %v4597 = vunpack.c.l.b16 %v3937
          %v4598 = vunpack.c.h.b16 %v3937
          %v4599 = vunpack.c.l.b16 %v3938
          %v4600 = vunpack.c.h.b16 %v3938
          %v4601 = vunpack.c.l.b16 %v3939
          %v4602 = vunpack.c.h.b16 %v3939
          %v4603 = vunpack.c.l.b16 %v3940
          %v4604 = vunpack.c.h.b16 %v3940
          %v4605 = vunpack.c.l.b16 %v3941
          %v4606 = vunpack.c.h.b16 %v3941
          %v4607 = vunpack.c.l.b16 %v3942
          %v4608 = vunpack.c.h.b16 %v3942
          %v4609 = vunpack.c.l.b16 %v3943
          %v4610 = vunpack.c.h.b16 %v3943
          %v4611 = vunpack.c.l.b16 %v3944
          %v4612 = vunpack.c.h.b16 %v3944
          %v4613 = vunpack.c.l.b16 %v3945
          %v4614 = vunpack.c.h.b16 %v3945
          %v4615 = vunpack.c.l.b16 %v3946
          %v4616 = vunpack.c.h.b16 %v3946
          %v4617 = vunpack.c.l.b16 %v3947
          %v4618 = vunpack.c.h.b16 %v3947
          %v4619 = vunpack.c.l.b16 %v3948
          %v4620 = vunpack.c.h.b16 %v3948
          %v4621 = vunpack.c.l.b16 %v3949
          %v4622 = vunpack.c.h.b16 %v3949
          %v4623 = vunpack.c.l.b16 %v3950
          %v4624 = vunpack.c.h.b16 %v3950
          %v4625 = vunpack.c.l.b16 %v3951
          %v4626 = vunpack.c.h.b16 %v3951
          %v4627 = vunpack.c.l.b16 %v3952
          %v4628 = vunpack.c.h.b16 %v3952
          %v4629 = vunpack.c.l.b16 %v3953
          %v4630 = vunpack.c.h.b16 %v3953
          %v4631 = vunpack.c.l.b16 %v3954
          %v4632 = vunpack.c.h.b16 %v3954
          %v4633 = vunpack.c.l.b16 %v3955
          %v4634 = vunpack.c.h.b16 %v3955
          %v4635 = vunpack.c.l.b16 %v3956
          %v4636 = vunpack.c.h.b16 %v3956
          %v4637 = vunpack.c.l.b16 %v3957
          %v4638 = vunpack.c.h.b16 %v3957
          %v4639 = vunpack.c.l.b16 %v3958
          %v4640 = vunpack.c.h.b16 %v3958
          %v4641 = vunpack.c.l.b16 %v3959
          %v4642 = vunpack.c.h.b16 %v3959
          %v4643 = vunpack.c.l.b16 %v3960
          %v4644 = vunpack.c.h.b16 %v3960
          %v4645 = vunpack.c.l.b16 %v3961
          %v4646 = vunpack.c.h.b16 %v3961
          %v4647 = vunpack.c.l.b16 %v3962
          %v4648 = vunpack.c.h.b16 %v3962
          %v4649 = vunpack.c.l.b16 %v3963
          %v4650 = vunpack.c.h.b16 %v3963
          %v4651 = vunpack.c.l.b16 %v3964
          %v4652 = vunpack.c.h.b16 %v3964
          %v4653 = vunpack.c.l.b16 %v3965
          %v4654 = vunpack.c.h.b16 %v3965
          %v4655 = vunpack.c.l.b16 %v3966
          %v4656 = vunpack.c.h.b16 %v3966
          %v4657 = vunpack.c.l.b16 %v3967
          %v4658 = vunpack.c.h.b16 %v3967
          %v4659 = vunpack.c.l.b16 %v3968
          %v4660 = vunpack.c.h.b16 %v3968
          %v4661 = vunpack.c.l.b16 %v3969
          %v4662 = vunpack.c.h.b16 %v3969
          %v4663 = vunpack.c.l.b16 %v3970
          %v4664 = vunpack.c.h.b16 %v3970
          %v4665 = vunpack.c.l.b16 %v3971
          %v4666 = vunpack.c.h.b16 %v3971
          %v4667 = vunpack.c.l.b16 %v3972
          %v4668 = vunpack.c.h.b16 %v3972
          %v4669 = vunpack.c.l.b16 %v3973
          %v4670 = vunpack.c.h.b16 %v3973
          %v4671 = vunpack.c.l.b16 %v3974
          %v4672 = vunpack.c.h.b16 %v3974
          %v4673 = vunpack.c.l.b16 %v3975
          %v4674 = vunpack.c.h.b16 %v3975
          %v4675 = vunpack.c.l.b16 %v3976
          %v4676 = vunpack.c.h.b16 %v3976
          %v4677 = vunpack.c.l.b16 %v3977
          %v4678 = vunpack.c.h.b16 %v3977
          %v4679 = vunpack.c.l.b16 %v3978
          %v4680 = vunpack.c.h.b16 %v3978
          %v4681 = vunpack.c.l.b16 %v3979
          %v4682 = vunpack.c.h.b16 %v3979
          %v4683 = vunpack.c.l.b16 %v3980
          %v4684 = vunpack.c.h.b16 %v3980
          %v4685 = vunpack.c.l.b16 %v3981
          %v4686 = vunpack.c.h.b16 %v3981
          %v4687 = vunpack.c.l.b16 %v3982
          %v4688 = vunpack.c.h.b16 %v3982
          %v4689 = vunpack.c.l.b16 %v3983
          %v4690 = vunpack.c.h.b16 %v3983
          %v4691 = vunpack.c.l.b16 %v3984
          %v4692 = vunpack.c.h.b16 %v3984
          %v4693 = vunpack.c.l.b16 %v3985
          %v4694 = vunpack.c.h.b16 %v3985
          %v4695 = vunpack.c.l.b16 %v3986
          %v4696 = vunpack.c.h.b16 %v3986
          %v4697 = vunpack.c.l.b16 %v3987
          %v4698 = vunpack.c.h.b16 %v3987
          %v4699 = vunpack.c.l.b16 %v3988
          %v4700 = vunpack.c.h.b16 %v3988
          %v4701 = vunpack.c.l.b16 %v3989
          %v4702 = vunpack.c.h.b16 %v3989
          %v4703 = vunpack.c.l.b16 %v3990
          %v4704 = vunpack.c.h.b16 %v3990
          %v4705 = vunpack.c.l.b16 %v3991
          %v4706 = vunpack.c.h.b16 %v3991
          %v4707 = vunpack.c.l.b16 %v3992
          %v4708 = vunpack.c.h.b16 %v3992
          %v4709 = vunpack.c.l.b16 %v3993
          %v4710 = vunpack.c.h.b16 %v3993
          %v4711 = vunpack.c.l.b16 %v3994
          %v4712 = vunpack.c.h.b16 %v3994
          %v4713 = vunpack.c.l.b16 %v3995
          %v4714 = vunpack.c.h.b16 %v3995
          %v4715 = vunpack.c.l.b16 %v3996
          %v4716 = vunpack.c.h.b16 %v3996
          %v4717 = vunpack.c.l.b16 %v3997
          %v4718 = vunpack.c.h.b16 %v3997
          %v4719 = vunpack.c.l.b16 %v3998
          %v4720 = vunpack.c.h.b16 %v3998
          %v4721 = vunpack.c.l.b16 %v3999
          %v4722 = vunpack.c.h.b16 %v3999
          %v4723 = vunpack.c.l.b16 %v4000
          %v4724 = vunpack.c.h.b16 %v4000
          %v4725 = vunpack.c.l.b16 %v4001
          %v4726 = vunpack.c.h.b16 %v4001
          %v4727 = vunpack.c.l.b16 %v4002
          %v4728 = vunpack.c.h.b16 %v4002
          %v4729 = vunpack.c.l.b16 %v4003
          %v4730 = vunpack.c.h.b16 %v4003
          %v4731 = vunpack.c.l.b16 %v4004
          %v4732 = vunpack.c.h.b16 %v4004
          %v4733 = vunpack.c.l.b16 %v4005
          %v4734 = vunpack.c.h.b16 %v4005
          %v4735 = vunpack.c.l.b16 %v4006
          %v4736 = vunpack.c.h.b16 %v4006
          %v4737 = vunpack.c.l.b16 %v4007
          %v4738 = vunpack.c.h.b16 %v4007
          %v4739 = vunpack.c.l.b16 %v4008
          %v4740 = vunpack.c.h.b16 %v4008
          %v4741 = vunpack.c.l.b16 %v4009
          %v4742 = vunpack.c.h.b16 %v4009
          %v4743 = vunpack.c.l.b16 %v4010
          %v4744 = vunpack.c.h.b16 %v4010
          %v4745 = vunpack.c.l.b16 %v4011
          %v4746 = vunpack.c.h.b16 %v4011
          %v4747 = vunpack.c.l.b16 %v4012
          %v4748 = vunpack.c.h.b16 %v4012
          %v4749 = vunpack.c.l.b16 %v4013
          %v4750 = vunpack.c.h.b16 %v4013
          %v4751 = vunpack.c.l.b16 %v4014
          %v4752 = vunpack.c.h.b16 %v4014
          %v4753 = vunpack.c.l.b16 %v4015
          %v4754 = vunpack.c.h.b16 %v4015
          %v4755 = vunpack.c.l.b16 %v4016
          %v4756 = vunpack.c.h.b16 %v4016
          %v4757 = vunpack.c.l.b16 %v4017
          %v4758 = vunpack.c.h.b16 %v4017
          %v4759 = vunpack.c.l.b16 %v4018
          %v4760 = vunpack.c.h.b16 %v4018
          %v4761 = vunpack.c.l.b16 %v4019
          %v4762 = vunpack.c.h.b16 %v4019
          %v4763 = vunpack.c.l.b16 %v4020
          %v4764 = vunpack.c.h.b16 %v4020
          %v4765 = vunpack.c.l.b16 %v4021
          %v4766 = vunpack.c.h.b16 %v4021
          %v4767 = vunpack.c.l.b16 %v4022
          %v4768 = vunpack.c.h.b16 %v4022
          %v4769 = vunpack.c.l.b16 %v4023
          %v4770 = vunpack.c.h.b16 %v4023
          %v4771 = vunpack.c.l.b16 %v4024
          %v4772 = vunpack.c.h.b16 %v4024
          %v4773 = vunpack.c.l.b16 %v4025
          %v4774 = vunpack.c.h.b16 %v4025
          %v4775 = vunpack.c.l.b16 %v4026
          %v4776 = vunpack.c.h.b16 %v4026
          %v4777 = vunpack.c.l.b16 %v4027
          %v4778 = vunpack.c.h.b16 %v4027
          %v4779 = vunpack.c.l.b16 %v4028
          %v4780 = vunpack.c.h.b16 %v4028
          %v4781 = vunpack.c.l.b16 %v4029
          %v4782 = vunpack.c.h.b16 %v4029
          %v4783 = vunpack.c.l.b16 %v4030
          %v4784 = vunpack.c.h.b16 %v4030
          %v4785 = vunpack.c.l.b16 %v4031
          %v4786 = vunpack.c.h.b16 %v4031
          %v4787 = vunpack.c.l.b16 %v4032
          %v4788 = vunpack.c.h.b16 %v4032
          %v4789 = vunpack.c.l.b16 %v4033
          %v4790 = vunpack.c.h.b16 %v4033
          %v4791 = vunpack.c.l.b16 %v4034
          %v4792 = vunpack.c.h.b16 %v4034
          %v4793 = vunpack.c.l.b16 %v4035
          %v4794 = vunpack.c.h.b16 %v4035
          %v4795 = vunpack.c.l.b16 %v4036
          %v4796 = vunpack.c.h.b16 %v4036
          %v4797 = vunpack.c.l.b16 %v4037
          %v4798 = vunpack.c.h.b16 %v4037
          %v4799 = vunpack.c.l.b16 %v4038
          %v4800 = vunpack.c.h.b16 %v4038
          %v4801 = vunpack.c.l.b16 %v4039
          %v4802 = vunpack.c.h.b16 %v4039
          %v4803 = vunpack.c.l.b16 %v4040
          %v4804 = vunpack.c.h.b16 %v4040
          %v4805 = vunpack.c.l.b16 %v4041
          %v4806 = vunpack.c.h.b16 %v4041
          %v4807 = vunpack.c.l.b16 %v4042
          %v4808 = vunpack.c.h.b16 %v4042
          %v4809 = vunpack.c.l.b16 %v4043
          %v4810 = vunpack.c.h.b16 %v4043
          %v4811 = vunpack.c.l.b16 %v4044
          %v4812 = vunpack.c.h.b16 %v4044
          %v4813 = vunpack.c.l.b16 %v4045
          %v4814 = vunpack.c.h.b16 %v4045
          %v4815 = vunpack.c.l.b16 %v4046
          %v4816 = vunpack.c.h.b16 %v4046
          %v4817 = vunpack.c.l.b16 %v4047
          %v4818 = vunpack.c.h.b16 %v4047
          %v4819 = vunpack.c.l.b16 %v4048
          %v4820 = vunpack.c.h.b16 %v4048
          %v4821 = vunpack.c.l.b16 %v4049
          %v4822 = vunpack.c.h.b16 %v4049
          %v4823 = vunpack.c.l.b16 %v4050
          %v4824 = vunpack.c.h.b16 %v4050
          %v4825 = vunpack.c.l.b16 %v4051
          %v4826 = vunpack.c.h.b16 %v4051
          %v4827 = vunpack.c.l.b16 %v4052
          %v4828 = vunpack.c.h.b16 %v4052
          %v4829 = vunpack.c.l.b16 %v4053
          %v4830 = vunpack.c.h.b16 %v4053
          %v4831 = vunpack.c.l.b16 %v4054
          %v4832 = vunpack.c.h.b16 %v4054
          %v4833 = vunpack.c.l.b16 %v4055
          %v4834 = vunpack.c.h.b16 %v4055
          %v4835 = vunpack.c.l.b16 %v4056
          %v4836 = vunpack.c.h.b16 %v4056
          %v4837 = vunpack.c.l.b16 %v4057
          %v4838 = vunpack.c.h.b16 %v4057
          %v4839 = vunpack.c.l.b16 %v4058
          %v4840 = vunpack.c.h.b16 %v4058
          %v4841 = vunpack.c.l.b16 %v4059
          %v4842 = vunpack.c.h.b16 %v4059
          %v4843 = vunpack.c.l.b16 %v4060
          %v4844 = vunpack.c.h.b16 %v4060
          %v4845 = vunpack.c.l.b16 %v4061
          %v4846 = vunpack.c.h.b16 %v4061
          %v4847 = vunpack.c.l.b16 %v4062
          %v4848 = vunpack.c.h.b16 %v4062
          %v4849 = vunpack.c.l.b16 %v4063
          %v4850 = vunpack.c.h.b16 %v4063
          %v4851 = vunpack.c.l.b16 %v4064
          %v4852 = vunpack.c.h.b16 %v4064
          %v4853 = vunpack.c.l.b16 %v4065
          %v4854 = vunpack.c.h.b16 %v4065
          %v4855 = vunpack.c.l.b16 %v4066
          %v4856 = vunpack.c.h.b16 %v4066
          %v4857 = vpack.c.b16 %v4349, %v4345
          %v4858 = vpack.c.b16 %v4350, %v4346
          %v4859 = vpack.c.b16 %v4351, %v4347
          %v4860 = vpack.c.b16 %v4352, %v4348
          %v4861 = vpack.c.b16 %v4357, %v4353
          %v4862 = vpack.c.b16 %v4358, %v4354
          %v4863 = vpack.c.b16 %v4359, %v4355
          %v4864 = vpack.c.b16 %v4360, %v4356
          %v4865 = vpack.c.b16 %v4365, %v4361
          %v4866 = vpack.c.b16 %v4366, %v4362
          %v4867 = vpack.c.b16 %v4367, %v4363
          %v4868 = vpack.c.b16 %v4368, %v4364
          %v4869 = vpack.c.b16 %v4373, %v4369
          %v4870 = vpack.c.b16 %v4374, %v4370
          %v4871 = vpack.c.b16 %v4375, %v4371
          %v4872 = vpack.c.b16 %v4376, %v4372
          %v4873 = vpack.c.b16 %v4381, %v4377
          %v4874 = vpack.c.b16 %v4382, %v4378
          %v4875 = vpack.c.b16 %v4383, %v4379
          %v4876 = vpack.c.b16 %v4384, %v4380
          %v4877 = vpack.c.b16 %v4389, %v4385
          %v4878 = vpack.c.b16 %v4390, %v4386
          %v4879 = vpack.c.b16 %v4391, %v4387
          %v4880 = vpack.c.b16 %v4392, %v4388
          %v4881 = vpack.c.b16 %v4397, %v4393
          %v4882 = vpack.c.b16 %v4398, %v4394
          %v4883 = vpack.c.b16 %v4399, %v4395
          %v4884 = vpack.c.b16 %v4400, %v4396
          %v4885 = vpack.c.b16 %v4405, %v4401
          %v4886 = vpack.c.b16 %v4406, %v4402
          %v4887 = vpack.c.b16 %v4407, %v4403
          %v4888 = vpack.c.b16 %v4408, %v4404
          %v4889 = vpack.c.b16 %v4413, %v4409
          %v4890 = vpack.c.b16 %v4414, %v4410
          %v4891 = vpack.c.b16 %v4415, %v4411
          %v4892 = vpack.c.b16 %v4416, %v4412
          %v4893 = vpack.c.b16 %v4421, %v4417
          %v4894 = vpack.c.b16 %v4422, %v4418
          %v4895 = vpack.c.b16 %v4423, %v4419
          %v4896 = vpack.c.b16 %v4424, %v4420
          %v4897 = vpack.c.b16 %v4429, %v4425
          %v4898 = vpack.c.b16 %v4430, %v4426
          %v4899 = vpack.c.b16 %v4431, %v4427
          %v4900 = vpack.c.b16 %v4432, %v4428
          %v4901 = vpack.c.b16 %v4437, %v4433
          %v4902 = vpack.c.b16 %v4438, %v4434
          %v4903 = vpack.c.b16 %v4439, %v4435
          %v4904 = vpack.c.b16 %v4440, %v4436
          %v4905 = vpack.c.b16 %v4445, %v4441
          %v4906 = vpack.c.b16 %v4446, %v4442
          %v4907 = vpack.c.b16 %v4447, %v4443
          %v4908 = vpack.c.b16 %v4448, %v4444
          %v4909 = vpack.c.b16 %v4453, %v4449
          %v4910 = vpack.c.b16 %v4454, %v4450
          %v4911 = vpack.c.b16 %v4455, %v4451
          %v4912 = vpack.c.b16 %v4456, %v4452
          %v4913 = vpack.c.b16 %v4461, %v4457
          %v4914 = vpack.c.b16 %v4462, %v4458
          %v4915 = vpack.c.b16 %v4463, %v4459
          %v4916 = vpack.c.b16 %v4464, %v4460
          %v4917 = vpack.c.b16 %v4469, %v4465
          %v4918 = vpack.c.b16 %v4470, %v4466
          %v4919 = vpack.c.b16 %v4471, %v4467
          %v4920 = vpack.c.b16 %v4472, %v4468
          %v4921 = vpack.c.b16 %v4477, %v4473
          %v4922 = vpack.c.b16 %v4478, %v4474
          %v4923 = vpack.c.b16 %v4479, %v4475
          %v4924 = vpack.c.b16 %v4480, %v4476
          %v4925 = vpack.c.b16 %v4485, %v4481
          %v4926 = vpack.c.b16 %v4486, %v4482
          %v4927 = vpack.c.b16 %v4487, %v4483
          %v4928 = vpack.c.b16 %v4488, %v4484
          %v4929 = vpack.c.b16 %v4493, %v4489
          %v4930 = vpack.c.b16 %v4494, %v4490
          %v4931 = vpack.c.b16 %v4495, %v4491
          %v4932 = vpack.c.b16 %v4496, %v4492
          %v4933 = vpack.c.b16 %v4501, %v4497
          %v4934 = vpack.c.b16 %v4502, %v4498
          %v4935 = vpack.c.b16 %v4503, %v4499
          %v4936 = vpack.c.b16 %v4504, %v4500
          %v4937 = vpack.c.b16 %v4509, %v4505
          %v4938 = vpack.c.b16 %v4510, %v4506
          %v4939 = vpack.c.b16 %v4511, %v4507
          %v4940 = vpack.c.b16 %v4512, %v4508
          %v4941 = vpack.c.b16 %v4517, %v4513
          %v4942 = vpack.c.b16 %v4518, %v4514
          %v4943 = vpack.c.b16 %v4519, %v4515
          %v4944 = vpack.c.b16 %v4520, %v4516
          %v4945 = vpack.c.b16 %v4525, %v4521
          %v4946 = vpack.c.b16 %v4526, %v4522
          %v4947 = vpack.c.b16 %v4527, %v4523
          %v4948 = vpack.c.b16 %v4528, %v4524
          %v4949 = vpack.c.b16 %v4533, %v4529
          %v4950 = vpack.c.b16 %v4534, %v4530
          %v4951 = vpack.c.b16 %v4535, %v4531
          %v4952 = vpack.c.b16 %v4536, %v4532
          %v4953 = vpack.c.b16 %v4541, %v4537
          %v4954 = vpack.c.b16 %v4542, %v4538
          %v4955 = vpack.c.b16 %v4543, %v4539
          %v4956 = vpack.c.b16 %v4544, %v4540
          %v4957 = vpack.c.b16 %v4549, %v4545
          %v4958 = vpack.c.b16 %v4550, %v4546
          %v4959 = vpack.c.b16 %v4551, %v4547
          %v4960 = vpack.c.b16 %v4552, %v4548
          %v4961 = vpack.c.b16 %v4557, %v4553
          %v4962 = vpack.c.b16 %v4558, %v4554
          %v4963 = vpack.c.b16 %v4559, %v4555
          %v4964 = vpack.c.b16 %v4560, %v4556
          %v4965 = vpack.c.b16 %v4565, %v4561
          %v4966 = vpack.c.b16 %v4566, %v4562
          %v4967 = vpack.c.b16 %v4567, %v4563
          %v4968 = vpack.c.b16 %v4568, %v4564
          %v4969 = vpack.c.b16 %v4573, %v4569
          %v4970 = vpack.c.b16 %v4574, %v4570
          %v4971 = vpack.c.b16 %v4575, %v4571
          %v4972 = vpack.c.b16 %v4576, %v4572
          %v4973 = vpack.c.b16 %v4581, %v4577
          %v4974 = vpack.c.b16 %v4582, %v4578
          %v4975 = vpack.c.b16 %v4583, %v4579
          %v4976 = vpack.c.b16 %v4584, %v4580
          %v4977 = vpack.c.b16 %v4589, %v4585
          %v4978 = vpack.c.b16 %v4590, %v4586
          %v4979 = vpack.c.b16 %v4591, %v4587
          %v4980 = vpack.c.b16 %v4592, %v4588
          %v4981 = vpack.c.b16 %v4597, %v4593
          %v4982 = vpack.c.b16 %v4598, %v4594
          %v4983 = vpack.c.b16 %v4599, %v4595
          %v4984 = vpack.c.b16 %v4600, %v4596
          %v4985 = vpack.c.b16 %v4605, %v4601
          %v4986 = vpack.c.b16 %v4606, %v4602
          %v4987 = vpack.c.b16 %v4607, %v4603
          %v4988 = vpack.c.b16 %v4608, %v4604
          %v4989 = vpack.c.b16 %v4613, %v4609
          %v4990 = vpack.c.b16 %v4614, %v4610
          %v4991 = vpack.c.b16 %v4615, %v4611
          %v4992 = vpack.c.b16 %v4616, %v4612
          %v4993 = vpack.c.b16 %v4621, %v4617
          %v4994 = vpack.c.b16 %v4622, %v4618
          %v4995 = vpack.c.b16 %v4623, %v4619
          %v4996 = vpack.c.b16 %v4624, %v4620
          %v4997 = vpack.c.b16 %v4629, %v4625
          %v4998 = vpack.c.b16 %v4630, %v4626
          %v4999 = vpack.c.b16 %v4631, %v4627
          %v5000 = vpack.c.b16 %v4632, %v4628
          %v5001 = vpack.c.b16 %v4637, %v4633
          %v5002 = vpack.c.b16 %v4638, %v4634
          %v5003 = vpack.c.b16 %v4639, %v4635
          %v5004 = vpack.c.b16 %v4640, %v4636
          %v5005 = vpack.c.b16 %v4645, %v4641
          %v5006 = vpack.c.b16 %v4646, %v4642
          %v5007 = vpack.c.b16 %v4647, %v4643
          %v5008 = vpack.c.b16 %v4648, %v4644
          %v5009 = vpack.c.b16 %v4653, %v4649
          %v5010 = vpack.c.b16 %v4654, %v4650
          %v5011 = vpack.c.b16 %v4655, %v4651
          %v5012 = vpack.c.b16 %v4656, %v4652
          %v5013 = vpack.c.b16 %v4661, %v4657
          %v5014 = vpack.c.b16 %v4662, %v4658
          %v5015 = vpack.c.b16 %v4663, %v4659
          %v5016 = vpack.c.b16 %v4664, %v4660
          %v5017 = vpack.c.b16 %v4669, %v4665
          %v5018 = vpack.c.b16 %v4670, %v4666
          %v5019 = vpack.c.b16 %v4671, %v4667
          %v5020 = vpack.c.b16 %v4672, %v4668
          %v5021 = vpack.c.b16 %v4677, %v4673
          %v5022 = vpack.c.b16 %v4678, %v4674
          %v5023 = vpack.c.b16 %v4679, %v4675
          %v5024 = vpack.c.b16 %v4680, %v4676
          %v5025 = vpack.c.b16 %v4685, %v4681
          %v5026 = vpack.c.b16 %v4686, %v4682
          %v5027 = vpack.c.b16 %v4687, %v4683
          %v5028 = vpack.c.b16 %v4688, %v4684
          %v5029 = vpack.c.b16 %v4693, %v4689
          %v5030 = vpack.c.b16 %v4694, %v4690
          %v5031 = vpack.c.b16 %v4695, %v4691
          %v5032 = vpack.c.b16 %v4696, %v4692
          %v5033 = vpack.c.b16 %v4701, %v4697
          %v5034 = vpack.c.b16 %v4702, %v4698
          %v5035 = vpack.c.b16 %v4703, %v4699
          %v5036 = vpack.c.b16 %v4704, %v4700
          %v5037 = vpack.c.b16 %v4709, %v4705
          %v5038 = vpack.c.b16 %v4710, %v4706
          %v5039 = vpack.c.b16 %v4711, %v4707
          %v5040 = vpack.c.b16 %v4712, %v4708
          %v5041 = vpack.c.b16 %v4717, %v4713
          %v5042 = vpack.c.b16 %v4718, %v4714
          %v5043 = vpack.c.b16 %v4719, %v4715
          %v5044 = vpack.c.b16 %v4720, %v4716
          %v5045 = vpack.c.b16 %v4725, %v4721
          %v5046 = vpack.c.b16 %v4726, %v4722
          %v5047 = vpack.c.b16 %v4727, %v4723
          %v5048 = vpack.c.b16 %v4728, %v4724
          %v5049 = vpack.c.b16 %v4733, %v4729
          %v5050 = vpack.c.b16 %v4734, %v4730
          %v5051 = vpack.c.b16 %v4735, %v4731
          %v5052 = vpack.c.b16 %v4736, %v4732
          %v5053 = vpack.c.b16 %v4741, %v4737
          %v5054 = vpack.c.b16 %v4742, %v4738
          %v5055 = vpack.c.b16 %v4743, %v4739
          %v5056 = vpack.c.b16 %v4744, %v4740
          %v5057 = vpack.c.b16 %v4749, %v4745
          %v5058 = vpack.c.b16 %v4750, %v4746
          %v5059 = vpack.c.b16 %v4751, %v4747
          %v5060 = vpack.c.b16 %v4752, %v4748
          %v5061 = vpack.c.b16 %v4757, %v4753
          %v5062 = vpack.c.b16 %v4758, %v4754
          %v5063 = vpack.c.b16 %v4759, %v4755
          %v5064 = vpack.c.b16 %v4760, %v4756
          %v5065 = vpack.c.b16 %v4765, %v4761
          %v5066 = vpack.c.b16 %v4766, %v4762
          %v5067 = vpack.c.b16 %v4767, %v4763
          %v5068 = vpack.c.b16 %v4768, %v4764
          %v5069 = vpack.c.b16 %v4773, %v4769
          %v5070 = vpack.c.b16 %v4774, %v4770
          %v5071 = vpack.c.b16 %v4775, %v4771
          %v5072 = vpack.c.b16 %v4776, %v4772
          %v5073 = vpack.c.b16 %v4781, %v4777
          %v5074 = vpack.c.b16 %v4782, %v4778
          %v5075 = vpack.c.b16 %v4783, %v4779
          %v5076 = vpack.c.b16 %v4784, %v4780
          %v5077 = vpack.c.b16 %v4789, %v4785
          %v5078 = vpack.c.b16 %v4790, %v4786
          %v5079 = vpack.c.b16 %v4791, %v4787
          %v5080 = vpack.c.b16 %v4792, %v4788
          %v5081 = vpack.c.b16 %v4797, %v4793
          %v5082 = vpack.c.b16 %v4798, %v4794
          %v5083 = vpack.c.b16 %v4799, %v4795
          %v5084 = vpack.c.b16 %v4800, %v4796
          %v5085 = vpack.c.b16 %v4805, %v4801
          %v5086 = vpack.c.b16 %v4806, %v4802
          %v5087 = vpack.c.b16 %v4807, %v4803
          %v5088 = vpack.c.b16 %v4808, %v4804
          %v5089 = vpack.c.b16 %v4813, %v4809
          %v5090 = vpack.c.b16 %v4814, %v4810
          %v5091 = vpack.c.b16 %v4815, %v4811
          %v5092 = vpack.c.b16 %v4816, %v4812
          %v5093 = vpack.c.b16 %v4821, %v4817
          %v5094 = vpack.c.b16 %v4822, %v4818
          %v5095 = vpack.c.b16 %v4823, %v4819
          %v5096 = vpack.c.b16 %v4824, %v4820
          %v5097 = vpack.c.b16 %v4829, %v4825
          %v5098 = vpack.c.b16 %v4830, %v4826
          %v5099 = vpack.c.b16 %v4831, %v4827
          %v5100 = vpack.c.b16 %v4832, %v4828
          %v5101 = vpack.c.b16 %v4837, %v4833
          %v5102 = vpack.c.b16 %v4838, %v4834
          %v5103 = vpack.c.b16 %v4839, %v4835
          %v5104 = vpack.c.b16 %v4840, %v4836
          %v5105 = vpack.c.b16 %v4845, %v4841
          %v5106 = vpack.c.b16 %v4846, %v4842
          %v5107 = vpack.c.b16 %v4847, %v4843
          %v5108 = vpack.c.b16 %v4848, %v4844
          %v5109 = vpack.c.b16 %v4853, %v4849
          %v5110 = vpack.c.b16 %v4854, %v4850
          %v5111 = vpack.c.b16 %v4855, %v4851
          %v5112 = vpack.c.b16 %v4856, %v4852
          %5369 = vmatprep.subr.bf16.mxu0 %v4886
          %5370 = vmatpush1.bf16.msra.mxu0 %v4885
          %5371 = vmatprep.subr.bf16.mxu0 %v4882
          %5372 = vmatpush1.bf16.msra.mxu0 %v4881
          %5373 = vmatprep.subr.bf16.mxu0 %v4878
          %5374 = vmatpush1.bf16.msra.mxu0 %v4877
          %5375 = vmatprep.subr.bf16.mxu0 %v4874
          %5376 = vmatpush1.bf16.msra.mxu0 %v4873
          %5377 = vmatprep.subr.bf16.mxu0 %v4870
          %5378 = vmatpush1.bf16.msra.mxu0 %v4869
          %5379 = vmatprep.subr.bf16.mxu0 %v4866
          %5380 = vmatpush1.bf16.msra.mxu0 %v4865
          %5381 = vmatprep.subr.bf16.mxu0 %v4862
          %5382 = vmatpush1.bf16.msra.mxu0 %v4861
          %5383 = vmatprep.subr.bf16.mxu0 %v4858
          %5384 = vmatpush1.bf16.msra.mxu0 %v4857
          %5385 = vmatprep.subr.bf16.mxu0 %v4918
          %5386 = vmatpush2.bf16.msra.mxu0 %v4917
          %5387 = vmatprep.subr.bf16.mxu0 %v4914
          %5388 = vmatpush2.bf16.msra.mxu0 %v4913
          %5389 = vmatprep.subr.bf16.mxu0 %v4910
          %5390 = vmatpush2.bf16.msra.mxu0 %v4909
          %5391 = vmatprep.subr.bf16.mxu0 %v4906
          %5392 = vmatpush2.bf16.msra.mxu0 %v4905
          %5393 = vmatprep.subr.bf16.mxu0 %v4902
          %5394 = vmatpush2.bf16.msra.mxu0 %v4901
          %5395 = vmatprep.subr.bf16.mxu0 %v4898
          %5396 = vmatpush2.bf16.msra.mxu0 %v4897
          %5397 = vmatprep.subr.bf16.mxu0 %v4894
          %5398 = vmatpush2.bf16.msra.mxu0 %v4893
          %5399 = vmatprep.subr.bf16.mxu0 %v4890
          %5400 = vmatpush2.bf16.msra.mxu0 %v4889
          %5401 = vmatprep.mubr.bf16.mxu0 %v3804
          %5402 = vmatmul.mubr.bf16.gmra.mxu0 %v3803
          %v5403 = vpop.f32.mrf.mxu0
          %v5404 = vadd.f32 %v4072, %v5403
          %v5405 = vpop.f32.mrf.mxu0
          %v5406 = vadd.f32 %v4076, %v5405
          %v5407 = vpop.f32.mrf.mxu0
          %v5408 = vpop.f32.mrf.mxu0
          %5409 = vdwg.mxu0
          %5410 = vmatprep.subr.bf16.mxu0 %v4950
          %5411 = vmatpush1.bf16.msra.mxu0 %v4949
          %5412 = vmatprep.subr.bf16.mxu0 %v4946
          %5413 = vmatpush1.bf16.msra.mxu0 %v4945
          %5414 = vmatprep.subr.bf16.mxu0 %v4942
          %5415 = vmatpush1.bf16.msra.mxu0 %v4941
          %5416 = vmatprep.subr.bf16.mxu0 %v4938
          %5417 = vmatpush1.bf16.msra.mxu0 %v4937
          %5418 = vmatprep.subr.bf16.mxu0 %v4934
          %5419 = vmatpush1.bf16.msra.mxu0 %v4933
          %5420 = vmatprep.subr.bf16.mxu0 %v4930
          %5421 = vmatpush1.bf16.msra.mxu0 %v4929
          %5422 = vmatprep.subr.bf16.mxu0 %v4926
          %5423 = vmatpush1.bf16.msra.mxu0 %v4925
          %5424 = vmatprep.subr.bf16.mxu0 %v4922
          %5425 = vmatpush1.bf16.msra.mxu0 %v4921
          %5426 = vmatprep.subr.bf16.mxu0 %v4982
          %5427 = vmatpush2.bf16.msra.mxu0 %v4981
          %5428 = vmatprep.subr.bf16.mxu0 %v4978
          %5429 = vmatpush2.bf16.msra.mxu0 %v4977
          %5430 = vmatprep.subr.bf16.mxu0 %v4974
          %5431 = vmatpush2.bf16.msra.mxu0 %v4973
          %5432 = vmatprep.subr.bf16.mxu0 %v4970
          %5433 = vmatpush2.bf16.msra.mxu0 %v4969
          %5434 = vmatprep.subr.bf16.mxu0 %v4966
          %5435 = vmatpush2.bf16.msra.mxu0 %v4965
          %5436 = vmatprep.subr.bf16.mxu0 %v4962
          %5437 = vmatpush2.bf16.msra.mxu0 %v4961
          %5438 = vmatprep.subr.bf16.mxu0 %v4958
          %5439 = vmatpush2.bf16.msra.mxu0 %v4957
          %5440 = vmatprep.subr.bf16.mxu0 %v4954
          %5441 = vmatpush2.bf16.msra.mxu0 %v4953
          %5442 = vmatprep.mubr.bf16.mxu0 %v3806
          %5443 = vmatmul.mubr.bf16.gmra.mxu0 %v3805
          %v5444 = vpop.f32.mrf.mxu0
          %v5445 = vadd.f32 %v5404, %v5444
          %v5446 = vpop.f32.mrf.mxu0
          %v5447 = vadd.f32 %v5406, %v5446
          %v5448 = vpop.f32.mrf.mxu0
          %v5449 = vpop.f32.mrf.mxu0
          %5450 = vdwg.mxu0
          %5451 = vmatprep.subr.bf16.mxu0 %v5014
          %5452 = vmatpush1.bf16.msra.mxu0 %v5013
          %5453 = vmatprep.subr.bf16.mxu0 %v5010
          %5454 = vmatpush1.bf16.msra.mxu0 %v5009
          %5455 = vmatprep.subr.bf16.mxu0 %v5006
          %5456 = vmatpush1.bf16.msra.mxu0 %v5005
          %5457 = vmatprep.subr.bf16.mxu0 %v5002
          %5458 = vmatpush1.bf16.msra.mxu0 %v5001
          %5459 = vmatprep.subr.bf16.mxu0 %v4998
          %5460 = vmatpush1.bf16.msra.mxu0 %v4997
          %5461 = vmatprep.subr.bf16.mxu0 %v4994
          %5462 = vmatpush1.bf16.msra.mxu0 %v4993
          %5463 = vmatprep.subr.bf16.mxu0 %v4990
          %5464 = vmatpush1.bf16.msra.mxu0 %v4989
          %5465 = vmatprep.subr.bf16.mxu0 %v4986
          %5466 = vmatpush1.bf16.msra.mxu0 %v4985
          %5467 = vmatprep.subr.bf16.mxu0 %v5046
          %5468 = vmatpush2.bf16.msra.mxu0 %v5045
          %5469 = vmatprep.subr.bf16.mxu0 %v5042
          %5470 = vmatpush2.bf16.msra.mxu0 %v5041
          %5471 = vmatprep.subr.bf16.mxu0 %v5038
          %5472 = vmatpush2.bf16.msra.mxu0 %v5037
          %5473 = vmatprep.subr.bf16.mxu0 %v5034
          %5474 = vmatpush2.bf16.msra.mxu0 %v5033
          %5475 = vmatprep.subr.bf16.mxu0 %v5030
          %5476 = vmatpush2.bf16.msra.mxu0 %v5029
          %5477 = vmatprep.subr.bf16.mxu0 %v5026
          %5478 = vmatpush2.bf16.msra.mxu0 %v5025
          %5479 = vmatprep.subr.bf16.mxu0 %v5022
          %5480 = vmatpush2.bf16.msra.mxu0 %v5021
          %5481 = vmatprep.subr.bf16.mxu0 %v5018
          %5482 = vmatpush2.bf16.msra.mxu0 %v5017
          %5483 = vmatprep.mubr.bf16.mxu0 %v3808
          %5484 = vmatmul.mubr.bf16.gmra.mxu0 %v3807
          %v5485 = vpop.f32.mrf.mxu0
          %v5486 = vadd.f32 %v5445, %v5485
          %v5487 = vpop.f32.mrf.mxu0
          %v5488 = vadd.f32 %v5447, %v5487
          %v5489 = vpop.f32.mrf.mxu0
          %v5490 = vpop.f32.mrf.mxu0
          %5491 = vdwg.mxu0
          %5492 = vmatprep.subr.bf16.mxu0 %v5078
          %5493 = vmatpush1.bf16.msra.mxu0 %v5077
          %5494 = vmatprep.subr.bf16.mxu0 %v5074
          %5495 = vmatpush1.bf16.msra.mxu0 %v5073
          %5496 = vmatprep.subr.bf16.mxu0 %v5070
          %5497 = vmatpush1.bf16.msra.mxu0 %v5069
          %5498 = vmatprep.subr.bf16.mxu0 %v5066
          %5499 = vmatpush1.bf16.msra.mxu0 %v5065
          %5500 = vmatprep.subr.bf16.mxu0 %v5062
          %5501 = vmatpush1.bf16.msra.mxu0 %v5061
          %5502 = vmatprep.subr.bf16.mxu0 %v5058
          %5503 = vmatpush1.bf16.msra.mxu0 %v5057
          %5504 = vmatprep.subr.bf16.mxu0 %v5054
          %5505 = vmatpush1.bf16.msra.mxu0 %v5053
          %5506 = vmatprep.subr.bf16.mxu0 %v5050
          %5507 = vmatpush1.bf16.msra.mxu0 %v5049
          %5508 = vmatprep.subr.bf16.mxu0 %v5110
          %5509 = vmatpush2.bf16.msra.mxu0 %v5109
          %5510 = vmatprep.subr.bf16.mxu0 %v5106
          %5511 = vmatpush2.bf16.msra.mxu0 %v5105
          %5512 = vmatprep.subr.bf16.mxu0 %v5102
          %5513 = vmatpush2.bf16.msra.mxu0 %v5101
          %5514 = vmatprep.subr.bf16.mxu0 %v5098
          %5515 = vmatpush2.bf16.msra.mxu0 %v5097
          %5516 = vmatprep.subr.bf16.mxu0 %v5094
          %5517 = vmatpush2.bf16.msra.mxu0 %v5093
          %5518 = vmatprep.subr.bf16.mxu0 %v5090
          %5519 = vmatpush2.bf16.msra.mxu0 %v5089
          %5520 = vmatprep.subr.bf16.mxu0 %v5086
          %5521 = vmatpush2.bf16.msra.mxu0 %v5085
          %5522 = vmatprep.subr.bf16.mxu0 %v5082
          %5523 = vmatpush2.bf16.msra.mxu0 %v5081
          %5524 = vmatprep.mubr.bf16.mxu0 %v3810
          %5525 = vmatmul.mubr.bf16.gmra.mxu0 %v3809
          %v5526 = vpop.f32.mrf.mxu0
          %v5527 = vadd.f32 %v5486, %v5526
          %v5528 = vpop.f32.mrf.mxu0
          %v5529 = vadd.f32 %v5488, %v5528
          %v5530 = vpop.f32.mrf.mxu0
          %v5531 = vpop.f32.mrf.mxu0
          %5532 = vdwg.mxu0
          %5533 = vmatprep.subr.bf16.mxu0 %v4888
          %5534 = vmatpush1.bf16.msra.mxu0 %v4887
          %5535 = vmatprep.subr.bf16.mxu0 %v4884
          %5536 = vmatpush1.bf16.msra.mxu0 %v4883
          %5537 = vmatprep.subr.bf16.mxu0 %v4880
          %5538 = vmatpush1.bf16.msra.mxu0 %v4879
          %5539 = vmatprep.subr.bf16.mxu0 %v4876
          %5540 = vmatpush1.bf16.msra.mxu0 %v4875
          %5541 = vmatprep.subr.bf16.mxu0 %v4872
          %5542 = vmatpush1.bf16.msra.mxu0 %v4871
          %5543 = vmatprep.subr.bf16.mxu0 %v4868
          %5544 = vmatpush1.bf16.msra.mxu0 %v4867
          %5545 = vmatprep.subr.bf16.mxu0 %v4864
          %5546 = vmatpush1.bf16.msra.mxu0 %v4863
          %5547 = vmatprep.subr.bf16.mxu0 %v4860
          %5548 = vmatpush1.bf16.msra.mxu0 %v4859
          %5549 = vmatprep.subr.bf16.mxu0 %v4920
          %5550 = vmatpush2.bf16.msra.mxu0 %v4919
          %5551 = vmatprep.subr.bf16.mxu0 %v4916
          %5552 = vmatpush2.bf16.msra.mxu0 %v4915
          %5553 = vmatprep.subr.bf16.mxu0 %v4912
          %5554 = vmatpush2.bf16.msra.mxu0 %v4911
          %5555 = vmatprep.subr.bf16.mxu0 %v4908
          %5556 = vmatpush2.bf16.msra.mxu0 %v4907
          %5557 = vmatprep.subr.bf16.mxu0 %v4904
          %5558 = vmatpush2.bf16.msra.mxu0 %v4903
          %5559 = vmatprep.subr.bf16.mxu0 %v4900
          %5560 = vmatpush2.bf16.msra.mxu0 %v4899
          %5561 = vmatprep.subr.bf16.mxu0 %v4896
          %5562 = vmatpush2.bf16.msra.mxu0 %v4895
          %5563 = vmatprep.subr.bf16.mxu0 %v4892
          %5564 = vmatpush2.bf16.msra.mxu0 %v4891
          %5565 = vmatprep.mubr.bf16.mxu0 %v3804
          %5566 = vmatmul.mubr.bf16.gmra.mxu0 %v3803
          %v5567 = vpop.f32.mrf.mxu0
          %v5568 = vadd.f32 %v4080, %v5567
          %v5569 = vpop.f32.mrf.mxu0
          %v5570 = vadd.f32 %v4084, %v5569
          %v5571 = vpop.f32.mrf.mxu0
          %v5572 = vpop.f32.mrf.mxu0
          %5573 = vdwg.mxu0
          %5574 = vmatprep.subr.bf16.mxu0 %v4952
          %5575 = vmatpush1.bf16.msra.mxu0 %v4951
          %5576 = vmatprep.subr.bf16.mxu0 %v4948
          %5577 = vmatpush1.bf16.msra.mxu0 %v4947
          %5578 = vmatprep.subr.bf16.mxu0 %v4944
          %5579 = vmatpush1.bf16.msra.mxu0 %v4943
          %5580 = vmatprep.subr.bf16.mxu0 %v4940
          %5581 = vmatpush1.bf16.msra.mxu0 %v4939
          %5582 = vmatprep.subr.bf16.mxu0 %v4936
          %5583 = vmatpush1.bf16.msra.mxu0 %v4935
          %5584 = vmatprep.subr.bf16.mxu0 %v4932
          %5585 = vmatpush1.bf16.msra.mxu0 %v4931
          %5586 = vmatprep.subr.bf16.mxu0 %v4928
          %5587 = vmatpush1.bf16.msra.mxu0 %v4927
          %5588 = vmatprep.subr.bf16.mxu0 %v4924
          %5589 = vmatpush1.bf16.msra.mxu0 %v4923
          %5590 = vmatprep.subr.bf16.mxu0 %v4984
          %5591 = vmatpush2.bf16.msra.mxu0 %v4983
          %5592 = vmatprep.subr.bf16.mxu0 %v4980
          %5593 = vmatpush2.bf16.msra.mxu0 %v4979
          %5594 = vmatprep.subr.bf16.mxu0 %v4976
          %5595 = vmatpush2.bf16.msra.mxu0 %v4975
          %5596 = vmatprep.subr.bf16.mxu0 %v4972
          %5597 = vmatpush2.bf16.msra.mxu0 %v4971
          %5598 = vmatprep.subr.bf16.mxu0 %v4968
          %5599 = vmatpush2.bf16.msra.mxu0 %v4967
          %5600 = vmatprep.subr.bf16.mxu0 %v4964
          %5601 = vmatpush2.bf16.msra.mxu0 %v4963
          %5602 = vmatprep.subr.bf16.mxu0 %v4960
          %5603 = vmatpush2.bf16.msra.mxu0 %v4959
          %5604 = vmatprep.subr.bf16.mxu0 %v4956
          %5605 = vmatpush2.bf16.msra.mxu0 %v4955
          %5606 = vmatprep.mubr.bf16.mxu0 %v3806
          %5607 = vmatmul.mubr.bf16.gmra.mxu0 %v3805
          %v5608 = vpop.f32.mrf.mxu0
          %v5609 = vadd.f32 %v5568, %v5608
          %v5610 = vpop.f32.mrf.mxu0
          %v5611 = vadd.f32 %v5570, %v5610
          %v5612 = vpop.f32.mrf.mxu0
          %v5613 = vpop.f32.mrf.mxu0
          %5614 = vdwg.mxu0
          %5615 = vmatprep.subr.bf16.mxu0 %v5016
          %5616 = vmatpush1.bf16.msra.mxu0 %v5015
          %5617 = vmatprep.subr.bf16.mxu0 %v5012
          %5618 = vmatpush1.bf16.msra.mxu0 %v5011
          %5619 = vmatprep.subr.bf16.mxu0 %v5008
          %5620 = vmatpush1.bf16.msra.mxu0 %v5007
          %5621 = vmatprep.subr.bf16.mxu0 %v5004
          %5622 = vmatpush1.bf16.msra.mxu0 %v5003
          %5623 = vmatprep.subr.bf16.mxu0 %v5000
          %5624 = vmatpush1.bf16.msra.mxu0 %v4999
          %5625 = vmatprep.subr.bf16.mxu0 %v4996
          %5626 = vmatpush1.bf16.msra.mxu0 %v4995
          %5627 = vmatprep.subr.bf16.mxu0 %v4992
          %5628 = vmatpush1.bf16.msra.mxu0 %v4991
          %5629 = vmatprep.subr.bf16.mxu0 %v4988
          %5630 = vmatpush1.bf16.msra.mxu0 %v4987
          %5631 = vmatprep.subr.bf16.mxu0 %v5048
          %5632 = vmatpush2.bf16.msra.mxu0 %v5047
          %5633 = vmatprep.subr.bf16.mxu0 %v5044
          %5634 = vmatpush2.bf16.msra.mxu0 %v5043
          %5635 = vmatprep.subr.bf16.mxu0 %v5040
          %5636 = vmatpush2.bf16.msra.mxu0 %v5039
          %5637 = vmatprep.subr.bf16.mxu0 %v5036
          %5638 = vmatpush2.bf16.msra.mxu0 %v5035
          %5639 = vmatprep.subr.bf16.mxu0 %v5032
          %5640 = vmatpush2.bf16.msra.mxu0 %v5031
          %5641 = vmatprep.subr.bf16.mxu0 %v5028
          %5642 = vmatpush2.bf16.msra.mxu0 %v5027
          %5643 = vmatprep.subr.bf16.mxu0 %v5024
          %5644 = vmatpush2.bf16.msra.mxu0 %v5023
          %5645 = vmatprep.subr.bf16.mxu0 %v5020
          %5646 = vmatpush2.bf16.msra.mxu0 %v5019
          %5647 = vmatprep.mubr.bf16.mxu0 %v3808
          %5648 = vmatmul.mubr.bf16.gmra.mxu0 %v3807
          %v5649 = vpop.f32.mrf.mxu0
          %v5650 = vadd.f32 %v5609, %v5649
          %v5651 = vpop.f32.mrf.mxu0
          %v5652 = vadd.f32 %v5611, %v5651
          %v5653 = vpop.f32.mrf.mxu0
          %v5654 = vpop.f32.mrf.mxu0
          %5655 = vdwg.mxu0
          %5656 = vmatprep.subr.bf16.mxu0 %v5080
          %5657 = vmatpush1.bf16.msra.mxu0 %v5079
          %5658 = vmatprep.subr.bf16.mxu0 %v5076
          %5659 = vmatpush1.bf16.msra.mxu0 %v5075
          %5660 = vmatprep.subr.bf16.mxu0 %v5072
          %5661 = vmatpush1.bf16.msra.mxu0 %v5071
          %5662 = vmatprep.subr.bf16.mxu0 %v5068
          %5663 = vmatpush1.bf16.msra.mxu0 %v5067
          %5664 = vmatprep.subr.bf16.mxu0 %v5064
          %5665 = vmatpush1.bf16.msra.mxu0 %v5063
          %5666 = vmatprep.subr.bf16.mxu0 %v5060
          %5667 = vmatpush1.bf16.msra.mxu0 %v5059
          %5668 = vmatprep.subr.bf16.mxu0 %v5056
          %5669 = vmatpush1.bf16.msra.mxu0 %v5055
          %5670 = vmatprep.subr.bf16.mxu0 %v5052
          %5671 = vmatpush1.bf16.msra.mxu0 %v5051
          %5672 = vmatprep.subr.bf16.mxu0 %v5112
          %5673 = vmatpush2.bf16.msra.mxu0 %v5111
          %5674 = vmatprep.subr.bf16.mxu0 %v5108
          %5675 = vmatpush2.bf16.msra.mxu0 %v5107
          %5676 = vmatprep.subr.bf16.mxu0 %v5104
          %5677 = vmatpush2.bf16.msra.mxu0 %v5103
          %5678 = vmatprep.subr.bf16.mxu0 %v5100
          %5679 = vmatpush2.bf16.msra.mxu0 %v5099
          %5680 = vmatprep.subr.bf16.mxu0 %v5096
          %5681 = vmatpush2.bf16.msra.mxu0 %v5095
          %5682 = vmatprep.subr.bf16.mxu0 %v5092
          %5683 = vmatpush2.bf16.msra.mxu0 %v5091
          %5684 = vmatprep.subr.bf16.mxu0 %v5088
          %5685 = vmatpush2.bf16.msra.mxu0 %v5087
          %5686 = vmatprep.subr.bf16.mxu0 %v5084
          %5687 = vmatpush2.bf16.msra.mxu0 %v5083
          %5688 = vmatprep.mubr.bf16.mxu0 %v3810
          %5689 = vmatmul.mubr.bf16.gmra.mxu0 %v3809
          %v5690 = vpop.f32.mrf.mxu0
          %v5691 = vadd.f32 %v5650, %v5690
          %v5692 = vpop.f32.mrf.mxu0
          %v5693 = vadd.f32 %v5652, %v5692
          %v5694 = vpop.f32.mrf.mxu0
          %v5695 = vpop.f32.mrf.mxu0
          %5696 = vdwg.mxu0
          %v5697 = vmax.f32 %v5527, 0.0
          %v5698 = vmax.f32 %v5529, 0.0
          %v5699 = vmax.f32 %v5691, 0.0
          %v5700 = vmax.f32 %v5693, 0.0
          %v5701 = vpack.c.bf16 %v5697, %v5697
          %v5702 = vpack.c.bf16 %v5698, %v5698
          %v5703 = vpack.c.bf16 %v5699, %v5699
          %v5704 = vpack.c.bf16 %v5700, %v5700
          %v5705 = vld [vmem:[%s5] sm:$0xff]
          %v5706 = vld [vmem:[%s5 + $0x8] sm:$0xff]
          %v5707 = vld [vmem:[%s5 + $0x10] sm:$0xff]
          %v5708 = vld [vmem:[%s5 + $0x18] sm:$0xff]
          %v5709 = vld [vmem:[%s5 + $0x20] sm:$0xff]
          %v5710 = vld [vmem:[%s5 + $0x28] sm:$0xff]
          %v5711 = vld [vmem:[%s5 + $0x30] sm:$0xff]
          %v5712 = vld [vmem:[%s5 + $0x38] sm:$0xff]
          %v5713 = vld [vmem:[%s5 + $0x40] sm:$0xff]
          %v5714 = vld [vmem:[%s5 + $0x48] sm:$0xff]
          %v5715 = vld [vmem:[%s5 + $0x50] sm:$0xff]
          %v5716 = vld [vmem:[%s5 + $0x58] sm:$0xff]
          %v5717 = vld [vmem:[%s5 + $0x60] sm:$0xff]
          %v5718 = vld [vmem:[%s5 + $0x68] sm:$0xff]
          %v5719 = vld [vmem:[%s5 + $0x70] sm:$0xff]
          %v5720 = vld [vmem:[%s5 + $0x78] sm:$0xff]
          %v5721 = vld [vmem:[%s5 + $0x80] sm:$0xff]
          %v5722 = vld [vmem:[%s5 + $0x88] sm:$0xff]
          %v5723 = vld [vmem:[%s5 + $0x90] sm:$0xff]
          %v5724 = vld [vmem:[%s5 + $0x98] sm:$0xff]
          %v5725 = vld [vmem:[%s5 + $0xa0] sm:$0xff]
          %v5726 = vld [vmem:[%s5 + $0xa8] sm:$0xff]
          %v5727 = vld [vmem:[%s5 + $0xb0] sm:$0xff]
          %v5728 = vld [vmem:[%s5 + $0xb8] sm:$0xff]
          %v5729 = vld [vmem:[%s5 + $0xc0] sm:$0xff]
          %v5730 = vld [vmem:[%s5 + $0xc8] sm:$0xff]
          %v5731 = vld [vmem:[%s5 + $0xd0] sm:$0xff]
          %v5732 = vld [vmem:[%s5 + $0xd8] sm:$0xff]
          %v5733 = vld [vmem:[%s5 + $0xe0] sm:$0xff]
          %v5734 = vld [vmem:[%s5 + $0xe8] sm:$0xff]
          %v5735 = vld [vmem:[%s5 + $0xf0] sm:$0xff]
          %v5736 = vld [vmem:[%s5 + $0xf8] sm:$0xff]
          %v5737 = vld [vmem:[%s5 + $0x100] sm:$0xff]
          %v5738 = vld [vmem:[%s5 + $0x108] sm:$0xff]
          %v5739 = vld [vmem:[%s5 + $0x110] sm:$0xff]
          %v5740 = vld [vmem:[%s5 + $0x118] sm:$0xff]
          %v5741 = vld [vmem:[%s5 + $0x120] sm:$0xff]
          %v5742 = vld [vmem:[%s5 + $0x128] sm:$0xff]
          %v5743 = vld [vmem:[%s5 + $0x130] sm:$0xff]
          %v5744 = vld [vmem:[%s5 + $0x138] sm:$0xff]
          %v5745 = vld [vmem:[%s5 + $0x140] sm:$0xff]
          %v5746 = vld [vmem:[%s5 + $0x148] sm:$0xff]
          %v5747 = vld [vmem:[%s5 + $0x150] sm:$0xff]
          %v5748 = vld [vmem:[%s5 + $0x158] sm:$0xff]
          %v5749 = vld [vmem:[%s5 + $0x160] sm:$0xff]
          %v5750 = vld [vmem:[%s5 + $0x168] sm:$0xff]
          %v5751 = vld [vmem:[%s5 + $0x170] sm:$0xff]
          %v5752 = vld [vmem:[%s5 + $0x178] sm:$0xff]
          %v5753 = vld [vmem:[%s5 + $0x180] sm:$0xff]
          %v5754 = vld [vmem:[%s5 + $0x188] sm:$0xff]
          %v5755 = vld [vmem:[%s5 + $0x190] sm:$0xff]
          %v5756 = vld [vmem:[%s5 + $0x198] sm:$0xff]
          %v5757 = vld [vmem:[%s5 + $0x1a0] sm:$0xff]
          %v5758 = vld [vmem:[%s5 + $0x1a8] sm:$0xff]
          %v5759 = vld [vmem:[%s5 + $0x1b0] sm:$0xff]
          %v5760 = vld [vmem:[%s5 + $0x1b8] sm:$0xff]
          %v5761 = vld [vmem:[%s5 + $0x1c0] sm:$0xff]
          %v5762 = vld [vmem:[%s5 + $0x1c8] sm:$0xff]
          %v5763 = vld [vmem:[%s5 + $0x1d0] sm:$0xff]
          %v5764 = vld [vmem:[%s5 + $0x1d8] sm:$0xff]
          %v5765 = vld [vmem:[%s5 + $0x1e0] sm:$0xff]
          %v5766 = vld [vmem:[%s5 + $0x1e8] sm:$0xff]
          %v5767 = vld [vmem:[%s5 + $0x1f0] sm:$0xff]
          %v5768 = vld [vmem:[%s5 + $0x1f8] sm:$0xff]
          %v5769 = vld [vmem:[%s6] sm:$0x3]
          %v5771 = vlaneseq
          %v5772 = vshrl.u32 %v5771, 7
          %v5773 = vsub.s32 0, %v5772
          %v5774 = vrot.slane %v5769, %v5773
          %v5775 = vlaneseq
          %v5776 = vshrl.u32 %v5775, 7
          %v5777 = vsub.s32 1, %v5776
          %v5778 = vrot.slane %v5769, %v5777
          %v5845 = vunpack.c.l.b16 %v5705
          %v5846 = vunpack.c.h.b16 %v5705
          %v5847 = vunpack.c.l.b16 %v5706
          %v5848 = vunpack.c.h.b16 %v5706
          %v5849 = vunpack.c.l.b16 %v5707
          %v5850 = vunpack.c.h.b16 %v5707
          %v5851 = vunpack.c.l.b16 %v5708
          %v5852 = vunpack.c.h.b16 %v5708
          %v5853 = vunpack.c.l.b16 %v5709
          %v5854 = vunpack.c.h.b16 %v5709
          %v5855 = vunpack.c.l.b16 %v5710
          %v5856 = vunpack.c.h.b16 %v5710
          %v5857 = vunpack.c.l.b16 %v5711
          %v5858 = vunpack.c.h.b16 %v5711
          %v5859 = vunpack.c.l.b16 %v5712
          %v5860 = vunpack.c.h.b16 %v5712
          %v5861 = vunpack.c.l.b16 %v5713
          %v5862 = vunpack.c.h.b16 %v5713
          %v5863 = vunpack.c.l.b16 %v5714
          %v5864 = vunpack.c.h.b16 %v5714
          %v5865 = vunpack.c.l.b16 %v5715
          %v5866 = vunpack.c.h.b16 %v5715
          %v5867 = vunpack.c.l.b16 %v5716
          %v5868 = vunpack.c.h.b16 %v5716
          %v5869 = vunpack.c.l.b16 %v5717
          %v5870 = vunpack.c.h.b16 %v5717
          %v5871 = vunpack.c.l.b16 %v5718
          %v5872 = vunpack.c.h.b16 %v5718
          %v5873 = vunpack.c.l.b16 %v5719
          %v5874 = vunpack.c.h.b16 %v5719
          %v5875 = vunpack.c.l.b16 %v5720
          %v5876 = vunpack.c.h.b16 %v5720
          %v5877 = vunpack.c.l.b16 %v5721
          %v5878 = vunpack.c.h.b16 %v5721
          %v5879 = vunpack.c.l.b16 %v5722
          %v5880 = vunpack.c.h.b16 %v5722
          %v5881 = vunpack.c.l.b16 %v5723
          %v5882 = vunpack.c.h.b16 %v5723
          %v5883 = vunpack.c.l.b16 %v5724
          %v5884 = vunpack.c.h.b16 %v5724
          %v5885 = vunpack.c.l.b16 %v5725
          %v5886 = vunpack.c.h.b16 %v5725
          %v5887 = vunpack.c.l.b16 %v5726
          %v5888 = vunpack.c.h.b16 %v5726
          %v5889 = vunpack.c.l.b16 %v5727
          %v5890 = vunpack.c.h.b16 %v5727
          %v5891 = vunpack.c.l.b16 %v5728
          %v5892 = vunpack.c.h.b16 %v5728
          %v5893 = vunpack.c.l.b16 %v5729
          %v5894 = vunpack.c.h.b16 %v5729
          %v5895 = vunpack.c.l.b16 %v5730
          %v5896 = vunpack.c.h.b16 %v5730
          %v5897 = vunpack.c.l.b16 %v5731
          %v5898 = vunpack.c.h.b16 %v5731
          %v5899 = vunpack.c.l.b16 %v5732
          %v5900 = vunpack.c.h.b16 %v5732
          %v5901 = vunpack.c.l.b16 %v5733
          %v5902 = vunpack.c.h.b16 %v5733
          %v5903 = vunpack.c.l.b16 %v5734
          %v5904 = vunpack.c.h.b16 %v5734
          %v5905 = vunpack.c.l.b16 %v5735
          %v5906 = vunpack.c.h.b16 %v5735
          %v5907 = vunpack.c.l.b16 %v5736
          %v5908 = vunpack.c.h.b16 %v5736
          %v5909 = vunpack.c.l.b16 %v5737
          %v5910 = vunpack.c.h.b16 %v5737
          %v5911 = vunpack.c.l.b16 %v5738
          %v5912 = vunpack.c.h.b16 %v5738
          %v5913 = vunpack.c.l.b16 %v5739
          %v5914 = vunpack.c.h.b16 %v5739
          %v5915 = vunpack.c.l.b16 %v5740
          %v5916 = vunpack.c.h.b16 %v5740
          %v5917 = vunpack.c.l.b16 %v5741
          %v5918 = vunpack.c.h.b16 %v5741
          %v5919 = vunpack.c.l.b16 %v5742
          %v5920 = vunpack.c.h.b16 %v5742
          %v5921 = vunpack.c.l.b16 %v5743
          %v5922 = vunpack.c.h.b16 %v5743
          %v5923 = vunpack.c.l.b16 %v5744
          %v5924 = vunpack.c.h.b16 %v5744
          %v5925 = vunpack.c.l.b16 %v5745
          %v5926 = vunpack.c.h.b16 %v5745
          %v5927 = vunpack.c.l.b16 %v5746
          %v5928 = vunpack.c.h.b16 %v5746
          %v5929 = vunpack.c.l.b16 %v5747
          %v5930 = vunpack.c.h.b16 %v5747
          %v5931 = vunpack.c.l.b16 %v5748
          %v5932 = vunpack.c.h.b16 %v5748
          %v5933 = vunpack.c.l.b16 %v5749
          %v5934 = vunpack.c.h.b16 %v5749
          %v5935 = vunpack.c.l.b16 %v5750
          %v5936 = vunpack.c.h.b16 %v5750
          %v5937 = vunpack.c.l.b16 %v5751
          %v5938 = vunpack.c.h.b16 %v5751
          %v5939 = vunpack.c.l.b16 %v5752
          %v5940 = vunpack.c.h.b16 %v5752
          %v5941 = vunpack.c.l.b16 %v5753
          %v5942 = vunpack.c.h.b16 %v5753
          %v5943 = vunpack.c.l.b16 %v5754
          %v5944 = vunpack.c.h.b16 %v5754
          %v5945 = vunpack.c.l.b16 %v5755
          %v5946 = vunpack.c.h.b16 %v5755
          %v5947 = vunpack.c.l.b16 %v5756
          %v5948 = vunpack.c.h.b16 %v5756
          %v5949 = vunpack.c.l.b16 %v5757
          %v5950 = vunpack.c.h.b16 %v5757
          %v5951 = vunpack.c.l.b16 %v5758
          %v5952 = vunpack.c.h.b16 %v5758
          %v5953 = vunpack.c.l.b16 %v5759
          %v5954 = vunpack.c.h.b16 %v5759
          %v5955 = vunpack.c.l.b16 %v5760
          %v5956 = vunpack.c.h.b16 %v5760
          %v5957 = vunpack.c.l.b16 %v5761
          %v5958 = vunpack.c.h.b16 %v5761
          %v5959 = vunpack.c.l.b16 %v5762
          %v5960 = vunpack.c.h.b16 %v5762
          %v5961 = vunpack.c.l.b16 %v5763
          %v5962 = vunpack.c.h.b16 %v5763
          %v5963 = vunpack.c.l.b16 %v5764
          %v5964 = vunpack.c.h.b16 %v5764
          %v5965 = vunpack.c.l.b16 %v5765
          %v5966 = vunpack.c.h.b16 %v5765
          %v5967 = vunpack.c.l.b16 %v5766
          %v5968 = vunpack.c.h.b16 %v5766
          %v5969 = vunpack.c.l.b16 %v5767
          %v5970 = vunpack.c.h.b16 %v5767
          %v5971 = vunpack.c.l.b16 %v5768
          %v5972 = vunpack.c.h.b16 %v5768
          %v5973 = vpack.c.b16 %v5847, %v5845
          %v5974 = vpack.c.b16 %v5848, %v5846
          %v5975 = vpack.c.b16 %v5851, %v5849
          %v5976 = vpack.c.b16 %v5852, %v5850
          %v5977 = vpack.c.b16 %v5855, %v5853
          %v5978 = vpack.c.b16 %v5856, %v5854
          %v5979 = vpack.c.b16 %v5859, %v5857
          %v5980 = vpack.c.b16 %v5860, %v5858
          %v5981 = vpack.c.b16 %v5863, %v5861
          %v5982 = vpack.c.b16 %v5864, %v5862
          %v5983 = vpack.c.b16 %v5867, %v5865
          %v5984 = vpack.c.b16 %v5868, %v5866
          %v5985 = vpack.c.b16 %v5871, %v5869
          %v5986 = vpack.c.b16 %v5872, %v5870
          %v5987 = vpack.c.b16 %v5875, %v5873
          %v5988 = vpack.c.b16 %v5876, %v5874
          %v5989 = vpack.c.b16 %v5879, %v5877
          %v5990 = vpack.c.b16 %v5880, %v5878
          %v5991 = vpack.c.b16 %v5883, %v5881
          %v5992 = vpack.c.b16 %v5884, %v5882
          %v5993 = vpack.c.b16 %v5887, %v5885
          %v5994 = vpack.c.b16 %v5888, %v5886
          %v5995 = vpack.c.b16 %v5891, %v5889
          %v5996 = vpack.c.b16 %v5892, %v5890
          %v5997 = vpack.c.b16 %v5895, %v5893
          %v5998 = vpack.c.b16 %v5896, %v5894
          %v5999 = vpack.c.b16 %v5899, %v5897
          %v6000 = vpack.c.b16 %v5900, %v5898
          %v6001 = vpack.c.b16 %v5903, %v5901
          %v6002 = vpack.c.b16 %v5904, %v5902
          %v6003 = vpack.c.b16 %v5907, %v5905
          %v6004 = vpack.c.b16 %v5908, %v5906
          %v6005 = vpack.c.b16 %v5911, %v5909
          %v6006 = vpack.c.b16 %v5912, %v5910
          %v6007 = vpack.c.b16 %v5915, %v5913
          %v6008 = vpack.c.b16 %v5916, %v5914
          %v6009 = vpack.c.b16 %v5919, %v5917
          %v6010 = vpack.c.b16 %v5920, %v5918
          %v6011 = vpack.c.b16 %v5923, %v5921
          %v6012 = vpack.c.b16 %v5924, %v5922
          %v6013 = vpack.c.b16 %v5927, %v5925
          %v6014 = vpack.c.b16 %v5928, %v5926
          %v6015 = vpack.c.b16 %v5931, %v5929
          %v6016 = vpack.c.b16 %v5932, %v5930
          %v6017 = vpack.c.b16 %v5935, %v5933
          %v6018 = vpack.c.b16 %v5936, %v5934
          %v6019 = vpack.c.b16 %v5939, %v5937
          %v6020 = vpack.c.b16 %v5940, %v5938
          %v6021 = vpack.c.b16 %v5943, %v5941
          %v6022 = vpack.c.b16 %v5944, %v5942
          %v6023 = vpack.c.b16 %v5947, %v5945
          %v6024 = vpack.c.b16 %v5948, %v5946
          %v6025 = vpack.c.b16 %v5951, %v5949
          %v6026 = vpack.c.b16 %v5952, %v5950
          %v6027 = vpack.c.b16 %v5955, %v5953
          %v6028 = vpack.c.b16 %v5956, %v5954
          %v6029 = vpack.c.b16 %v5959, %v5957
          %v6030 = vpack.c.b16 %v5960, %v5958
          %v6031 = vpack.c.b16 %v5963, %v5961
          %v6032 = vpack.c.b16 %v5964, %v5962
          %v6033 = vpack.c.b16 %v5967, %v5965
          %v6034 = vpack.c.b16 %v5968, %v5966
          %v6035 = vpack.c.b16 %v5971, %v5969
          %v6036 = vpack.c.b16 %v5972, %v5970
          %6101 = vmatprep.subr.bf16.mxu0 %v5988
          %6102 = vmatpush1.bf16.msra.mxu0 %v5987
          %6103 = vmatprep.subr.bf16.mxu0 %v5986
          %6104 = vmatpush1.bf16.msra.mxu0 %v5985
          %6105 = vmatprep.subr.bf16.mxu0 %v5984
          %6106 = vmatpush1.bf16.msra.mxu0 %v5983
          %6107 = vmatprep.subr.bf16.mxu0 %v5982
          %6108 = vmatpush1.bf16.msra.mxu0 %v5981
          %6109 = vmatprep.subr.bf16.mxu0 %v5980
          %6110 = vmatpush1.bf16.msra.mxu0 %v5979
          %6111 = vmatprep.subr.bf16.mxu0 %v5978
          %6112 = vmatpush1.bf16.msra.mxu0 %v5977
          %6113 = vmatprep.subr.bf16.mxu0 %v5976
          %6114 = vmatpush1.bf16.msra.mxu0 %v5975
          %6115 = vmatprep.subr.bf16.mxu0 %v5974
          %6116 = vmatpush1.bf16.msra.mxu0 %v5973
          %6117 = vmatprep.subr.bf16.mxu0 %v6004
          %6118 = vmatpush2.bf16.msra.mxu0 %v6003
          %6119 = vmatprep.subr.bf16.mxu0 %v6002
          %6120 = vmatpush2.bf16.msra.mxu0 %v6001
          %6121 = vmatprep.subr.bf16.mxu0 %v6000
          %6122 = vmatpush2.bf16.msra.mxu0 %v5999
          %6123 = vmatprep.subr.bf16.mxu0 %v5998
          %6124 = vmatpush2.bf16.msra.mxu0 %v5997
          %6125 = vmatprep.subr.bf16.mxu0 %v5996
          %6126 = vmatpush2.bf16.msra.mxu0 %v5995
          %6127 = vmatprep.subr.bf16.mxu0 %v5994
          %6128 = vmatpush2.bf16.msra.mxu0 %v5993
          %6129 = vmatprep.subr.bf16.mxu0 %v5992
          %6130 = vmatpush2.bf16.msra.mxu0 %v5991
          %6131 = vmatprep.subr.bf16.mxu0 %v5990
          %6132 = vmatpush2.bf16.msra.mxu0 %v5989
          %6133 = vmatprep.mubr.bf16.mxu0 %v5702
          %6134 = vmatmul.mubr.bf16.gmra.mxu0 %v5701
          %v6135 = vpop.f32.mrf.mxu0
          %v6136 = vadd.f32 %v5774, %v6135
          %v6137 = vpop.f32.mrf.mxu0
          %v6138 = vadd.f32 %v5778, %v6137
          %v6139 = vpop.f32.mrf.mxu0
          %v6140 = vpop.f32.mrf.mxu0
          %6141 = vdwg.mxu0
          %6142 = vmatprep.subr.bf16.mxu0 %v6020
          %6143 = vmatpush1.bf16.msra.mxu0 %v6019
          %6144 = vmatprep.subr.bf16.mxu0 %v6018
          %6145 = vmatpush1.bf16.msra.mxu0 %v6017
          %6146 = vmatprep.subr.bf16.mxu0 %v6016
          %6147 = vmatpush1.bf16.msra.mxu0 %v6015
          %6148 = vmatprep.subr.bf16.mxu0 %v6014
          %6149 = vmatpush1.bf16.msra.mxu0 %v6013
          %6150 = vmatprep.subr.bf16.mxu0 %v6012
          %6151 = vmatpush1.bf16.msra.mxu0 %v6011
          %6152 = vmatprep.subr.bf16.mxu0 %v6010
          %6153 = vmatpush1.bf16.msra.mxu0 %v6009
          %6154 = vmatprep.subr.bf16.mxu0 %v6008
          %6155 = vmatpush1.bf16.msra.mxu0 %v6007
          %6156 = vmatprep.subr.bf16.mxu0 %v6006
          %6157 = vmatpush1.bf16.msra.mxu0 %v6005
          %6158 = vmatprep.subr.bf16.mxu0 %v6036
          %6159 = vmatpush2.bf16.msra.mxu0 %v6035
          %6160 = vmatprep.subr.bf16.mxu0 %v6034
          %6161 = vmatpush2.bf16.msra.mxu0 %v6033
          %6162 = vmatprep.subr.bf16.mxu0 %v6032
          %6163 = vmatpush2.bf16.msra.mxu0 %v6031
          %6164 = vmatprep.subr.bf16.mxu0 %v6030
          %6165 = vmatpush2.bf16.msra.mxu0 %v6029
          %6166 = vmatprep.subr.bf16.mxu0 %v6028
          %6167 = vmatpush2.bf16.msra.mxu0 %v6027
          %6168 = vmatprep.subr.bf16.mxu0 %v6026
          %6169 = vmatpush2.bf16.msra.mxu0 %v6025
          %6170 = vmatprep.subr.bf16.mxu0 %v6024
          %6171 = vmatpush2.bf16.msra.mxu0 %v6023
          %6172 = vmatprep.subr.bf16.mxu0 %v6022
          %6173 = vmatpush2.bf16.msra.mxu0 %v6021
          %6174 = vmatprep.mubr.bf16.mxu0 %v5704
          %6175 = vmatmul.mubr.bf16.gmra.mxu0 %v5703
          %v6176 = vpop.f32.mrf.mxu0
          %v6177 = vadd.f32 %v6136, %v6176
          %v6178 = vpop.f32.mrf.mxu0
          %v6179 = vadd.f32 %v6138, %v6178
          %v6180 = vpop.f32.mrf.mxu0
          %v6181 = vpop.f32.mrf.mxu0
          %6182 = vdwg.mxu0
          %v6183 = vmax.f32 %v6177, 0.0
          %v6184 = vmax.f32 %v6179, 0.0
          %v6185 = vpack.c.bf16 %v6183, %v6183
          %v6186 = vpack.c.bf16 %v6184, %v6184
          %v6187 = vld [vmem:[%s7] sm:$0xf]
          %v6188 = vld [vmem:[%s7 + $0x4] sm:$0xf]
          %v6189 = vld [vmem:[%s7 + $0x8] sm:$0xf]
          %v6190 = vld [vmem:[%s7 + $0xc] sm:$0xf]
          %v6191 = vld [vmem:[%s7 + $0x10] sm:$0xf]
          %v6192 = vld [vmem:[%s7 + $0x14] sm:$0xf]
          %v6193 = vld [vmem:[%s7 + $0x18] sm:$0xf]
          %v6194 = vld [vmem:[%s7 + $0x1c] sm:$0xf]
          %v6195 = vld [vmem:[%s7 + $0x20] sm:$0xf]
          %v6196 = vld [vmem:[%s7 + $0x24] sm:$0xf]
          %v6197 = vld [vmem:[%s7 + $0x28] sm:$0xf]
          %v6198 = vld [vmem:[%s7 + $0x2c] sm:$0xf]
          %v6199 = vld [vmem:[%s7 + $0x30] sm:$0xf]
          %v6200 = vld [vmem:[%s7 + $0x34] sm:$0xf]
          %v6201 = vld [vmem:[%s7 + $0x38] sm:$0xf]
          %v6202 = vld [vmem:[%s7 + $0x3c] sm:$0xf]
          %v6203 = vld [vmem:[%s7 + $0x40] sm:$0xf]
          %v6204 = vld [vmem:[%s7 + $0x44] sm:$0xf]
          %v6205 = vld [vmem:[%s7 + $0x48] sm:$0xf]
          %v6206 = vld [vmem:[%s7 + $0x4c] sm:$0xf]
          %v6207 = vld [vmem:[%s7 + $0x50] sm:$0xf]
          %v6208 = vld [vmem:[%s7 + $0x54] sm:$0xf]
          %v6209 = vld [vmem:[%s7 + $0x58] sm:$0xf]
          %v6210 = vld [vmem:[%s7 + $0x5c] sm:$0xf]
          %v6211 = vld [vmem:[%s7 + $0x60] sm:$0xf]
          %v6212 = vld [vmem:[%s7 + $0x64] sm:$0xf]
          %v6213 = vld [vmem:[%s7 + $0x68] sm:$0xf]
          %v6214 = vld [vmem:[%s7 + $0x6c] sm:$0xf]
          %v6215 = vld [vmem:[%s7 + $0x70] sm:$0xf]
          %v6216 = vld [vmem:[%s7 + $0x74] sm:$0xf]
          %v6217 = vld [vmem:[%s7 + $0x78] sm:$0xf]
          %v6218 = vld [vmem:[%s7 + $0x7c] sm:$0xf]
          %v6219 = vld [vmem:[%s8] sm:$0x1]
          %v6221 = vlaneseq
          %v6222 = vshrl.u32 %v6221, 7
          %v6223 = vsub.s32 0, %v6222
          %v6224 = vrot.slane %v6219, %v6223
          %v6258 = vunpack.c.l.b16 %v6187
          %v6259 = vunpack.c.l.b16 %v6188
          %v6260 = vunpack.c.l.b16 %v6189
          %v6261 = vunpack.c.l.b16 %v6190
          %v6262 = vunpack.c.l.b16 %v6191
          %v6263 = vunpack.c.l.b16 %v6192
          %v6264 = vunpack.c.l.b16 %v6193
          %v6265 = vunpack.c.l.b16 %v6194
          %v6266 = vunpack.c.l.b16 %v6195
          %v6267 = vunpack.c.l.b16 %v6196
          %v6268 = vunpack.c.l.b16 %v6197
          %v6269 = vunpack.c.l.b16 %v6198
          %v6270 = vunpack.c.l.b16 %v6199
          %v6271 = vunpack.c.l.b16 %v6200
          %v6272 = vunpack.c.l.b16 %v6201
          %v6273 = vunpack.c.l.b16 %v6202
          %v6274 = vunpack.c.l.b16 %v6203
          %v6275 = vunpack.c.l.b16 %v6204
          %v6276 = vunpack.c.l.b16 %v6205
          %v6277 = vunpack.c.l.b16 %v6206
          %v6278 = vunpack.c.l.b16 %v6207
          %v6279 = vunpack.c.l.b16 %v6208
          %v6280 = vunpack.c.l.b16 %v6209
          %v6281 = vunpack.c.l.b16 %v6210
          %v6282 = vunpack.c.l.b16 %v6211
          %v6283 = vunpack.c.l.b16 %v6212
          %v6284 = vunpack.c.l.b16 %v6213
          %v6285 = vunpack.c.l.b16 %v6214
          %v6286 = vunpack.c.l.b16 %v6215
          %v6287 = vunpack.c.l.b16 %v6216
          %v6288 = vunpack.c.l.b16 %v6217
          %v6289 = vunpack.c.l.b16 %v6218
          %v6290 = vpack.c.b16 %v6259, %v6258
          %v6291 = vpack.c.b16 %v6261, %v6260
          %v6292 = vpack.c.b16 %v6263, %v6262
          %v6293 = vpack.c.b16 %v6265, %v6264
          %v6294 = vpack.c.b16 %v6267, %v6266
          %v6295 = vpack.c.b16 %v6269, %v6268
          %v6296 = vpack.c.b16 %v6271, %v6270
          %v6297 = vpack.c.b16 %v6273, %v6272
          %v6298 = vpack.c.b16 %v6275, %v6274
          %v6299 = vpack.c.b16 %v6277, %v6276
          %v6300 = vpack.c.b16 %v6279, %v6278
          %v6301 = vpack.c.b16 %v6281, %v6280
          %v6302 = vpack.c.b16 %v6283, %v6282
          %v6303 = vpack.c.b16 %v6285, %v6284
          %v6304 = vpack.c.b16 %v6287, %v6286
          %v6305 = vpack.c.b16 %v6289, %v6288
          %6322 = vmatprep.subr.bf16.mxu0 0
          %6323 = vmatpush1.bf16.msra.mxu0 %v6297
          %6324 = vmatprep.subr.bf16.mxu0 0
          %6325 = vmatpush1.bf16.msra.mxu0 %v6296
          %6326 = vmatprep.subr.bf16.mxu0 0
          %6327 = vmatpush1.bf16.msra.mxu0 %v6295
          %6328 = vmatprep.subr.bf16.mxu0 0
          %6329 = vmatpush1.bf16.msra.mxu0 %v6294
          %6330 = vmatprep.subr.bf16.mxu0 0
          %6331 = vmatpush1.bf16.msra.mxu0 %v6293
          %6332 = vmatprep.subr.bf16.mxu0 0
          %6333 = vmatpush1.bf16.msra.mxu0 %v6292
          %6334 = vmatprep.subr.bf16.mxu0 0
          %6335 = vmatpush1.bf16.msra.mxu0 %v6291
          %6336 = vmatprep.subr.bf16.mxu0 0
          %6337 = vmatpush1.bf16.msra.mxu0 %v6290
          %6338 = vmatprep.subr.bf16.mxu0 0
          %6339 = vmatpush2.bf16.msra.mxu0 %v6305
          %6340 = vmatprep.subr.bf16.mxu0 0
          %6341 = vmatpush2.bf16.msra.mxu0 %v6304
          %6342 = vmatprep.subr.bf16.mxu0 0
          %6343 = vmatpush2.bf16.msra.mxu0 %v6303
          %6344 = vmatprep.subr.bf16.mxu0 0
          %6345 = vmatpush2.bf16.msra.mxu0 %v6302
          %6346 = vmatprep.subr.bf16.mxu0 0
          %6347 = vmatpush2.bf16.msra.mxu0 %v6301
          %6348 = vmatprep.subr.bf16.mxu0 0
          %6349 = vmatpush2.bf16.msra.mxu0 %v6300
          %6350 = vmatprep.subr.bf16.mxu0 0
          %6351 = vmatpush2.bf16.msra.mxu0 %v6299
          %6352 = vmatprep.subr.bf16.mxu0 0
          %6353 = vmatpush2.bf16.msra.mxu0 %v6298
          %6354 = vmatprep.mubr.bf16.mxu0 %v6186
          %6355 = vmatmul.mubr.bf16.gmra.mxu0 %v6185
          %v6356 = vpop.f32.mrf.mxu0
          %v6357 = vadd.f32 %v6224, %v6356
          %v6358 = vpop.f32.mrf.mxu0
          %v6359 = vpop.f32.mrf.mxu0
          %v6360 = vpop.f32.mrf.mxu0
          %6361 = vdwg.mxu0
          %6362 = vst [vmem:[%s645] sm:$0xf] %v6357
        $region105: #{siamese_forward.1} parent=92 // pred_fallthru
          _
        %p6363 = scmp.lt.s32.totalorder %s24, 0
        %s6364 = scalar_select %p6363, %s24, 0
        %s6365 = smul.addr %s6364, 4
        %s6366 = scalar_lea.vmem %s9, %s6365
        // Predicated region
        $region106: #{siamese_forward.1} parent=92 // pred_check
          %p6367 = pneg %p246
        $region107: #{siamese_forward.1} parent=92 // pred_check_branch
          %6369 = sbr.rel (%p6367) target = $region109
        $region108: #{siamese_forward.1} parent=92 // pred_region
          _
        $region109: #{siamese_forward.1} parent=92 // pred_fallthru
          _
        // Predicated region
        $region110: #{siamese_forward.1} parent=92 // pred_check
          %p6370 = pneg %p246
        $region111: #{siamese_forward.1} parent=92 // pred_check_branch
          %6372 = sbr.rel (%p6370) target = $region113
        $region112: #{siamese_forward.1} parent=92 // pred_region
          %p6373 = scmp.lt.s32.totalorder %s24, 0
          %s6374 = scalar_select %p6373, %s24, 0
          %s6375 = smul.addr %s6374, 4
          %s6376 = scalar_lea.vmem %s9, %s6375
        $region113: #{siamese_forward.1} parent=92 // pred_fallthru
          _
      $region93: #{siamese_forward.1} parent=5 // pred_fallthru
        _
      %p6377 = scmp.le.s32.totalorder 2, %s15
      // Predicated region
      $region114: #{siamese_forward.1} parent=5 // pred_check
        %p6378 = pneg %p6377
      $region115: #{siamese_forward.1} parent=5 // pred_check_branch
        %6380 = sbr.rel (%p6378) target = $region117
      $region116: #{siamese_forward.1} parent=5 // pred_region
        %s6381 = ssub.s32 %s15, 2
      $region117: #{siamese_forward.1} parent=5 // pred_fallthru
        _
    $region6: #{siamese_forward.1} parent=1 // loop_footer
      %s19 = sadd.s32 1, %s15
    $region7: #{siamese_forward.1} parent=1 // loop_footer_branch
      %14 = sbr.rel target = $region3
    $region8: #{siamese_forward.1} parent=1 // loop_exit
      _

</llo_original>
